<compile_context>
chip_gen: v6e
topology: v6e:2x2x1
jax: 0.10.0
libtpu: 0.0.40
codegen_flags: <defaults>
</compile_context>

<pallas_src>
import functools

import jax
import jax.numpy as jnp
import numpy as np
from jax.experimental import pallas as pl
from jax.experimental.pallas import tpu as pltpu

VMEM = pltpu.MemorySpace.VMEM


def _lrelu(v):
    return jnp.where(v >= 0.0, v, 0.01 * v)        # PyTorch LeakyReLU default slope


# ----------------------------------------------------------------------------
# Fused forward kernel (single grid step, everything resident in VMEM)
# ----------------------------------------------------------------------------
def _fused_forward_kernel(*refs, input_dim, stop, recon_vol, niters):
    it = iter(refs)
    x_ref, ei_ref, adj_ref, t_ref = next(it), next(it), next(it), next(it)
    in0_w, in0_b, in1_w, in1_b = next(it), next(it), next(it), next(it)
    gc = [tuple(next(it) for _ in range(5)) for _ in range(niters)]  # w1_i,w1_d,b1,w2,b2
    e0w_src, e0w_dst, e0_b, e1_w, e1_b = (next(it), next(it), next(it),
                                          next(it), next(it))
    pred_ref, node_ref, edge_ref = next(it), next(it), next(it)

    # ---- 1. feature normalization ------------------------------------------
    x = x_ref[...]                                   # (N, D) f32
    n, d = x.shape
    col = jax.lax.broadcasted_iota(jnp.int32, (n, d), 1)

    mean = jnp.mean(x, axis=0, keepdims=True)
    var = jnp.mean((x - mean) ** 2, axis=0, keepdims=True)   # biased (unbiased=False)
    z = (x - mean) / (jnp.sqrt(var) + 1e-4)
    xn = jnp.where(col < stop, z, 0.0)

    if input_dim > stop:
        xn = jnp.where(col == stop, x / (1000.0 * recon_vol), xn)
        xn = jnp.where(col == stop + 1, x / (100.0 * recon_vol), xn)

    if input_dim == 33:
        tcol = x[:, d - 1:d]                         # (N, 1) time column
        valid = tcol > -99.0
        cnt = jnp.maximum(jnp.sum(valid.astype(jnp.float32)), 1.0)  # guard all-invalid
        mt = jnp.sum(jnp.where(valid, tcol, 0.0)) / cnt
        vt = jnp.sum(jnp.where(valid, (tcol - mt) ** 2, 0.0)) / cnt
        st = jnp.sqrt(vt) + 1e-4
        tn = jnp.where(valid, (tcol - mt) / st, -10.0)
        xn = jnp.where(col == d - 1, tn, xn)

    # ---- 2. input MLP --------------------------------------------------------
    h = _lrelu(jnp.dot(xn, in0_w[...], preferred_element_type=jnp.float32)
               + in0_b[...])
    feat = _lrelu(jnp.dot(h, in1_w[...], preferred_element_type=jnp.float32)
                  + in1_b[...])                      # (N, H)

    # ---- 3. EdgeConv stack (statically unrolled, A - T computed once) -------
    t = t_ref[...]                                   # (M, N)
    a_minus_t = adj_ref[...] - t                     # (M, N)
    for (w1_i, w1_d, b1, w2, b2) in gc:
        # Reassociated: T @ (f @ w1_i) + (A - T) @ (f @ w1_d) + b1
        p_i = jnp.dot(feat, w1_i[...], preferred_element_type=jnp.float32)   # (N, 2H)
        p_d = jnp.dot(feat, w1_d[...], preferred_element_type=jnp.float32)   # (N, 2H)
        msg = (jnp.dot(t, p_i, preferred_element_type=jnp.float32)
               + jnp.dot(a_minus_t, p_d, preferred_element_type=jnp.float32)
               + b1[...])                                                     # (M, 2H)
        msg = jnp.maximum(msg, 0.0)
        msg = jnp.maximum(
            jnp.dot(msg, w2[...], preferred_element_type=jnp.float32) + b2[...],
            0.0)                                                              # (M, H)
        # agg = T^T @ msg without an explicit transpose
        agg = jax.lax.dot_general(t, msg, (((0,), (0,)), ((), ())),
                                  preferred_element_type=jnp.float32)         # (N, H)
        feat = jnp.maximum(feat + agg, 0.0)          # identity skip (in==out feat)

    node_ref[...] = feat.astype(node_ref.dtype)

    # ---- 4. edge embeddings (in-kernel one-hot gather) + edge network -------
    ei = ei_ref[...]                                 # (2, E) int32
    e = ei.shape[1]
    row = jax.lax.broadcasted_iota(jnp.int32, (n, e), 0)
    sel_src = (row == ei[0:1, :]).astype(jnp.float32)   # (N, E) one-hot of src
    sel_dst = (row == ei[1:2, :]).astype(jnp.float32)   # (N, E) one-hot of dst
    emb_src = jax.lax.dot_general(sel_src, feat, (((0,), (0,)), ((), ())),
                                  preferred_element_type=jnp.float32)   # (E, H)
    emb_dst = jax.lax.dot_general(sel_dst, feat, (((0,), (0,)), ((), ())),
                                  preferred_element_type=jnp.float32)   # (E, H)
    edge_ref[...] = jnp.concatenate([emb_src, emb_dst], axis=1).astype(edge_ref.dtype)

    # edgenetwork with the first weight split (no lane-axis concat feeding MXU)
    eh = _lrelu(jnp.dot(emb_src, e0w_src[...], preferred_element_type=jnp.float32)
                + jnp.dot(emb_dst, e0w_dst[...], preferred_element_type=jnp.float32)
                + e0_b[...])
    logits = jnp.dot(eh, e1_w[...], preferred_element_type=jnp.float32) + e1_b[...]
    pred_ref[...] = jax.nn.sigmoid(logits).astype(pred_ref.dtype)


# ----------------------------------------------------------------------------
# Parameters (deterministic init mirroring the nn.Linear shapes; W stored [in,out])
# ----------------------------------------------------------------------------
def init_params(key, input_dim, hidden_dim, niters):
    keys = jax.random.split(key, 4 + 2 * niters)
    it = iter(keys)

    def lin(fan_in, fan_out):
        kw, kb = jax.random.split(next(it))
        lim = 1.0 / float(np.sqrt(fan_in))
        w = jax.random.uniform(kw, (fan_in, fan_out), jnp.float32, -lim, lim)
        b = jax.random.uniform(kb, (1, fan_out), jnp.float32, -lim, lim)
        return w, b

    p = {}
    p["in0_w"], p["in0_b"] = lin(input_dim, hidden_dim)
    p["in1_w"], p["in1_b"] = lin(hidden_dim, hidden_dim)
    p["gc"] = []
    for _ in range(niters):
        w1, b1 = lin(2 * hidden_dim, 2 * hidden_dim)
        w2, b2 = lin(2 * hidden_dim, hidden_dim)
        p["gc"].append({"w1": w1, "b1": b1, "w2": w2, "b2": b2})
    p["edge0_w"], p["edge0_b"] = lin(2 * hidden_dim, hidden_dim)
    p["edge1_w"], p["edge1_b"] = lin(hidden_dim, 1)
    return p


# ----------------------------------------------------------------------------
# Forward wrapper: one pallas_call for the whole model
# ----------------------------------------------------------------------------
def forward(params, Xb, edge_index_b, Adj_b, T_b, *,
            input_dim, normalize_stop, recon_vol):
    X = jnp.squeeze(Xb, axis=0)[:, :input_dim].astype(jnp.float32)
    edge_index = jnp.squeeze(edge_index_b, axis=0).astype(jnp.int32)
    Adj = jnp.squeeze(Adj_b, axis=0).astype(jnp.float32)
    T = jnp.squeeze(T_b, axis=0).astype(jnp.float32)

    n = X.shape[0]
    e = edge_index.shape[1]
    H = params["in0_w"].shape[1]
    niters = len(params["gc"])

    inputs = [X, edge_index, Adj, T,
              params["in0_w"], params["in0_b"], params["in1_w"], params["in1_b"]]
    for gc in params["gc"]:
        # split w1 into its x_i / x_d halves once, outside the kernel
        inputs += [gc["w1"][:H], gc["w1"][H:], gc["b1"], gc["w2"], gc["b2"]]
    inputs += [params["edge0_w"][:H], params["edge0_w"][H:], params["edge0_b"],
               params["edge1_w"], params["edge1_b"]]

    out_shape = (jax.ShapeDtypeStruct((e, 1), jnp.float32),      # pred (pre-squeeze)
                 jax.ShapeDtypeStruct((n, H), jnp.float32),      # node_emb
                 jax.ShapeDtypeStruct((e, 2 * H), jnp.float32))  # edge_emb

    kernel = functools.partial(_fused_forward_kernel,
                               input_dim=input_dim, stop=normalize_stop,
                               recon_vol=recon_vol, niters=niters)

    pred2d, node_emb, edge_emb = pl.pallas_call(
        kernel,
        out_shape=out_shape,
        in_specs=[pl.BlockSpec(memory_space=VMEM) for _ in inputs],
        out_specs=(pl.BlockSpec(memory_space=VMEM),
                   pl.BlockSpec(memory_space=VMEM),
                   pl.BlockSpec(memory_space=VMEM)),
    )(*inputs)

    return pred2d[:, 0], node_emb, edge_emb


# ----------------------------------------------------------------------------
# Pure-JAX reference (highest precision), matching the PyTorch forward order
# ----------------------------------------------------------------------------
def ref_forward(params, Xb, eib, Ab, Tb, cfg):
    hp = jax.lax.Precision.HIGHEST
    dot = lambda a, b: jnp.dot(a, b, precision=hp)
    lrelu = lambda v: jnp.where(v >= 0, v, 0.01 * v)

    X = jnp.squeeze(Xb, 0)[:, :cfg["input_dim"]]
    stop = cfg["normalize_stop"]
    mean = X[:, :stop].mean(axis=0)
    std = jnp.sqrt(((X[:, :stop] - mean) ** 2).mean(axis=0)) + 1e-4
    Xn = jnp.zeros_like(X)
    Xn = Xn.at[:, :stop].set((X[:, :stop] - mean) / std)
    Xn = Xn.at[:, stop].set(X[:, stop] / (1000.0 * cfg["recon_vol"]))
    Xn = Xn.at[:, stop + 1].set(X[:, stop + 1] / (100.0 * cfg["recon_vol"]))
    t = X[:, -1]
    valid = t > -99.0
    cnt = jnp.maximum(valid.astype(jnp.float32).sum(), 1.0)
    mt = jnp.where(valid, t, 0.0).sum() / cnt
    st = jnp.sqrt(jnp.where(valid, (t - mt) ** 2, 0.0).sum() / cnt) + 1e-4
    Xn = Xn.at[:, -1].set(jnp.where(valid, (t - mt) / st, -10.0))

    A = jnp.squeeze(Ab, 0)
    T = jnp.squeeze(Tb, 0)
    edge_index = jnp.squeeze(eib, 0)

    h = lrelu(dot(Xn, params["in0_w"]) + params["in0_b"])
    node_emb = lrelu(dot(h, params["in1_w"]) + params["in1_b"])

    for p in params["gc"]:
        msgs = jnp.concatenate([dot(T, node_emb), dot(A - T, node_emb)], axis=1)
        hh = jnp.maximum(dot(msgs, p["w1"]) + p["b1"], 0.0)
        hh = jnp.maximum(dot(hh, p["w2"]) + p["b2"], 0.0)
        node_emb = jnp.maximum(node_emb + dot(T.T, hh), 0.0)

    src, dst = edge_index[0], edge_index[1]
    edge_emb = jnp.concatenate([node_emb[src], node_emb[dst]], axis=-1)
    eh = lrelu(dot(edge_emb, params["edge0_w"]) + params["edge0_b"])
    pred = jax.nn.sigmoid(dot(eh, params["edge1_w"]) + params["edge1_b"])[:, 0]
    return pred, node_emb, edge_emb


# ----------------------------------------------------------------------------
if __name__ == "__main__":
    N, E, H = 16, 12, 32
    INPUT_DIM, STOP, NITERS = 33, 30, 4
    RECON_VOL = (3 - 1.5) * 2 * 47 * 2               # 282.0, module default

    key = jax.random.PRNGKey(0)
    kx, kt, kp = jax.random.split(key, 3)

    X = jax.random.normal(kx, (N, INPUT_DIM), jnp.float32)
    t_valid = 9.0 + 0.3 * jax.random.normal(kt, (N,), jnp.float32)
    t_col = jnp.where((jnp.arange(N) % 4) == 0, -100.0, t_valid)  # some invalid times
    X = X.at[:, -1].set(t_col)

    src = jnp.arange(E, dtype=jnp.int32) % N
    dst = (3 * jnp.arange(E, dtype=jnp.int32) + 1) % N
    edge_index = jnp.stack([src, dst], axis=0)

    # Incidence matrices: M = N (self rows) + 2E (directed message rows)
    eye = jnp.eye(N, dtype=jnp.float32)
    T = jnp.concatenate([eye, eye[src], eye[dst]], axis=0)   # center-node picker
    A = jnp.concatenate([eye, eye[dst], eye[src]], axis=0)   # neighbor picker

    params = init_params(kp, INPUT_DIM, H, NITERS)
    cfg = dict(input_dim=INPUT_DIM, normalize_stop=STOP, recon_vol=RECON_VOL)

    # Leading batch dim of 1, matching the PyTorch forward signature.
    Xb, eib, Ab, Tb = X[None], edge_index[None], A[None], T[None]

    fwd = jax.jit(functools.partial(forward, **cfg))
    outs = jax.block_until_ready(fwd(params, Xb, eib, Ab, Tb))
    refs = ref_forward(params, Xb, eib, Ab, Tb, cfg)

    names = ["pred", "node_emb", "edge_emb"]
    for name, o, r in zip(names, outs, refs):
        np.testing.assert_allclose(np.asarray(o), np.asarray(r),
                                   rtol=2e-3, atol=2e-3, err_msg=name)

    print("KERNEL_OK")
</pallas_src>

<mosaic_0001>
module attributes {stable_mosaic.version = 11 : i64} {
  func.func @_fused_forward_kernel(%arg0: memref<16x33xf32, #tpu.memory_space<vmem>>, %arg1: memref<2x12xi32, #tpu.memory_space<vmem>>, %arg2: memref<40x16xf32, #tpu.memory_space<vmem>>, %arg3: memref<40x16xf32, #tpu.memory_space<vmem>>, %arg4: memref<33x32xf32, #tpu.memory_space<vmem>>, %arg5: memref<1x32xf32, #tpu.memory_space<vmem>>, %arg6: memref<32x32xf32, #tpu.memory_space<vmem>>, %arg7: memref<1x32xf32, #tpu.memory_space<vmem>>, %arg8: memref<32x64xf32, #tpu.memory_space<vmem>>, %arg9: memref<32x64xf32, #tpu.memory_space<vmem>>, %arg10: memref<1x64xf32, #tpu.memory_space<vmem>>, %arg11: memref<64x32xf32, #tpu.memory_space<vmem>>, %arg12: memref<1x32xf32, #tpu.memory_space<vmem>>, %arg13: memref<32x64xf32, #tpu.memory_space<vmem>>, %arg14: memref<32x64xf32, #tpu.memory_space<vmem>>, %arg15: memref<1x64xf32, #tpu.memory_space<vmem>>, %arg16: memref<64x32xf32, #tpu.memory_space<vmem>>, %arg17: memref<1x32xf32, #tpu.memory_space<vmem>>, %arg18: memref<32x64xf32, #tpu.memory_space<vmem>>, %arg19: memref<32x64xf32, #tpu.memory_space<vmem>>, %arg20: memref<1x64xf32, #tpu.memory_space<vmem>>, %arg21: memref<64x32xf32, #tpu.memory_space<vmem>>, %arg22: memref<1x32xf32, #tpu.memory_space<vmem>>, %arg23: memref<32x64xf32, #tpu.memory_space<vmem>>, %arg24: memref<32x64xf32, #tpu.memory_space<vmem>>, %arg25: memref<1x64xf32, #tpu.memory_space<vmem>>, %arg26: memref<64x32xf32, #tpu.memory_space<vmem>>, %arg27: memref<1x32xf32, #tpu.memory_space<vmem>>, %arg28: memref<32x32xf32, #tpu.memory_space<vmem>>, %arg29: memref<32x32xf32, #tpu.memory_space<vmem>>, %arg30: memref<1x32xf32, #tpu.memory_space<vmem>>, %arg31: memref<32x1xf32, #tpu.memory_space<vmem>>, %arg32: memref<1x1xf32, #tpu.memory_space<vmem>>, %arg33: memref<12x1xf32, #tpu.memory_space<vmem>>, %arg34: memref<16x32xf32, #tpu.memory_space<vmem>>, %arg35: memref<12x64xf32, #tpu.memory_space<vmem>>) attributes {dimension_semantics = [], scalar_prefetch = 0 : i64, scratch_operands = 0 : i64, tpu.core_type = #tpu.core_type<tc>} {
    %c0 = arith.constant 0 : index
    %c0_0 = arith.constant 0 : index
    %0 = vector.load %arg0[%c0, %c0_0] : memref<16x33xf32, #tpu.memory_space<vmem>>, vector<16x33xf32>
    %1 = tpu.iota {dimensions = array<i32: 1>} : vector<16x33xi32>
    %cst = arith.constant dense<0.000000e+00> : vector<33xf32>
    %2 = vector.multi_reduction <add>, %0, %cst [0] : vector<16x33xf32> to vector<33xf32>
    %3 = vector.shape_cast %2 : vector<33xf32> to vector<1x33xf32>
    %cst_1 = arith.constant 1.600000e+01 : f32
    %4 = vector.broadcast %cst_1 : f32 to vector<1x33xf32>
    %5 = arith.divf %3, %4 : vector<1x33xf32>
    %6 = vector.broadcast %5 : vector<1x33xf32> to vector<16x33xf32>
    %7 = arith.subf %0, %6 : vector<16x33xf32>
    %8 = arith.mulf %7, %7 : vector<16x33xf32>
    %cst_2 = arith.constant dense<0.000000e+00> : vector<33xf32>
    %9 = vector.multi_reduction <add>, %8, %cst_2 [0] : vector<16x33xf32> to vector<33xf32>
    %10 = vector.shape_cast %9 : vector<33xf32> to vector<1x33xf32>
    %cst_3 = arith.constant 1.600000e+01 : f32
    %11 = vector.broadcast %cst_3 : f32 to vector<1x33xf32>
    %12 = arith.divf %10, %11 : vector<1x33xf32>
    %13 = vector.broadcast %5 : vector<1x33xf32> to vector<16x33xf32>
    %14 = arith.subf %0, %13 : vector<16x33xf32>
    %15 = math.sqrt %12 : vector<1x33xf32>
    %cst_4 = arith.constant 9.99999974E-5 : f32
    %16 = vector.broadcast %cst_4 : f32 to vector<1x33xf32>
    %17 = arith.addf %15, %16 : vector<1x33xf32>
    %18 = vector.broadcast %17 : vector<1x33xf32> to vector<16x33xf32>
    %19 = arith.divf %14, %18 : vector<16x33xf32>
    %c30_i32 = arith.constant 30 : i32
    %20 = vector.broadcast %c30_i32 : i32 to vector<16x33xi32>
    %21 = arith.cmpi slt, %1, %20 : vector<16x33xi32>
    %cst_5 = arith.constant 0.000000e+00 : f32
    %22 = vector.broadcast %cst_5 : f32 to vector<16x33xf32>
    %23 = arith.select %21, %19, %22 : vector<16x33xi1>, vector<16x33xf32>
    %c30_i32_6 = arith.constant 30 : i32
    %24 = vector.broadcast %c30_i32_6 : i32 to vector<16x33xi32>
    %25 = arith.cmpi eq, %1, %24 : vector<16x33xi32>
    %cst_7 = arith.constant 2.820000e+05 : f32
    %26 = vector.broadcast %cst_7 : f32 to vector<16x33xf32>
    %27 = arith.divf %0, %26 : vector<16x33xf32>
    %28 = arith.select %25, %27, %23 : vector<16x33xi1>, vector<16x33xf32>
    %c31_i32 = arith.constant 31 : i32
    %29 = vector.broadcast %c31_i32 : i32 to vector<16x33xi32>
    %30 = arith.cmpi eq, %1, %29 : vector<16x33xi32>
    %cst_8 = arith.constant 2.820000e+04 : f32
    %31 = vector.broadcast %cst_8 : f32 to vector<16x33xf32>
    %32 = arith.divf %0, %31 : vector<16x33xf32>
    %33 = arith.select %30, %32, %28 : vector<16x33xi1>, vector<16x33xf32>
    %34 = vector.extract_strided_slice %0 {offsets = [0, 32], sizes = [16, 1], strides = [1, 1]} : vector<16x33xf32> to vector<16x1xf32>
    %cst_9 = arith.constant -9.900000e+01 : f32
    %35 = vector.broadcast %cst_9 : f32 to vector<16x1xf32>
    %36 = arith.cmpf ogt, %34, %35 : vector<16x1xf32>
    %37 = arith.extui %36 : vector<16x1xi1> to vector<16x1xi32>
    %38 = arith.sitofp %37 : vector<16x1xi32> to vector<16x1xf32>
    %39 = vector.shape_cast %38 : vector<16x1xf32> to vector<1x16x1xf32>
    %cst_10 = arith.constant dense<0.000000e+00> : vector<1xf32>
    %40 = vector.multi_reduction <add>, %39, %cst_10 [1, 2] : vector<1x16x1xf32> to vector<1xf32>
    %41 = vector.shape_cast %40 : vector<1xf32> to vector<1x1x1xf32>
    %42 = vector.extract %41[0, 0, 0] : f32 from vector<1x1x1xf32>
    %cst_11 = arith.constant 1.000000e+00 : f32
    %43 = arith.maximumf %42, %cst_11 : f32
    %cst_12 = arith.constant 0.000000e+00 : f32
    %44 = vector.broadcast %cst_12 : f32 to vector<16x1xf32>
    %45 = arith.select %36, %34, %44 : vector<16x1xi1>, vector<16x1xf32>
    %46 = vector.shape_cast %45 : vector<16x1xf32> to vector<1x16x1xf32>
    %cst_13 = arith.constant dense<0.000000e+00> : vector<1xf32>
    %47 = vector.multi_reduction <add>, %46, %cst_13 [1, 2] : vector<1x16x1xf32> to vector<1xf32>
    %48 = vector.shape_cast %47 : vector<1xf32> to vector<1x1x1xf32>
    %49 = vector.extract %48[0, 0, 0] : f32 from vector<1x1x1xf32>
    %50 = arith.divf %49, %43 : f32
    %51 = vector.broadcast %50 : f32 to vector<16x1xf32>
    %52 = arith.subf %34, %51 : vector<16x1xf32>
    %53 = arith.mulf %52, %52 : vector<16x1xf32>
    %cst_14 = arith.constant 0.000000e+00 : f32
    %54 = vector.broadcast %cst_14 : f32 to vector<16x1xf32>
    %55 = arith.select %36, %53, %54 : vector<16x1xi1>, vector<16x1xf32>
    %56 = vector.shape_cast %55 : vector<16x1xf32> to vector<1x16x1xf32>
    %cst_15 = arith.constant dense<0.000000e+00> : vector<1xf32>
    %57 = vector.multi_reduction <add>, %56, %cst_15 [1, 2] : vector<1x16x1xf32> to vector<1xf32>
    %58 = vector.shape_cast %57 : vector<1xf32> to vector<1x1x1xf32>
    %59 = vector.extract %58[0, 0, 0] : f32 from vector<1x1x1xf32>
    %60 = arith.divf %59, %43 : f32
    %61 = math.sqrt %60 : f32
    %cst_16 = arith.constant 9.99999974E-5 : f32
    %62 = arith.addf %61, %cst_16 : f32
    %63 = vector.broadcast %50 : f32 to vector<16x1xf32>
    %64 = arith.subf %34, %63 : vector<16x1xf32>
    %65 = vector.broadcast %62 : f32 to vector<16x1xf32>
    %66 = arith.divf %64, %65 : vector<16x1xf32>
    %cst_17 = arith.constant -1.000000e+01 : f32
    %67 = vector.broadcast %cst_17 : f32 to vector<16x1xf32>
    %68 = arith.select %36, %66, %67 : vector<16x1xi1>, vector<16x1xf32>
    %c32_i32 = arith.constant 32 : i32
    %69 = vector.broadcast %c32_i32 : i32 to vector<16x33xi32>
    %70 = arith.cmpi eq, %1, %69 : vector<16x33xi32>
    %71 = vector.shape_cast %68 : vector<16x1xf32> to vector<16x1xf32>
    %72 = vector.broadcast %71 : vector<16x1xf32> to vector<16x33xf32>
    %73 = arith.select %70, %72, %33 : vector<16x33xi1>, vector<16x33xf32>
    %c0_18 = arith.constant 0 : index
    %c0_19 = arith.constant 0 : index
    %74 = vector.load %arg4[%c0_18, %c0_19] : memref<33x32xf32, #tpu.memory_space<vmem>>, vector<33x32xf32>
    %cst_20 = arith.constant dense<0.000000e+00> : vector<16x32xf32>
    %75 = tpu.matmul %73, %74, %cst_20 {dimension_numbers = #tpu.dot_dimension_numbers<[1], [0], [0], [1], [0, 0, 1, 1], [], []>} : vector<16x33xf32>, vector<33x32xf32>, vector<16x32xf32> -> vector<16x32xf32>
    %c0_21 = arith.constant 0 : index
    %c0_22 = arith.constant 0 : index
    %76 = vector.load %arg5[%c0_21, %c0_22] : memref<1x32xf32, #tpu.memory_space<vmem>>, vector<1x32xf32>
    %77 = vector.broadcast %76 : vector<1x32xf32> to vector<16x32xf32>
    %78 = arith.addf %75, %77 : vector<16x32xf32>
    %cst_23 = arith.constant 0.000000e+00 : f32
    %79 = vector.broadcast %cst_23 : f32 to vector<16x32xf32>
    %80 = arith.cmpf oge, %78, %79 : vector<16x32xf32>
    %cst_24 = arith.constant 0.00999999977 : f32
    %81 = vector.broadcast %cst_24 : f32 to vector<16x32xf32>
    %82 = arith.mulf %81, %78 : vector<16x32xf32>
    %83 = arith.select %80, %78, %82 : vector<16x32xi1>, vector<16x32xf32>
    %c0_25 = arith.constant 0 : index
    %c0_26 = arith.constant 0 : index
    %84 = vector.load %arg6[%c0_25, %c0_26] : memref<32x32xf32, #tpu.memory_space<vmem>>, vector<32x32xf32>
    %cst_27 = arith.constant dense<0.000000e+00> : vector<16x32xf32>
    %85 = tpu.matmul %83, %84, %cst_27 {dimension_numbers = #tpu.dot_dimension_numbers<[1], [0], [0], [1], [0, 0, 1, 1], [], []>} : vector<16x32xf32>, vector<32x32xf32>, vector<16x32xf32> -> vector<16x32xf32>
    %c0_28 = arith.constant 0 : index
    %c0_29 = arith.constant 0 : index
    %86 = vector.load %arg7[%c0_28, %c0_29] : memref<1x32xf32, #tpu.memory_space<vmem>>, vector<1x32xf32>
    %87 = vector.broadcast %86 : vector<1x32xf32> to vector<16x32xf32>
    %88 = arith.addf %85, %87 : vector<16x32xf32>
    %cst_30 = arith.constant 0.000000e+00 : f32
    %89 = vector.broadcast %cst_30 : f32 to vector<16x32xf32>
    %90 = arith.cmpf oge, %88, %89 : vector<16x32xf32>
    %cst_31 = arith.constant 0.00999999977 : f32
    %91 = vector.broadcast %cst_31 : f32 to vector<16x32xf32>
    %92 = arith.mulf %91, %88 : vector<16x32xf32>
    %93 = arith.select %90, %88, %92 : vector<16x32xi1>, vector<16x32xf32>
    %c0_32 = arith.constant 0 : index
    %c0_33 = arith.constant 0 : index
    %94 = vector.load %arg3[%c0_32, %c0_33] : memref<40x16xf32, #tpu.memory_space<vmem>>, vector<40x16xf32>
    %c0_34 = arith.constant 0 : index
    %c0_35 = arith.constant 0 : index
    %95 = vector.load %arg2[%c0_34, %c0_35] : memref<40x16xf32, #tpu.memory_space<vmem>>, vector<40x16xf32>
    %96 = arith.subf %95, %94 : vector<40x16xf32>
    %c0_36 = arith.constant 0 : index
    %c0_37 = arith.constant 0 : index
    %97 = vector.load %arg8[%c0_36, %c0_37] : memref<32x64xf32, #tpu.memory_space<vmem>>, vector<32x64xf32>
    %cst_38 = arith.constant dense<0.000000e+00> : vector<16x64xf32>
    %98 = tpu.matmul %93, %97, %cst_38 {dimension_numbers = #tpu.dot_dimension_numbers<[1], [0], [0], [1], [0, 0, 1, 1], [], []>} : vector<16x32xf32>, vector<32x64xf32>, vector<16x64xf32> -> vector<16x64xf32>
    %c0_39 = arith.constant 0 : index
    %c0_40 = arith.constant 0 : index
    %99 = vector.load %arg9[%c0_39, %c0_40] : memref<32x64xf32, #tpu.memory_space<vmem>>, vector<32x64xf32>
    %cst_41 = arith.constant dense<0.000000e+00> : vector<16x64xf32>
    %100 = tpu.matmul %93, %99, %cst_41 {dimension_numbers = #tpu.dot_dimension_numbers<[1], [0], [0], [1], [0, 0, 1, 1], [], []>} : vector<16x32xf32>, vector<32x64xf32>, vector<16x64xf32> -> vector<16x64xf32>
    %cst_42 = arith.constant dense<0.000000e+00> : vector<40x64xf32>
    %101 = tpu.matmul %94, %98, %cst_42 {dimension_numbers = #tpu.dot_dimension_numbers<[1], [0], [0], [1], [0, 0, 1, 1], [], []>} : vector<40x16xf32>, vector<16x64xf32>, vector<40x64xf32> -> vector<40x64xf32>
    %cst_43 = arith.constant dense<0.000000e+00> : vector<40x64xf32>
    %102 = tpu.matmul %96, %100, %cst_43 {dimension_numbers = #tpu.dot_dimension_numbers<[1], [0], [0], [1], [0, 0, 1, 1], [], []>} : vector<40x16xf32>, vector<16x64xf32>, vector<40x64xf32> -> vector<40x64xf32>
    %103 = arith.addf %101, %102 : vector<40x64xf32>
    %c0_44 = arith.constant 0 : index
    %c0_45 = arith.constant 0 : index
    %104 = vector.load %arg10[%c0_44, %c0_45] : memref<1x64xf32, #tpu.memory_space<vmem>>, vector<1x64xf32>
    %105 = vector.broadcast %104 : vector<1x64xf32> to vector<40x64xf32>
    %106 = arith.addf %103, %105 : vector<40x64xf32>
    %cst_46 = arith.constant 0.000000e+00 : f32
    %107 = vector.broadcast %cst_46 : f32 to vector<40x64xf32>
    %108 = arith.maximumf %106, %107 : vector<40x64xf32>
    %c0_47 = arith.constant 0 : index
    %c0_48 = arith.constant 0 : index
    %109 = vector.load %arg11[%c0_47, %c0_48] : memref<64x32xf32, #tpu.memory_space<vmem>>, vector<64x32xf32>
    %cst_49 = arith.constant dense<0.000000e+00> : vector<40x32xf32>
    %110 = tpu.matmul %108, %109, %cst_49 {dimension_numbers = #tpu.dot_dimension_numbers<[1], [0], [0], [1], [0, 0, 1, 1], [], []>} : vector<40x64xf32>, vector<64x32xf32>, vector<40x32xf32> -> vector<40x32xf32>
    %c0_50 = arith.constant 0 : index
    %c0_51 = arith.constant 0 : index
    %111 = vector.load %arg12[%c0_50, %c0_51] : memref<1x32xf32, #tpu.memory_space<vmem>>, vector<1x32xf32>
    %112 = vector.broadcast %111 : vector<1x32xf32> to vector<40x32xf32>
    %113 = arith.addf %110, %112 : vector<40x32xf32>
    %cst_52 = arith.constant 0.000000e+00 : f32
    %114 = vector.broadcast %cst_52 : f32 to vector<40x32xf32>
    %115 = arith.maximumf %113, %114 : vector<40x32xf32>
    %cst_53 = arith.constant dense<0.000000e+00> : vector<16x32xf32>
    %116 = tpu.matmul %94, %115, %cst_53 {dimension_numbers = #tpu.dot_dimension_numbers<[0], [0], [1], [1], [0, 1, 1, 1], [], []>} : vector<40x16xf32>, vector<40x32xf32>, vector<16x32xf32> -> vector<16x32xf32>
    %117 = arith.addf %93, %116 : vector<16x32xf32>
    %cst_54 = arith.constant 0.000000e+00 : f32
    %118 = vector.broadcast %cst_54 : f32 to vector<16x32xf32>
    %119 = arith.maximumf %117, %118 : vector<16x32xf32>
    %c0_55 = arith.constant 0 : index
    %c0_56 = arith.constant 0 : index
    %120 = vector.load %arg13[%c0_55, %c0_56] : memref<32x64xf32, #tpu.memory_space<vmem>>, vector<32x64xf32>
    %cst_57 = arith.constant dense<0.000000e+00> : vector<16x64xf32>
    %121 = tpu.matmul %119, %120, %cst_57 {dimension_numbers = #tpu.dot_dimension_numbers<[1], [0], [0], [1], [0, 0, 1, 1], [], []>} : vector<16x32xf32>, vector<32x64xf32>, vector<16x64xf32> -> vector<16x64xf32>
    %c0_58 = arith.constant 0 : index
    %c0_59 = arith.constant 0 : index
    %122 = vector.load %arg14[%c0_58, %c0_59] : memref<32x64xf32, #tpu.memory_space<vmem>>, vector<32x64xf32>
    %cst_60 = arith.constant dense<0.000000e+00> : vector<16x64xf32>
    %123 = tpu.matmul %119, %122, %cst_60 {dimension_numbers = #tpu.dot_dimension_numbers<[1], [0], [0], [1], [0, 0, 1, 1], [], []>} : vector<16x32xf32>, vector<32x64xf32>, vector<16x64xf32> -> vector<16x64xf32>
    %cst_61 = arith.constant dense<0.000000e+00> : vector<40x64xf32>
    %124 = tpu.matmul %94, %121, %cst_61 {dimension_numbers = #tpu.dot_dimension_numbers<[1], [0], [0], [1], [0, 0, 1, 1], [], []>} : vector<40x16xf32>, vector<16x64xf32>, vector<40x64xf32> -> vector<40x64xf32>
    %cst_62 = arith.constant dense<0.000000e+00> : vector<40x64xf32>
    %125 = tpu.matmul %96, %123, %cst_62 {dimension_numbers = #tpu.dot_dimension_numbers<[1], [0], [0], [1], [0, 0, 1, 1], [], []>} : vector<40x16xf32>, vector<16x64xf32>, vector<40x64xf32> -> vector<40x64xf32>
    %126 = arith.addf %124, %125 : vector<40x64xf32>
    %c0_63 = arith.constant 0 : index
    %c0_64 = arith.constant 0 : index
    %127 = vector.load %arg15[%c0_63, %c0_64] : memref<1x64xf32, #tpu.memory_space<vmem>>, vector<1x64xf32>
    %128 = vector.broadcast %127 : vector<1x64xf32> to vector<40x64xf32>
    %129 = arith.addf %126, %128 : vector<40x64xf32>
    %cst_65 = arith.constant 0.000000e+00 : f32
    %130 = vector.broadcast %cst_65 : f32 to vector<40x64xf32>
    %131 = arith.maximumf %129, %130 : vector<40x64xf32>
    %c0_66 = arith.constant 0 : index
    %c0_67 = arith.constant 0 : index
    %132 = vector.load %arg16[%c0_66, %c0_67] : memref<64x32xf32, #tpu.memory_space<vmem>>, vector<64x32xf32>
    %cst_68 = arith.constant dense<0.000000e+00> : vector<40x32xf32>
    %133 = tpu.matmul %131, %132, %cst_68 {dimension_numbers = #tpu.dot_dimension_numbers<[1], [0], [0], [1], [0, 0, 1, 1], [], []>} : vector<40x64xf32>, vector<64x32xf32>, vector<40x32xf32> -> vector<40x32xf32>
    %c0_69 = arith.constant 0 : index
    %c0_70 = arith.constant 0 : index
    %134 = vector.load %arg17[%c0_69, %c0_70] : memref<1x32xf32, #tpu.memory_space<vmem>>, vector<1x32xf32>
    %135 = vector.broadcast %134 : vector<1x32xf32> to vector<40x32xf32>
    %136 = arith.addf %133, %135 : vector<40x32xf32>
    %cst_71 = arith.constant 0.000000e+00 : f32
    %137 = vector.broadcast %cst_71 : f32 to vector<40x32xf32>
    %138 = arith.maximumf %136, %137 : vector<40x32xf32>
    %cst_72 = arith.constant dense<0.000000e+00> : vector<16x32xf32>
    %139 = tpu.matmul %94, %138, %cst_72 {dimension_numbers = #tpu.dot_dimension_numbers<[0], [0], [1], [1], [0, 1, 1, 1], [], []>} : vector<40x16xf32>, vector<40x32xf32>, vector<16x32xf32> -> vector<16x32xf32>
    %140 = arith.addf %119, %139 : vector<16x32xf32>
    %cst_73 = arith.constant 0.000000e+00 : f32
    %141 = vector.broadcast %cst_73 : f32 to vector<16x32xf32>
    %142 = arith.maximumf %140, %141 : vector<16x32xf32>
    %c0_74 = arith.constant 0 : index
    %c0_75 = arith.constant 0 : index
    %143 = vector.load %arg18[%c0_74, %c0_75] : memref<32x64xf32, #tpu.memory_space<vmem>>, vector<32x64xf32>
    %cst_76 = arith.constant dense<0.000000e+00> : vector<16x64xf32>
    %144 = tpu.matmul %142, %143, %cst_76 {dimension_numbers = #tpu.dot_dimension_numbers<[1], [0], [0], [1], [0, 0, 1, 1], [], []>} : vector<16x32xf32>, vector<32x64xf32>, vector<16x64xf32> -> vector<16x64xf32>
    %c0_77 = arith.constant 0 : index
    %c0_78 = arith.constant 0 : index
    %145 = vector.load %arg19[%c0_77, %c0_78] : memref<32x64xf32, #tpu.memory_space<vmem>>, vector<32x64xf32>
    %cst_79 = arith.constant dense<0.000000e+00> : vector<16x64xf32>
    %146 = tpu.matmul %142, %145, %cst_79 {dimension_numbers = #tpu.dot_dimension_numbers<[1], [0], [0], [1], [0, 0, 1, 1], [], []>} : vector<16x32xf32>, vector<32x64xf32>, vector<16x64xf32> -> vector<16x64xf32>
    %cst_80 = arith.constant dense<0.000000e+00> : vector<40x64xf32>
    %147 = tpu.matmul %94, %144, %cst_80 {dimension_numbers = #tpu.dot_dimension_numbers<[1], [0], [0], [1], [0, 0, 1, 1], [], []>} : vector<40x16xf32>, vector<16x64xf32>, vector<40x64xf32> -> vector<40x64xf32>
    %cst_81 = arith.constant dense<0.000000e+00> : vector<40x64xf32>
    %148 = tpu.matmul %96, %146, %cst_81 {dimension_numbers = #tpu.dot_dimension_numbers<[1], [0], [0], [1], [0, 0, 1, 1], [], []>} : vector<40x16xf32>, vector<16x64xf32>, vector<40x64xf32> -> vector<40x64xf32>
    %149 = arith.addf %147, %148 : vector<40x64xf32>
    %c0_82 = arith.constant 0 : index
    %c0_83 = arith.constant 0 : index
    %150 = vector.load %arg20[%c0_82, %c0_83] : memref<1x64xf32, #tpu.memory_space<vmem>>, vector<1x64xf32>
    %151 = vector.broadcast %150 : vector<1x64xf32> to vector<40x64xf32>
    %152 = arith.addf %149, %151 : vector<40x64xf32>
    %cst_84 = arith.constant 0.000000e+00 : f32
    %153 = vector.broadcast %cst_84 : f32 to vector<40x64xf32>
    %154 = arith.maximumf %152, %153 : vector<40x64xf32>
    %c0_85 = arith.constant 0 : index
    %c0_86 = arith.constant 0 : index
    %155 = vector.load %arg21[%c0_85, %c0_86] : memref<64x32xf32, #tpu.memory_space<vmem>>, vector<64x32xf32>
    %cst_87 = arith.constant dense<0.000000e+00> : vector<40x32xf32>
    %156 = tpu.matmul %154, %155, %cst_87 {dimension_numbers = #tpu.dot_dimension_numbers<[1], [0], [0], [1], [0, 0, 1, 1], [], []>} : vector<40x64xf32>, vector<64x32xf32>, vector<40x32xf32> -> vector<40x32xf32>
    %c0_88 = arith.constant 0 : index
    %c0_89 = arith.constant 0 : index
    %157 = vector.load %arg22[%c0_88, %c0_89] : memref<1x32xf32, #tpu.memory_space<vmem>>, vector<1x32xf32>
    %158 = vector.broadcast %157 : vector<1x32xf32> to vector<40x32xf32>
    %159 = arith.addf %156, %158 : vector<40x32xf32>
    %cst_90 = arith.constant 0.000000e+00 : f32
    %160 = vector.broadcast %cst_90 : f32 to vector<40x32xf32>
    %161 = arith.maximumf %159, %160 : vector<40x32xf32>
    %cst_91 = arith.constant dense<0.000000e+00> : vector<16x32xf32>
    %162 = tpu.matmul %94, %161, %cst_91 {dimension_numbers = #tpu.dot_dimension_numbers<[0], [0], [1], [1], [0, 1, 1, 1], [], []>} : vector<40x16xf32>, vector<40x32xf32>, vector<16x32xf32> -> vector<16x32xf32>
    %163 = arith.addf %142, %162 : vector<16x32xf32>
    %cst_92 = arith.constant 0.000000e+00 : f32
    %164 = vector.broadcast %cst_92 : f32 to vector<16x32xf32>
    %165 = arith.maximumf %163, %164 : vector<16x32xf32>
    %c0_93 = arith.constant 0 : index
    %c0_94 = arith.constant 0 : index
    %166 = vector.load %arg23[%c0_93, %c0_94] : memref<32x64xf32, #tpu.memory_space<vmem>>, vector<32x64xf32>
    %cst_95 = arith.constant dense<0.000000e+00> : vector<16x64xf32>
    %167 = tpu.matmul %165, %166, %cst_95 {dimension_numbers = #tpu.dot_dimension_numbers<[1], [0], [0], [1], [0, 0, 1, 1], [], []>} : vector<16x32xf32>, vector<32x64xf32>, vector<16x64xf32> -> vector<16x64xf32>
    %c0_96 = arith.constant 0 : index
    %c0_97 = arith.constant 0 : index
    %168 = vector.load %arg24[%c0_96, %c0_97] : memref<32x64xf32, #tpu.memory_space<vmem>>, vector<32x64xf32>
    %cst_98 = arith.constant dense<0.000000e+00> : vector<16x64xf32>
    %169 = tpu.matmul %165, %168, %cst_98 {dimension_numbers = #tpu.dot_dimension_numbers<[1], [0], [0], [1], [0, 0, 1, 1], [], []>} : vector<16x32xf32>, vector<32x64xf32>, vector<16x64xf32> -> vector<16x64xf32>
    %cst_99 = arith.constant dense<0.000000e+00> : vector<40x64xf32>
    %170 = tpu.matmul %94, %167, %cst_99 {dimension_numbers = #tpu.dot_dimension_numbers<[1], [0], [0], [1], [0, 0, 1, 1], [], []>} : vector<40x16xf32>, vector<16x64xf32>, vector<40x64xf32> -> vector<40x64xf32>
    %cst_100 = arith.constant dense<0.000000e+00> : vector<40x64xf32>
    %171 = tpu.matmul %96, %169, %cst_100 {dimension_numbers = #tpu.dot_dimension_numbers<[1], [0], [0], [1], [0, 0, 1, 1], [], []>} : vector<40x16xf32>, vector<16x64xf32>, vector<40x64xf32> -> vector<40x64xf32>
    %172 = arith.addf %170, %171 : vector<40x64xf32>
    %c0_101 = arith.constant 0 : index
    %c0_102 = arith.constant 0 : index
    %173 = vector.load %arg25[%c0_101, %c0_102] : memref<1x64xf32, #tpu.memory_space<vmem>>, vector<1x64xf32>
    %174 = vector.broadcast %173 : vector<1x64xf32> to vector<40x64xf32>
    %175 = arith.addf %172, %174 : vector<40x64xf32>
    %cst_103 = arith.constant 0.000000e+00 : f32
    %176 = vector.broadcast %cst_103 : f32 to vector<40x64xf32>
    %177 = arith.maximumf %175, %176 : vector<40x64xf32>
    %c0_104 = arith.constant 0 : index
    %c0_105 = arith.constant 0 : index
    %178 = vector.load %arg26[%c0_104, %c0_105] : memref<64x32xf32, #tpu.memory_space<vmem>>, vector<64x32xf32>
    %cst_106 = arith.constant dense<0.000000e+00> : vector<40x32xf32>
    %179 = tpu.matmul %177, %178, %cst_106 {dimension_numbers = #tpu.dot_dimension_numbers<[1], [0], [0], [1], [0, 0, 1, 1], [], []>} : vector<40x64xf32>, vector<64x32xf32>, vector<40x32xf32> -> vector<40x32xf32>
    %c0_107 = arith.constant 0 : index
    %c0_108 = arith.constant 0 : index
    %180 = vector.load %arg27[%c0_107, %c0_108] : memref<1x32xf32, #tpu.memory_space<vmem>>, vector<1x32xf32>
    %181 = vector.broadcast %180 : vector<1x32xf32> to vector<40x32xf32>
    %182 = arith.addf %179, %181 : vector<40x32xf32>
    %cst_109 = arith.constant 0.000000e+00 : f32
    %183 = vector.broadcast %cst_109 : f32 to vector<40x32xf32>
    %184 = arith.maximumf %182, %183 : vector<40x32xf32>
    %cst_110 = arith.constant dense<0.000000e+00> : vector<16x32xf32>
    %185 = tpu.matmul %94, %184, %cst_110 {dimension_numbers = #tpu.dot_dimension_numbers<[0], [0], [1], [1], [0, 1, 1, 1], [], []>} : vector<40x16xf32>, vector<40x32xf32>, vector<16x32xf32> -> vector<16x32xf32>
    %186 = arith.addf %165, %185 : vector<16x32xf32>
    %cst_111 = arith.constant 0.000000e+00 : f32
    %187 = vector.broadcast %cst_111 : f32 to vector<16x32xf32>
    %188 = arith.maximumf %186, %187 : vector<16x32xf32>
    %c0_112 = arith.constant 0 : index
    %c0_113 = arith.constant 0 : index
    %189 = vector.load %arg34[%c0_112, %c0_113] : memref<16x32xf32, #tpu.memory_space<vmem>>, vector<16x32xf32>
    tpu.vector_store %arg34[%c0_112, %c0_113], %188 {strides = array<i32>} : memref<16x32xf32, #tpu.memory_space<vmem>>, vector<16x32xf32>,
    %c0_114 = arith.constant 0 : index
    %c0_115 = arith.constant 0 : index
    %190 = vector.load %arg1[%c0_114, %c0_115] : memref<2x12xi32, #tpu.memory_space<vmem>>, vector<2x12xi32>
    %191 = tpu.iota {dimensions = array<i32: 0>} : vector<16x12xi32>
    %192 = vector.extract_strided_slice %190 {offsets = [0, 0], sizes = [1, 12], strides = [1, 1]} : vector<2x12xi32> to vector<1x12xi32>
    %193 = vector.broadcast %192 : vector<1x12xi32> to vector<16x12xi32>
    %194 = arith.cmpi eq, %191, %193 : vector<16x12xi32>
    %195 = arith.extui %194 : vector<16x12xi1> to vector<16x12xi32>
    %196 = arith.sitofp %195 : vector<16x12xi32> to vector<16x12xf32>
    %197 = vector.extract_strided_slice %190 {offsets = [1, 0], sizes = [1, 12], strides = [1, 1]} : vector<2x12xi32> to vector<1x12xi32>
    %198 = vector.broadcast %197 : vector<1x12xi32> to vector<16x12xi32>
    %199 = arith.cmpi eq, %191, %198 : vector<16x12xi32>
    %200 = arith.extui %199 : vector<16x12xi1> to vector<16x12xi32>
    %201 = arith.sitofp %200 : vector<16x12xi32> to vector<16x12xf32>
    %cst_116 = arith.constant dense<0.000000e+00> : vector<12x32xf32>
    %202 = tpu.matmul %196, %188, %cst_116 {dimension_numbers = #tpu.dot_dimension_numbers<[0], [0], [1], [1], [0, 1, 1, 1], [], []>} : vector<16x12xf32>, vector<16x32xf32>, vector<12x32xf32> -> vector<12x32xf32>
    %cst_117 = arith.constant dense<0.000000e+00> : vector<12x32xf32>
    %203 = tpu.matmul %201, %188, %cst_117 {dimension_numbers = #tpu.dot_dimension_numbers<[0], [0], [1], [1], [0, 1, 1, 1], [], []>} : vector<16x12xf32>, vector<16x32xf32>, vector<12x32xf32> -> vector<12x32xf32>
    %204 = tpu.concatenate %202, %203 in 1 : vector<12x32xf32>, vector<12x32xf32> -> vector<12x64xf32>
    %c0_118 = arith.constant 0 : index
    %c0_119 = arith.constant 0 : index
    %205 = vector.load %arg35[%c0_118, %c0_119] : memref<12x64xf32, #tpu.memory_space<vmem>>, vector<12x64xf32>
    tpu.vector_store %arg35[%c0_118, %c0_119], %204 {strides = array<i32>} : memref<12x64xf32, #tpu.memory_space<vmem>>, vector<12x64xf32>,
    %c0_120 = arith.constant 0 : index
    %c0_121 = arith.constant 0 : index
    %206 = vector.load %arg28[%c0_120, %c0_121] : memref<32x32xf32, #tpu.memory_space<vmem>>, vector<32x32xf32>
    %cst_122 = arith.constant dense<0.000000e+00> : vector<12x32xf32>
    %207 = tpu.matmul %202, %206, %cst_122 {dimension_numbers = #tpu.dot_dimension_numbers<[1], [0], [0], [1], [0, 0, 1, 1], [], []>} : vector<12x32xf32>, vector<32x32xf32>, vector<12x32xf32> -> vector<12x32xf32>
    %c0_123 = arith.constant 0 : index
    %c0_124 = arith.constant 0 : index
    %208 = vector.load %arg29[%c0_123, %c0_124] : memref<32x32xf32, #tpu.memory_space<vmem>>, vector<32x32xf32>
    %cst_125 = arith.constant dense<0.000000e+00> : vector<12x32xf32>
    %209 = tpu.matmul %203, %208, %cst_125 {dimension_numbers = #tpu.dot_dimension_numbers<[1], [0], [0], [1], [0, 0, 1, 1], [], []>} : vector<12x32xf32>, vector<32x32xf32>, vector<12x32xf32> -> vector<12x32xf32>
    %210 = arith.addf %207, %209 : vector<12x32xf32>
    %c0_126 = arith.constant 0 : index
    %c0_127 = arith.constant 0 : index
    %211 = vector.load %arg30[%c0_126, %c0_127] : memref<1x32xf32, #tpu.memory_space<vmem>>, vector<1x32xf32>
    %212 = vector.broadcast %211 : vector<1x32xf32> to vector<12x32xf32>
    %213 = arith.addf %210, %212 : vector<12x32xf32>
    %cst_128 = arith.constant 0.000000e+00 : f32
    %214 = vector.broadcast %cst_128 : f32 to vector<12x32xf32>
    %215 = arith.cmpf oge, %213, %214 : vector<12x32xf32>
    %cst_129 = arith.constant 0.00999999977 : f32
    %216 = vector.broadcast %cst_129 : f32 to vector<12x32xf32>
    %217 = arith.mulf %216, %213 : vector<12x32xf32>
    %218 = arith.select %215, %213, %217 : vector<12x32xi1>, vector<12x32xf32>
    %c0_130 = arith.constant 0 : index
    %c0_131 = arith.constant 0 : index
    %219 = vector.load %arg31[%c0_130, %c0_131] : memref<32x1xf32, #tpu.memory_space<vmem>>, vector<32x1xf32>
    %cst_132 = arith.constant dense<0.000000e+00> : vector<12x1xf32>
    %220 = tpu.matmul %218, %219, %cst_132 {dimension_numbers = #tpu.dot_dimension_numbers<[1], [0], [0], [1], [0, 0, 1, 1], [], []>} : vector<12x32xf32>, vector<32x1xf32>, vector<12x1xf32> -> vector<12x1xf32>
    %c0_133 = arith.constant 0 : index
    %c0_134 = arith.constant 0 : index
    %221 = vector.load %arg32[%c0_133, %c0_134] : memref<1x1xf32, #tpu.memory_space<vmem>>, vector<1x1xf32>
    %222 = vector.broadcast %221 : vector<1x1xf32> to vector<12x1xf32>
    %223 = arith.addf %220, %222 : vector<12x1xf32>
    %224 = arith.negf %223 : vector<12x1xf32>
    %225 = math.exp %224 : vector<12x1xf32>
    %cst_135 = arith.constant 1.000000e+00 : f32
    %226 = vector.broadcast %cst_135 : f32 to vector<12x1xf32>
    %227 = arith.addf %226, %225 : vector<12x1xf32>
    %228 = arith.divf %226, %227 : vector<12x1xf32>
    %c0_136 = arith.constant 0 : index
    %c0_137 = arith.constant 0 : index
    %229 = vector.load %arg33[%c0_136, %c0_137] : memref<12x1xf32, #tpu.memory_space<vmem>>, vector<12x1xf32>
    tpu.vector_store %arg33[%c0_136, %c0_137], %228 {strides = array<i32>} : memref<12x1xf32, #tpu.memory_space<vmem>>, vector<12x1xf32>,
    return
  }
}

</mosaic_0001>

<llo_original>
// kernel: forward.1
$region0: #{forward.1}
  #allocation0 [shape = 'u32[]', space=smem, size = 0x4, offset = 0x4, fixed_abs, tag = 'smem constant byte address 0x4 - core index']
  #allocation1 [shape = 'u32[144,128]{1,0:T(1,128)}', space=vmem, size = 0x12000, scoped, tag = 'internal scratch']
  #allocation2 [shape = 'f32[1,1]{1,0:T(1,128)S(1)}', space=vmem, size = 0x200, scoped, tag = 'scoped memory for forward.1']
  %s0 = inlined_call_operand.smem [shape: u32[36], index: -1, kind: input, shape index: {}]
  %s1 = sld [smem:[%s0]]
  %s2 = scalar_lea.smem %s0, 1
  %s3 = sld [smem:[%s2]]
  %s4 = scalar_lea.smem %s0, 2
  %s5 = sld [smem:[%s4]]
  %s6 = scalar_lea.smem %s0, 3
  %s7 = sld [smem:[%s6]]
  %s8 = scalar_lea.smem %s0, 4
  %s9 = sld [smem:[%s8]]
  %s10 = scalar_lea.smem %s0, 5
  %s11 = sld [smem:[%s10]]
  %s12 = scalar_lea.smem %s0, 6
  %s13 = sld [smem:[%s12]]
  %s14 = scalar_lea.smem %s0, 7
  %s15 = sld [smem:[%s14]]
  %s16 = scalar_lea.smem %s0, 8
  %s17 = sld [smem:[%s16]]
  %s18 = scalar_lea.smem %s0, 9
  %s19 = sld [smem:[%s18]]
  %s20 = scalar_lea.smem %s0, 10
  %s21 = sld [smem:[%s20]]
  %s22 = scalar_lea.smem %s0, 11
  %s23 = sld [smem:[%s22]]
  %s24 = scalar_lea.smem %s0, 12
  %s25 = sld [smem:[%s24]]
  %s26 = scalar_lea.smem %s0, 13
  %s27 = sld [smem:[%s26]]
  %s28 = scalar_lea.smem %s0, 14
  %s29 = sld [smem:[%s28]]
  %s30 = scalar_lea.smem %s0, 15
  %s31 = sld [smem:[%s30]]
  %s32 = scalar_lea.smem %s0, 16
  %s33 = sld [smem:[%s32]]
  %s34 = scalar_lea.smem %s0, 17
  %s35 = sld [smem:[%s34]]
  %s36 = scalar_lea.smem %s0, 18
  %s37 = sld [smem:[%s36]]
  %s38 = scalar_lea.smem %s0, 19
  %s39 = sld [smem:[%s38]]
  %s40 = scalar_lea.smem %s0, 20
  %s41 = sld [smem:[%s40]]
  %s42 = scalar_lea.smem %s0, 21
  %s43 = sld [smem:[%s42]]
  %s44 = scalar_lea.smem %s0, 22
  %s45 = sld [smem:[%s44]]
  %s46 = scalar_lea.smem %s0, 23
  %s47 = sld [smem:[%s46]]
  %s48 = scalar_lea.smem %s0, 24
  %s49 = sld [smem:[%s48]]
  %s50 = scalar_lea.smem %s0, 25
  %s51 = sld [smem:[%s50]]
  %s52 = scalar_lea.smem %s0, 26
  %s53 = sld [smem:[%s52]]
  %s54 = scalar_lea.smem %s0, 27
  %s55 = sld [smem:[%s54]]
  %s56 = scalar_lea.smem %s0, 28
  %s57 = sld [smem:[%s56]]
  %s58 = scalar_lea.smem %s0, 29
  %s59 = sld [smem:[%s58]]
  %s60 = scalar_lea.smem %s0, 30
  %s61 = sld [smem:[%s60]]
  %s62 = scalar_lea.smem %s0, 31
  %s63 = sld [smem:[%s62]]
  %s64 = scalar_lea.smem %s0, 32
  %s65 = sld [smem:[%s64]]
  %s66 = scalar_lea.smem %s0, 33
  %s67 = sld [smem:[%s66]]
  %s68 = scalar_lea.smem %s0, 34
  %s69 = sld [smem:[%s68]]
  %s70 = scalar_lea.smem %s0, 35
  %s71 = sld [smem:[%s70]]
  %72 = xla_tuple %s67, %s69, %s71
  %s73 = sld [smem:[#allocation0]]
  $region158: #{forward.1} parent=0
    _
  %s75 = ssub.s32 1, %s73
  %s76 = scalar_select 0, %s75, %s73
  %v77 = vstv %s65
  %78 = vst [vmem:[#allocation2] sm:$0x1] %v77
  $region1: #{forward.1} parent=0
    #allocation3 [shape = 'u8[8192]{0}', space=vmem, size = 0x2000, scoped, tag = 'output window, operand 1, single buffered']
    #allocation4 [shape = 's32[1]{0}', space=sflag, size = 0x4, scoped, tag = 'scoped memory for forward.1']
    #allocation5 [shape = 'u8[8192]{0}', space=vmem, size = 0x2000, scoped, tag = 'output window, operand 2, single buffered']
    #allocation6 [shape = 's32[1]{0}', space=sflag, size = 0x4, scoped, tag = 'scoped memory for forward.1']
    %79 = vsyncpa [#allocation4], 0
    %80 = vsyncpa [#allocation6], 0
    // Predicated region
    $region2: #{forward.1} parent=1 // pred_check
      _
    $region3: #{forward.1} parent=1 // pred_check_branch
      %82 = sbr.rel (0) target = $region5
    $region4: #{forward.1} parent=1 // pred_region
      _
    $region5: #{forward.1} parent=1 // pred_fallthru
      _
    // Predicated region
    $region6: #{forward.1} parent=1 // pred_check
      _
    $region7: #{forward.1} parent=1 // pred_check_branch
      %84 = sbr.rel (0) target = $region9
    $region8: #{forward.1} parent=1 // pred_region
      _
    $region9: #{forward.1} parent=1 // pred_fallthru
      _
    // Predicated region
    $region10: #{forward.1} parent=1 // pred_check
      _
    $region11: #{forward.1} parent=1 // pred_check_branch
      %86 = sbr.rel (0) target = $region13
    $region12: #{forward.1} parent=1 // pred_region
      _
    $region13: #{forward.1} parent=1 // pred_fallthru
      _
    // Predicated region
    $region14: #{forward.1} parent=1 // pred_check
      _
    $region15: #{forward.1} parent=1 // pred_check_branch
      %88 = sbr.rel (0) target = $region17
    $region16: #{forward.1} parent=1 // pred_region
      _
    $region17: #{forward.1} parent=1 // pred_fallthru
      _
    // Predicated region
    $region18: #{forward.1} parent=1 // pred_check
      _
    $region19: #{forward.1} parent=1 // pred_check_branch
      %90 = sbr.rel (0) target = $region21
    $region20: #{forward.1} parent=1 // pred_region
      _
    $region21: #{forward.1} parent=1 // pred_fallthru
      _
    // Predicated region
    $region22: #{forward.1} parent=1 // pred_check
      _
    $region23: #{forward.1} parent=1 // pred_check_branch
      %92 = sbr.rel (0) target = $region25
    $region24: #{forward.1} parent=1 // pred_region
      _
    $region25: #{forward.1} parent=1 // pred_fallthru
      _
    // Predicated region
    $region26: #{forward.1} parent=1 // pred_check
      _
    $region27: #{forward.1} parent=1 // pred_check_branch
      %94 = sbr.rel (0) target = $region29
    $region28: #{forward.1} parent=1 // pred_region
      _
    $region29: #{forward.1} parent=1 // pred_fallthru
      _
    // Predicated region
    $region30: #{forward.1} parent=1 // pred_check
      _
    $region31: #{forward.1} parent=1 // pred_check_branch
      %96 = sbr.rel (0) target = $region33
    $region32: #{forward.1} parent=1 // pred_region
      _
    $region33: #{forward.1} parent=1 // pred_fallthru
      _
    // Predicated region
    $region34: #{forward.1} parent=1 // pred_check
      _
    $region35: #{forward.1} parent=1 // pred_check_branch
      %98 = sbr.rel (0) target = $region37
    $region36: #{forward.1} parent=1 // pred_region
      _
    $region37: #{forward.1} parent=1 // pred_fallthru
      _
    // Predicated region
    $region38: #{forward.1} parent=1 // pred_check
      _
    $region39: #{forward.1} parent=1 // pred_check_branch
      %100 = sbr.rel (0) target = $region41
    $region40: #{forward.1} parent=1 // pred_region
      _
    $region41: #{forward.1} parent=1 // pred_fallthru
      _
    // Predicated region
    $region42: #{forward.1} parent=1 // pred_check
      _
    $region43: #{forward.1} parent=1 // pred_check_branch
      %102 = sbr.rel (0) target = $region45
    $region44: #{forward.1} parent=1 // pred_region
      _
    $region45: #{forward.1} parent=1 // pred_fallthru
      _
    // Predicated region
    $region46: #{forward.1} parent=1 // pred_check
      _
    $region47: #{forward.1} parent=1 // pred_check_branch
      %104 = sbr.rel (0) target = $region49
    $region48: #{forward.1} parent=1 // pred_region
      _
    $region49: #{forward.1} parent=1 // pred_fallthru
      _
    // Predicated region
    $region50: #{forward.1} parent=1 // pred_check
      _
    $region51: #{forward.1} parent=1 // pred_check_branch
      %106 = sbr.rel (0) target = $region53
    $region52: #{forward.1} parent=1 // pred_region
      _
    $region53: #{forward.1} parent=1 // pred_fallthru
      _
    // Predicated region
    $region54: #{forward.1} parent=1 // pred_check
      _
    $region55: #{forward.1} parent=1 // pred_check_branch
      %108 = sbr.rel (0) target = $region57
    $region56: #{forward.1} parent=1 // pred_region
      _
    $region57: #{forward.1} parent=1 // pred_fallthru
      _
    // Predicated region
    $region58: #{forward.1} parent=1 // pred_check
      _
    $region59: #{forward.1} parent=1 // pred_check_branch
      %110 = sbr.rel (0) target = $region61
    $region60: #{forward.1} parent=1 // pred_region
      _
    $region61: #{forward.1} parent=1 // pred_fallthru
      _
    // Predicated region
    $region62: #{forward.1} parent=1 // pred_check
      _
    $region63: #{forward.1} parent=1 // pred_check_branch
      %112 = sbr.rel (0) target = $region65
    $region64: #{forward.1} parent=1 // pred_region
      _
    $region65: #{forward.1} parent=1 // pred_fallthru
      _
    // Predicated region
    $region66: #{forward.1} parent=1 // pred_check
      _
    $region67: #{forward.1} parent=1 // pred_check_branch
      %114 = sbr.rel (0) target = $region69
    $region68: #{forward.1} parent=1 // pred_region
      _
    $region69: #{forward.1} parent=1 // pred_fallthru
      _
    // Predicated region
    $region70: #{forward.1} parent=1 // pred_check
      _
    $region71: #{forward.1} parent=1 // pred_check_branch
      %116 = sbr.rel (0) target = $region73
    $region72: #{forward.1} parent=1 // pred_region
      _
    $region73: #{forward.1} parent=1 // pred_fallthru
      _
    // Predicated region
    $region74: #{forward.1} parent=1 // pred_check
      _
    $region75: #{forward.1} parent=1 // pred_check_branch
      %118 = sbr.rel (0) target = $region77
    $region76: #{forward.1} parent=1 // pred_region
      _
    $region77: #{forward.1} parent=1 // pred_fallthru
      _
    // Predicated region
    $region78: #{forward.1} parent=1 // pred_check
      _
    $region79: #{forward.1} parent=1 // pred_check_branch
      %120 = sbr.rel (0) target = $region81
    $region80: #{forward.1} parent=1 // pred_region
      _
    $region81: #{forward.1} parent=1 // pred_fallthru
      _
    // Predicated region
    $region82: #{forward.1} parent=1 // pred_check
      _
    $region83: #{forward.1} parent=1 // pred_check_branch
      %122 = sbr.rel (0) target = $region85
    $region84: #{forward.1} parent=1 // pred_region
      _
    $region85: #{forward.1} parent=1 // pred_fallthru
      _
    // Predicated region
    $region86: #{forward.1} parent=1 // pred_check
      _
    $region87: #{forward.1} parent=1 // pred_check_branch
      %124 = sbr.rel (0) target = $region89
    $region88: #{forward.1} parent=1 // pred_region
      _
    $region89: #{forward.1} parent=1 // pred_fallthru
      _
    // Predicated region
    $region90: #{forward.1} parent=1 // pred_check
      _
    $region91: #{forward.1} parent=1 // pred_check_branch
      %126 = sbr.rel (0) target = $region93
    $region92: #{forward.1} parent=1 // pred_region
      _
    $region93: #{forward.1} parent=1 // pred_fallthru
      _
    // Predicated region
    $region94: #{forward.1} parent=1 // pred_check
      _
    $region95: #{forward.1} parent=1 // pred_check_branch
      %128 = sbr.rel (0) target = $region97
    $region96: #{forward.1} parent=1 // pred_region
      _
    $region97: #{forward.1} parent=1 // pred_fallthru
      _
    // Predicated region
    $region98: #{forward.1} parent=1 // pred_check
      _
    $region99: #{forward.1} parent=1 // pred_check_branch
      %130 = sbr.rel (0) target = $region101
    $region100: #{forward.1} parent=1 // pred_region
      _
    $region101: #{forward.1} parent=1 // pred_fallthru
      _
    // Predicated region
    $region102: #{forward.1} parent=1 // pred_check
      _
    $region103: #{forward.1} parent=1 // pred_check_branch
      %132 = sbr.rel (0) target = $region105
    $region104: #{forward.1} parent=1 // pred_region
      _
    $region105: #{forward.1} parent=1 // pred_fallthru
      _
    // Predicated region
    $region106: #{forward.1} parent=1 // pred_check
      _
    $region107: #{forward.1} parent=1 // pred_check_branch
      %134 = sbr.rel (0) target = $region109
    $region108: #{forward.1} parent=1 // pred_region
      _
    $region109: #{forward.1} parent=1 // pred_fallthru
      _
    // Predicated region
    $region110: #{forward.1} parent=1 // pred_check
      _
    $region111: #{forward.1} parent=1 // pred_check_branch
      %136 = sbr.rel (0) target = $region113
    $region112: #{forward.1} parent=1 // pred_region
      _
    $region113: #{forward.1} parent=1 // pred_fallthru
      _
    // Predicated region
    $region114: #{forward.1} parent=1 // pred_check
      _
    $region115: #{forward.1} parent=1 // pred_check_branch
      %138 = sbr.rel (0) target = $region117
    $region116: #{forward.1} parent=1 // pred_region
      _
    $region117: #{forward.1} parent=1 // pred_fallthru
      _
    // Predicated region
    $region118: #{forward.1} parent=1 // pred_check
      _
    $region119: #{forward.1} parent=1 // pred_check_branch
      %140 = sbr.rel (0) target = $region121
    $region120: #{forward.1} parent=1 // pred_region
      _
    $region121: #{forward.1} parent=1 // pred_fallthru
      _
    // Predicated region
    $region122: #{forward.1} parent=1 // pred_check
      _
    $region123: #{forward.1} parent=1 // pred_check_branch
      %142 = sbr.rel (0) target = $region125
    $region124: #{forward.1} parent=1 // pred_region
      _
    $region125: #{forward.1} parent=1 // pred_fallthru
      _
    // Predicated region
    $region126: #{forward.1} parent=1 // pred_check
      _
    $region127: #{forward.1} parent=1 // pred_check_branch
      %144 = sbr.rel (0) target = $region129
    $region128: #{forward.1} parent=1 // pred_region
      _
    $region129: #{forward.1} parent=1 // pred_fallthru
      _
    // Predicated region
    $region130: #{forward.1} parent=1 // pred_check
      _
    $region131: #{forward.1} parent=1 // pred_check_branch
      %146 = sbr.rel (0) target = $region133
    $region132: #{forward.1} parent=1 // pred_region
      _
    $region133: #{forward.1} parent=1 // pred_fallthru
      _
    %v147 = vld [vmem:[%s1] sm:$0xff]
    %v148 = vld [vmem:[%s1 + $0x8] sm:$0xff]
    %v149 = vlaneseq
    %v150 = vand.u32 %v149, 127
    %vm151 = vcmask 269312
    %v152 = vsel %vm151, %v147, 0.0
    %v153 = vsel %vm151, %v148, 0.0
    %v154 = vadd.f32 %v152, %v153
    %v155 = vrot.slane %v154, 4
    %v156 = vadd.f32 %v154, %v155
    %v157 = vrot.slane %v156, 2
    %v158 = vadd.f32 %v156, %v157
    %v159 = vrot.slane %v158, 1
    %v160 = vadd.f32 %v158, %v159
    %v161 = vrcp.pop 16.0
    %v162 = vmul.f32 %v160, %v161
    %v163 = vsub.f32 %v147, %v162
    %v164 = vsub.f32 %v148, %v162
    %v165 = vmul.f32 %v163, %v163
    %v166 = vmul.f32 %v164, %v164
    %v167 = vsel %vm151, %v165, 0.0
    %v168 = vsel %vm151, %v166, 0.0
    %v169 = vadd.f32 %v167, %v168
    %v170 = vrot.slane %v169, 4
    %v171 = vadd.f32 %v169, %v170
    %v172 = vrot.slane %v171, 2
    %v173 = vadd.f32 %v171, %v172
    %v174 = vrot.slane %v173, 1
    %v175 = vadd.f32 %v173, %v174
    %v176 = vmul.f32 %v175, %v161
    %v177 = vrsqrt.pop %v176
    %v178 = vmul.f32 %v176, %v177
    %vm179 = vcmp.eq.f32.partialorder %v176, inf
    %v180 = vsel %vm179, %v176, %v178
    %vm181 = vcmp.eq.f32.partialorder %v176, 0.0
    %v182 = vand.u32 %v176, 2147483648
    %v183 = vsel %vm181, %v182, %v180
    %v184 = vadd.f32 %v183, 0.0001
    %v185 = vrcp.pop %v184
    %v186 = vmul.f32 %v163, %v185
    %v187 = vmul.f32 %v164, %v185
    %vm188 = vcmp.lt.s32.totalorder %v150, 30
    %v189 = vsel %vm188, %v186, 0.0
    %v190 = vsel %vm188, %v187, 0.0
    %vm191 = vcmp.eq.s32.totalorder %v150, 30
    %v192 = vrcp.pop 282000.0
    %v193 = vmul.f32 %v147, %v192
    %v194 = vmul.f32 %v148, %v192
    %v195 = vsel %vm191, %v193, %v189
    %v196 = vsel %vm191, %v194, %v190
    %vm197 = vcmp.eq.s32.totalorder %v150, 31
    %v198 = vrcp.pop 28200.0
    %v199 = vmul.f32 %v147, %v198
    %v200 = vmul.f32 %v148, %v198
    %v201 = vsel %vm197, %v199, %v195
    %v202 = vsel %vm197, %v200, %v196
    %vm203 = vcmp.gt.f32.partialorder %v147, -99.0
    %vm204 = vcmp.gt.f32.partialorder %v148, -99.0
    %v205 = vsel %vm203, 1, 0
    %v206 = vsel %vm204, 1, 0
    %v207 = vcvt.s32.f32 %v205
    %v208 = vcvt.s32.f32 %v206
    %211 = vrot.lane.b32.xlu0 %v207, 96
    %v212 = vpop.permute.xlu0 %211
    %213 = vrot.lane.b32.xlu0 %v208, 96
    %v214 = vpop.permute.xlu0 %213
    %vm217 = vcmask 7168
    %v218 = vsel %vm217, %v212, 0.0
    %v219 = vsel %vm217, %v214, 0.0
    %v220 = vadd.f32 %v218, %v219
    %221 = vadd.xlane.f32.xlu0 %v220
    %v222 = vpop.xlane.xlu0 %221
    %v223 = vrot.slane %v222, 4
    %v224 = vadd.f32 %v222, %v223
    %v225 = vrot.slane %v224, 2
    %v226 = vadd.f32 %v224, %v225
    %v227 = vrot.slane %v226, 1
    %v228 = vadd.f32 %v226, %v227
    %s229 = vtos %v228
    %s230 = smax.f32 %s229, 1.0
    %v231 = vsel %vm203, %v147, 0.0
    %v232 = vsel %vm204, %v148, 0.0
    %235 = vrot.lane.b32.xlu0 %v231, 96
    %v236 = vpop.permute.xlu0 %235
    %237 = vrot.lane.b32.xlu0 %v232, 96
    %v238 = vpop.permute.xlu0 %237
    %v241 = vsel %vm217, %v236, 0.0
    %v242 = vsel %vm217, %v238, 0.0
    %v243 = vadd.f32 %v241, %v242
    %244 = vadd.xlane.f32.xlu0 %v243
    %v245 = vpop.xlane.xlu0 %244
    %v246 = vrot.slane %v245, 4
    %v247 = vadd.f32 %v245, %v246
    %v248 = vrot.slane %v247, 2
    %v249 = vadd.f32 %v247, %v248
    %v250 = vrot.slane %v249, 1
    %v251 = vadd.f32 %v249, %v250
    %s252 = vtos %v251
    %v253 = vstv %s230
    %v254 = vrcp.pop %v253
    %s255 = vtos %v254
    %s256 = smul.f32 %s252, %s255
    %v257 = vstv %s256
    %v258 = vsub.f32 %v147, %v257
    %v259 = vsub.f32 %v148, %v257
    %v260 = vmul.f32 %v258, %v258
    %v261 = vmul.f32 %v259, %v259
    %v262 = vsel %vm203, %v260, 0.0
    %v263 = vsel %vm204, %v261, 0.0
    %266 = vrot.lane.b32.xlu0 %v262, 96
    %v267 = vpop.permute.xlu0 %266
    %268 = vrot.lane.b32.xlu0 %v263, 96
    %v269 = vpop.permute.xlu0 %268
    %v272 = vsel %vm217, %v267, 0.0
    %v273 = vsel %vm217, %v269, 0.0
    %v274 = vadd.f32 %v272, %v273
    %275 = vadd.xlane.f32.xlu0 %v274
    %v276 = vpop.xlane.xlu0 %275
    %v277 = vrot.slane %v276, 4
    %v278 = vadd.f32 %v276, %v277
    %v279 = vrot.slane %v278, 2
    %v280 = vadd.f32 %v278, %v279
    %v281 = vrot.slane %v280, 1
    %v282 = vadd.f32 %v280, %v281
    %s283 = vtos %v282
    %v284 = vstv %s230
    %v285 = vrcp.pop %v284
    %s286 = vtos %v285
    %s287 = smul.f32 %s283, %s286
    %v288 = vstv %s287
    %v289 = vrsqrt.pop %v288
    %v290 = vmul.f32 %v288, %v289
    %vm291 = vcmp.eq.f32.partialorder %v288, inf
    %v292 = vsel %vm291, %v288, %v290
    %vm293 = vcmp.eq.f32.partialorder %v288, 0.0
    %v294 = vand.u32 %v288, 2147483648
    %v295 = vsel %vm293, %v294, %v292
    %s296 = vtos %v295
    %s297 = sadd.f32 %s296, 0.0001
    %v298 = vstv %s297
    %v299 = vrcp.pop %v298
    %v300 = vmul.f32 %v258, %v299
    %v301 = vmul.f32 %v259, %v299
    %v302 = vsel %vm203, %v300, -10.0
    %v303 = vsel %vm204, %v301, -10.0
    %vm304 = vcmp.eq.s32.totalorder %v150, 32
    %306 = vset.pattern.permute.xlu0 32
    %307 = vperm.xlu0 %306, %v302
    %v308 = vpop.permute.xlu0 %307
    %311 = vset.pattern.permute.xlu0 32
    %312 = vperm.xlu0 %311, %v303
    %v313 = vpop.permute.xlu0 %312
    %v315 = vsel %vm304, %v308, %v201
    %v316 = vsel %vm304, %v313, %v202
    %v317 = vld [vmem:[%s9] sm:$0xff]
    %v318 = vld [vmem:[%s9 + $0x8] sm:$0xff]
    %v319 = vld [vmem:[%s9 + $0x10] sm:$0xff]
    %v320 = vld [vmem:[%s9 + $0x18] sm:$0xff]
    %v321 = vld [vmem:[%s9 + $0x20] sm:$0x1]
    %v322 = vld [vmem:[%s11] sm:$0x1]
    %v324 = vlaneseq
    %v325 = vshrl.u32 %v324, 7
    %v326 = vsub.s32 0, %v325
    %v327 = vrot.slane %v322, %v326
    %v330 = vsel %vm151, %v315, 0
    %v333 = vsel %vm151, %v316, 0
    %vm335 = vcmask 1040384
    %v337 = vsel %vm335, %v321, 0
    %339 = vmatprep.subr.mxu0 0.0
    %340 = vmatpush1.msra.mxu0 0.0
    %341 = vmatprep.subr.mxu0 0.0
    %342 = vmatpush1.msra.mxu0 0.0
    %343 = vmatprep.subr.mxu0 0.0
    %344 = vmatpush1.msra.mxu0 0.0
    %345 = vmatprep.subr.mxu0 0.0
    %346 = vmatpush1.msra.mxu0 0.0
    %347 = vmatprep.subr.mxu0 0.0
    %348 = vmatpush1.msra.mxu0 0.0
    %349 = vmatprep.subr.mxu0 0.0
    %350 = vmatpush1.msra.mxu0 0.0
    %351 = vmatprep.subr.mxu0 0.0
    %352 = vmatpush1.msra.mxu0 0.0
    %353 = vmatprep.subr.mxu0 0.0
    %354 = vmatpush1.msra.mxu0 0.0
    %355 = vmatprep.subr.mxu0 0.0
    %356 = vmatpush1.msra.mxu0 0.0
    %357 = vmatprep.subr.mxu0 0.0
    %358 = vmatpush1.msra.mxu0 0.0
    %359 = vmatprep.subr.mxu0 0.0
    %360 = vmatpush1.msra.mxu0 0.0
    %361 = vmatprep.subr.mxu0 0.0
    %362 = vmatpush1.msra.mxu0 %v337
    %363 = vmatprep.subr.mxu0 0.0
    %364 = vmatpush1.msra.mxu0 %v320
    %365 = vmatprep.subr.mxu0 0.0
    %366 = vmatpush1.msra.mxu0 %v319
    %367 = vmatprep.subr.mxu0 0.0
    %368 = vmatpush1.msra.mxu0 %v318
    %369 = vmatprep.subr.mxu0 0.0
    %370 = vmatpush1.msra.mxu0 %v317
    %371 = vmatprep.subr.mxu0 0.0
    %372 = vmatpush2.msra.mxu0 0.0
    %373 = vmatprep.subr.mxu0 0.0
    %374 = vmatpush2.msra.mxu0 0.0
    %375 = vmatprep.subr.mxu0 0.0
    %376 = vmatpush2.msra.mxu0 0.0
    %377 = vmatprep.subr.mxu0 0.0
    %378 = vmatpush2.msra.mxu0 0.0
    %379 = vmatprep.subr.mxu0 0.0
    %380 = vmatpush2.msra.mxu0 0.0
    %381 = vmatprep.subr.mxu0 0.0
    %382 = vmatpush2.msra.mxu0 0.0
    %383 = vmatprep.subr.mxu0 0.0
    %384 = vmatpush2.msra.mxu0 0.0
    %385 = vmatprep.subr.mxu0 0.0
    %386 = vmatpush2.msra.mxu0 0.0
    %387 = vmatprep.subr.mxu0 0.0
    %388 = vmatpush2.msra.mxu0 0.0
    %389 = vmatprep.subr.mxu0 0.0
    %390 = vmatpush2.msra.mxu0 0.0
    %391 = vmatprep.subr.mxu0 0.0
    %392 = vmatpush2.msra.mxu0 0.0
    %393 = vmatprep.subr.mxu0 0.0
    %394 = vmatpush2.msra.mxu0 0.0
    %395 = vmatprep.subr.mxu0 0.0
    %396 = vmatpush2.msra.mxu0 0.0
    %397 = vmatprep.subr.mxu0 0.0
    %398 = vmatpush2.msra.mxu0 0.0
    %399 = vmatprep.subr.mxu0 0.0
    %400 = vmatpush2.msra.mxu0 0.0
    %401 = vmatprep.subr.mxu0 0.0
    %402 = vmatpush2.msra.mxu0 0.0
    %403 = vmatprep.mubr.f32.mxu0 0.0
    %404 = vmatmul.mubr.f32.gmra.mxu0 %v330
    %v405 = vpop.f32.mrf.mxu0
    %v406 = vadd.f32 %v327, %v405
    %v407 = vpop.f32.mrf.mxu0
    %408 = vmatprep.mubr.f32.mxu0 0.0
    %409 = vmatmul.mubr.f32.gmra.mxu0 %v333
    %v410 = vpop.f32.mrf.mxu0
    %v411 = vadd.f32 %v327, %v410
    %v412 = vpop.f32.mrf.mxu0
    %413 = vdwg.mxu0
    %vm414 = vcmp.ge.f32.partialorder %v406, 0.0
    %vm415 = vcmp.ge.f32.partialorder %v411, 0.0
    %v416 = vmul.f32 %v406, 0.01
    %v417 = vmul.f32 %v411, 0.01
    %v418 = vsel %vm414, %v406, %v416
    %v419 = vsel %vm415, %v411, %v417
    %v420 = vld [vmem:[%s13] sm:$0xff]
    %v421 = vld [vmem:[%s13 + $0x8] sm:$0xff]
    %v422 = vld [vmem:[%s13 + $0x10] sm:$0xff]
    %v423 = vld [vmem:[%s13 + $0x18] sm:$0xff]
    %v424 = vld [vmem:[%s15] sm:$0x1]
    %v426 = vlaneseq
    %v427 = vshrl.u32 %v426, 7
    %v428 = vsub.s32 0, %v427
    %v429 = vrot.slane %v424, %v428
    %vm431 = vcmask 261120
    %v433 = vsel %vm431, %v418, 0
    %v436 = vsel %vm431, %v419, 0
    %438 = vmatprep.subr.mxu0 0.0
    %439 = vmatpush1.msra.mxu0 0.0
    %440 = vmatprep.subr.mxu0 0.0
    %441 = vmatpush1.msra.mxu0 0.0
    %442 = vmatprep.subr.mxu0 0.0
    %443 = vmatpush1.msra.mxu0 0.0
    %444 = vmatprep.subr.mxu0 0.0
    %445 = vmatpush1.msra.mxu0 0.0
    %446 = vmatprep.subr.mxu0 0.0
    %447 = vmatpush1.msra.mxu0 0.0
    %448 = vmatprep.subr.mxu0 0.0
    %449 = vmatpush1.msra.mxu0 0.0
    %450 = vmatprep.subr.mxu0 0.0
    %451 = vmatpush1.msra.mxu0 0.0
    %452 = vmatprep.subr.mxu0 0.0
    %453 = vmatpush1.msra.mxu0 0.0
    %454 = vmatprep.subr.mxu0 0.0
    %455 = vmatpush1.msra.mxu0 0.0
    %456 = vmatprep.subr.mxu0 0.0
    %457 = vmatpush1.msra.mxu0 0.0
    %458 = vmatprep.subr.mxu0 0.0
    %459 = vmatpush1.msra.mxu0 0.0
    %460 = vmatprep.subr.mxu0 0.0
    %461 = vmatpush1.msra.mxu0 0.0
    %462 = vmatprep.subr.mxu0 0.0
    %463 = vmatpush1.msra.mxu0 %v423
    %464 = vmatprep.subr.mxu0 0.0
    %465 = vmatpush1.msra.mxu0 %v422
    %466 = vmatprep.subr.mxu0 0.0
    %467 = vmatpush1.msra.mxu0 %v421
    %468 = vmatprep.subr.mxu0 0.0
    %469 = vmatpush1.msra.mxu0 %v420
    %470 = vmatprep.subr.mxu0 0.0
    %471 = vmatpush2.msra.mxu0 0.0
    %472 = vmatprep.subr.mxu0 0.0
    %473 = vmatpush2.msra.mxu0 0.0
    %474 = vmatprep.subr.mxu0 0.0
    %475 = vmatpush2.msra.mxu0 0.0
    %476 = vmatprep.subr.mxu0 0.0
    %477 = vmatpush2.msra.mxu0 0.0
    %478 = vmatprep.subr.mxu0 0.0
    %479 = vmatpush2.msra.mxu0 0.0
    %480 = vmatprep.subr.mxu0 0.0
    %481 = vmatpush2.msra.mxu0 0.0
    %482 = vmatprep.subr.mxu0 0.0
    %483 = vmatpush2.msra.mxu0 0.0
    %484 = vmatprep.subr.mxu0 0.0
    %485 = vmatpush2.msra.mxu0 0.0
    %486 = vmatprep.subr.mxu0 0.0
    %487 = vmatpush2.msra.mxu0 0.0
    %488 = vmatprep.subr.mxu0 0.0
    %489 = vmatpush2.msra.mxu0 0.0
    %490 = vmatprep.subr.mxu0 0.0
    %491 = vmatpush2.msra.mxu0 0.0
    %492 = vmatprep.subr.mxu0 0.0
    %493 = vmatpush2.msra.mxu0 0.0
    %494 = vmatprep.subr.mxu0 0.0
    %495 = vmatpush2.msra.mxu0 0.0
    %496 = vmatprep.subr.mxu0 0.0
    %497 = vmatpush2.msra.mxu0 0.0
    %498 = vmatprep.subr.mxu0 0.0
    %499 = vmatpush2.msra.mxu0 0.0
    %500 = vmatprep.subr.mxu0 0.0
    %501 = vmatpush2.msra.mxu0 0.0
    %502 = vmatprep.mubr.f32.mxu0 0.0
    %503 = vmatmul.mubr.f32.gmra.mxu0 %v433
    %v504 = vpop.f32.mrf.mxu0
    %v505 = vadd.f32 %v429, %v504
    %v506 = vpop.f32.mrf.mxu0
    %507 = vmatprep.mubr.f32.mxu0 0.0
    %508 = vmatmul.mubr.f32.gmra.mxu0 %v436
    %v509 = vpop.f32.mrf.mxu0
    %v510 = vadd.f32 %v429, %v509
    %v511 = vpop.f32.mrf.mxu0
    %512 = vdwg.mxu0
    %vm513 = vcmp.ge.f32.partialorder %v505, 0.0
    %vm514 = vcmp.ge.f32.partialorder %v510, 0.0
    %v515 = vmul.f32 %v505, 0.01
    %v516 = vmul.f32 %v510, 0.01
    %v517 = vsel %vm513, %v505, %v515
    %v518 = vsel %vm514, %v510, %v516
    %v519 = vld [vmem:[%s7] sm:$0xff]
    %v520 = vld [vmem:[%s7 + $0x8] sm:$0xff]
    %v521 = vld [vmem:[%s7 + $0x10] sm:$0xff]
    %v522 = vld [vmem:[%s7 + $0x18] sm:$0xff]
    %v523 = vld [vmem:[%s7 + $0x20] sm:$0xff]
    %v524 = vld [vmem:[%s5] sm:$0xff]
    %v525 = vld [vmem:[%s5 + $0x8] sm:$0xff]
    %v526 = vld [vmem:[%s5 + $0x10] sm:$0xff]
    %v527 = vld [vmem:[%s5 + $0x18] sm:$0xff]
    %v528 = vld [vmem:[%s5 + $0x20] sm:$0xff]
    %v529 = vsub.f32 %v524, %v519
    %v530 = vsub.f32 %v525, %v520
    %v531 = vsub.f32 %v526, %v521
    %v532 = vsub.f32 %v527, %v522
    %v533 = vsub.f32 %v528, %v523
    %v534 = vld [vmem:[%s17] sm:$0xff]
    %v535 = vld [vmem:[%s17 + $0x8] sm:$0xff]
    %v536 = vld [vmem:[%s17 + $0x10] sm:$0xff]
    %v537 = vld [vmem:[%s17 + $0x18] sm:$0xff]
    %v539 = vsel %vm431, %v517, 0
    %v542 = vsel %vm431, %v518, 0
    %544 = vmatprep.subr.mxu0 0.0
    %545 = vmatpush1.msra.mxu0 0.0
    %546 = vmatprep.subr.mxu0 0.0
    %547 = vmatpush1.msra.mxu0 0.0
    %548 = vmatprep.subr.mxu0 0.0
    %549 = vmatpush1.msra.mxu0 0.0
    %550 = vmatprep.subr.mxu0 0.0
    %551 = vmatpush1.msra.mxu0 0.0
    %552 = vmatprep.subr.mxu0 0.0
    %553 = vmatpush1.msra.mxu0 0.0
    %554 = vmatprep.subr.mxu0 0.0
    %555 = vmatpush1.msra.mxu0 0.0
    %556 = vmatprep.subr.mxu0 0.0
    %557 = vmatpush1.msra.mxu0 0.0
    %558 = vmatprep.subr.mxu0 0.0
    %559 = vmatpush1.msra.mxu0 0.0
    %560 = vmatprep.subr.mxu0 0.0
    %561 = vmatpush1.msra.mxu0 0.0
    %562 = vmatprep.subr.mxu0 0.0
    %563 = vmatpush1.msra.mxu0 0.0
    %564 = vmatprep.subr.mxu0 0.0
    %565 = vmatpush1.msra.mxu0 0.0
    %566 = vmatprep.subr.mxu0 0.0
    %567 = vmatpush1.msra.mxu0 0.0
    %568 = vmatprep.subr.mxu0 0.0
    %569 = vmatpush1.msra.mxu0 %v537
    %570 = vmatprep.subr.mxu0 0.0
    %571 = vmatpush1.msra.mxu0 %v536
    %572 = vmatprep.subr.mxu0 0.0
    %573 = vmatpush1.msra.mxu0 %v535
    %574 = vmatprep.subr.mxu0 0.0
    %575 = vmatpush1.msra.mxu0 %v534
    %576 = vmatprep.subr.mxu0 0.0
    %577 = vmatpush2.msra.mxu0 0.0
    %578 = vmatprep.subr.mxu0 0.0
    %579 = vmatpush2.msra.mxu0 0.0
    %580 = vmatprep.subr.mxu0 0.0
    %581 = vmatpush2.msra.mxu0 0.0
    %582 = vmatprep.subr.mxu0 0.0
    %583 = vmatpush2.msra.mxu0 0.0
    %584 = vmatprep.subr.mxu0 0.0
    %585 = vmatpush2.msra.mxu0 0.0
    %586 = vmatprep.subr.mxu0 0.0
    %587 = vmatpush2.msra.mxu0 0.0
    %588 = vmatprep.subr.mxu0 0.0
    %589 = vmatpush2.msra.mxu0 0.0
    %590 = vmatprep.subr.mxu0 0.0
    %591 = vmatpush2.msra.mxu0 0.0
    %592 = vmatprep.subr.mxu0 0.0
    %593 = vmatpush2.msra.mxu0 0.0
    %594 = vmatprep.subr.mxu0 0.0
    %595 = vmatpush2.msra.mxu0 0.0
    %596 = vmatprep.subr.mxu0 0.0
    %597 = vmatpush2.msra.mxu0 0.0
    %598 = vmatprep.subr.mxu0 0.0
    %599 = vmatpush2.msra.mxu0 0.0
    %600 = vmatprep.subr.mxu0 0.0
    %601 = vmatpush2.msra.mxu0 0.0
    %602 = vmatprep.subr.mxu0 0.0
    %603 = vmatpush2.msra.mxu0 0.0
    %604 = vmatprep.subr.mxu0 0.0
    %605 = vmatpush2.msra.mxu0 0.0
    %606 = vmatprep.subr.mxu0 0.0
    %607 = vmatpush2.msra.mxu0 0.0
    %608 = vmatprep.mubr.f32.mxu0 0.0
    %609 = vmatmul.mubr.f32.gmra.mxu0 %v539
    %v610 = vpop.f32.mrf.mxu0
    %v611 = vadd.f32 0.0, %v610
    %v612 = vpop.f32.mrf.mxu0
    %613 = vmatprep.mubr.f32.mxu0 0.0
    %614 = vmatmul.mubr.f32.gmra.mxu0 %v542
    %v615 = vpop.f32.mrf.mxu0
    %v616 = vadd.f32 0.0, %v615
    %v617 = vpop.f32.mrf.mxu0
    %618 = vdwg.mxu0
    %v619 = vld [vmem:[%s19] sm:$0xff]
    %v620 = vld [vmem:[%s19 + $0x8] sm:$0xff]
    %v621 = vld [vmem:[%s19 + $0x10] sm:$0xff]
    %v622 = vld [vmem:[%s19 + $0x18] sm:$0xff]
    %623 = vmatprep.subr.mxu0 0.0
    %624 = vmatpush1.msra.mxu0 0.0
    %625 = vmatprep.subr.mxu0 0.0
    %626 = vmatpush1.msra.mxu0 0.0
    %627 = vmatprep.subr.mxu0 0.0
    %628 = vmatpush1.msra.mxu0 0.0
    %629 = vmatprep.subr.mxu0 0.0
    %630 = vmatpush1.msra.mxu0 0.0
    %631 = vmatprep.subr.mxu0 0.0
    %632 = vmatpush1.msra.mxu0 0.0
    %633 = vmatprep.subr.mxu0 0.0
    %634 = vmatpush1.msra.mxu0 0.0
    %635 = vmatprep.subr.mxu0 0.0
    %636 = vmatpush1.msra.mxu0 0.0
    %637 = vmatprep.subr.mxu0 0.0
    %638 = vmatpush1.msra.mxu0 0.0
    %639 = vmatprep.subr.mxu0 0.0
    %640 = vmatpush1.msra.mxu0 0.0
    %641 = vmatprep.subr.mxu0 0.0
    %642 = vmatpush1.msra.mxu0 0.0
    %643 = vmatprep.subr.mxu0 0.0
    %644 = vmatpush1.msra.mxu0 0.0
    %645 = vmatprep.subr.mxu0 0.0
    %646 = vmatpush1.msra.mxu0 0.0
    %647 = vmatprep.subr.mxu0 0.0
    %648 = vmatpush1.msra.mxu0 %v622
    %649 = vmatprep.subr.mxu0 0.0
    %650 = vmatpush1.msra.mxu0 %v621
    %651 = vmatprep.subr.mxu0 0.0
    %652 = vmatpush1.msra.mxu0 %v620
    %653 = vmatprep.subr.mxu0 0.0
    %654 = vmatpush1.msra.mxu0 %v619
    %655 = vmatprep.subr.mxu0 0.0
    %656 = vmatpush2.msra.mxu0 0.0
    %657 = vmatprep.subr.mxu0 0.0
    %658 = vmatpush2.msra.mxu0 0.0
    %659 = vmatprep.subr.mxu0 0.0
    %660 = vmatpush2.msra.mxu0 0.0
    %661 = vmatprep.subr.mxu0 0.0
    %662 = vmatpush2.msra.mxu0 0.0
    %663 = vmatprep.subr.mxu0 0.0
    %664 = vmatpush2.msra.mxu0 0.0
    %665 = vmatprep.subr.mxu0 0.0
    %666 = vmatpush2.msra.mxu0 0.0
    %667 = vmatprep.subr.mxu0 0.0
    %668 = vmatpush2.msra.mxu0 0.0
    %669 = vmatprep.subr.mxu0 0.0
    %670 = vmatpush2.msra.mxu0 0.0
    %671 = vmatprep.subr.mxu0 0.0
    %672 = vmatpush2.msra.mxu0 0.0
    %673 = vmatprep.subr.mxu0 0.0
    %674 = vmatpush2.msra.mxu0 0.0
    %675 = vmatprep.subr.mxu0 0.0
    %676 = vmatpush2.msra.mxu0 0.0
    %677 = vmatprep.subr.mxu0 0.0
    %678 = vmatpush2.msra.mxu0 0.0
    %679 = vmatprep.subr.mxu0 0.0
    %680 = vmatpush2.msra.mxu0 0.0
    %681 = vmatprep.subr.mxu0 0.0
    %682 = vmatpush2.msra.mxu0 0.0
    %683 = vmatprep.subr.mxu0 0.0
    %684 = vmatpush2.msra.mxu0 0.0
    %685 = vmatprep.subr.mxu0 0.0
    %686 = vmatpush2.msra.mxu0 0.0
    %687 = vmatprep.mubr.f32.mxu0 0.0
    %688 = vmatmul.mubr.f32.gmra.mxu0 %v539
    %v689 = vpop.f32.mrf.mxu0
    %v690 = vadd.f32 0.0, %v689
    %v691 = vpop.f32.mrf.mxu0
    %692 = vmatprep.mubr.f32.mxu0 0.0
    %693 = vmatmul.mubr.f32.gmra.mxu0 %v542
    %v694 = vpop.f32.mrf.mxu0
    %v695 = vadd.f32 0.0, %v694
    %v696 = vpop.f32.mrf.mxu0
    %697 = vdwg.mxu0
    %vm698 = vcmask 130048
    %v700 = vsel %vm698, %v529, 0
    %v703 = vsel %vm698, %v530, 0
    %v706 = vsel %vm698, %v531, 0
    %v709 = vsel %vm698, %v532, 0
    %v712 = vsel %vm698, %v533, 0
    %714 = vmatprep.subr.mxu0 0.0
    %715 = vmatpush1.msra.mxu0 0.0
    %716 = vmatprep.subr.mxu0 0.0
    %717 = vmatpush1.msra.mxu0 0.0
    %718 = vmatprep.subr.mxu0 0.0
    %719 = vmatpush1.msra.mxu0 0.0
    %720 = vmatprep.subr.mxu0 0.0
    %721 = vmatpush1.msra.mxu0 0.0
    %722 = vmatprep.subr.mxu0 0.0
    %723 = vmatpush1.msra.mxu0 0.0
    %724 = vmatprep.subr.mxu0 0.0
    %725 = vmatpush1.msra.mxu0 0.0
    %726 = vmatprep.subr.mxu0 0.0
    %727 = vmatpush1.msra.mxu0 0.0
    %728 = vmatprep.subr.mxu0 0.0
    %729 = vmatpush1.msra.mxu0 0.0
    %730 = vmatprep.subr.mxu0 0.0
    %731 = vmatpush1.msra.mxu0 0.0
    %732 = vmatprep.subr.mxu0 0.0
    %733 = vmatpush1.msra.mxu0 0.0
    %734 = vmatprep.subr.mxu0 0.0
    %735 = vmatpush1.msra.mxu0 0.0
    %736 = vmatprep.subr.mxu0 0.0
    %737 = vmatpush1.msra.mxu0 0.0
    %738 = vmatprep.subr.mxu0 0.0
    %739 = vmatpush1.msra.mxu0 0.0
    %740 = vmatprep.subr.mxu0 0.0
    %741 = vmatpush1.msra.mxu0 0.0
    %742 = vmatprep.subr.mxu0 0.0
    %743 = vmatpush1.msra.mxu0 %v695
    %744 = vmatprep.subr.mxu0 0.0
    %745 = vmatpush1.msra.mxu0 %v690
    %746 = vmatprep.subr.mxu0 0.0
    %747 = vmatpush2.msra.mxu0 0.0
    %748 = vmatprep.subr.mxu0 0.0
    %749 = vmatpush2.msra.mxu0 0.0
    %750 = vmatprep.subr.mxu0 0.0
    %751 = vmatpush2.msra.mxu0 0.0
    %752 = vmatprep.subr.mxu0 0.0
    %753 = vmatpush2.msra.mxu0 0.0
    %754 = vmatprep.subr.mxu0 0.0
    %755 = vmatpush2.msra.mxu0 0.0
    %756 = vmatprep.subr.mxu0 0.0
    %757 = vmatpush2.msra.mxu0 0.0
    %758 = vmatprep.subr.mxu0 0.0
    %759 = vmatpush2.msra.mxu0 0.0
    %760 = vmatprep.subr.mxu0 0.0
    %761 = vmatpush2.msra.mxu0 0.0
    %762 = vmatprep.subr.mxu0 0.0
    %763 = vmatpush2.msra.mxu0 0.0
    %764 = vmatprep.subr.mxu0 0.0
    %765 = vmatpush2.msra.mxu0 0.0
    %766 = vmatprep.subr.mxu0 0.0
    %767 = vmatpush2.msra.mxu0 0.0
    %768 = vmatprep.subr.mxu0 0.0
    %769 = vmatpush2.msra.mxu0 0.0
    %770 = vmatprep.subr.mxu0 0.0
    %771 = vmatpush2.msra.mxu0 0.0
    %772 = vmatprep.subr.mxu0 0.0
    %773 = vmatpush2.msra.mxu0 0.0
    %774 = vmatprep.subr.mxu0 0.0
    %775 = vmatpush2.msra.mxu0 0.0
    %776 = vmatprep.subr.mxu0 0.0
    %777 = vmatpush2.msra.mxu0 0.0
    %778 = vmatprep.mubr.f32.mxu0 0.0
    %779 = vmatmul.mubr.f32.gmra.mxu0 %v700
    %v780 = vpop.f32.mrf.mxu0
    %v781 = vadd.f32 0.0, %v780
    %v782 = vpop.f32.mrf.mxu0
    %783 = vmatprep.mubr.f32.mxu0 0.0
    %784 = vmatmul.mubr.f32.gmra.mxu0 %v703
    %v785 = vpop.f32.mrf.mxu0
    %v786 = vadd.f32 0.0, %v785
    %v787 = vpop.f32.mrf.mxu0
    %788 = vmatprep.mubr.f32.mxu0 0.0
    %789 = vmatmul.mubr.f32.gmra.mxu0 %v706
    %v790 = vpop.f32.mrf.mxu0
    %v791 = vadd.f32 0.0, %v790
    %v792 = vpop.f32.mrf.mxu0
    %793 = vmatprep.mubr.f32.mxu0 0.0
    %794 = vmatmul.mubr.f32.gmra.mxu0 %v709
    %v795 = vpop.f32.mrf.mxu0
    %v796 = vadd.f32 0.0, %v795
    %v797 = vpop.f32.mrf.mxu0
    %798 = vmatprep.mubr.f32.mxu0 0.0
    %799 = vmatmul.mubr.f32.gmra.mxu0 %v712
    %v800 = vpop.f32.mrf.mxu0
    %v801 = vadd.f32 0.0, %v800
    %v802 = vpop.f32.mrf.mxu0
    %803 = vdwg.mxu0
    %v805 = vsel %vm698, %v519, 0
    %v808 = vsel %vm698, %v520, 0
    %v811 = vsel %vm698, %v521, 0
    %v814 = vsel %vm698, %v522, 0
    %v817 = vsel %vm698, %v523, 0
    %819 = vmatprep.subr.mxu0 0.0
    %820 = vmatpush1.msra.mxu0 0.0
    %821 = vmatprep.subr.mxu0 0.0
    %822 = vmatpush1.msra.mxu0 0.0
    %823 = vmatprep.subr.mxu0 0.0
    %824 = vmatpush1.msra.mxu0 0.0
    %825 = vmatprep.subr.mxu0 0.0
    %826 = vmatpush1.msra.mxu0 0.0
    %827 = vmatprep.subr.mxu0 0.0
    %828 = vmatpush1.msra.mxu0 0.0
    %829 = vmatprep.subr.mxu0 0.0
    %830 = vmatpush1.msra.mxu0 0.0
    %831 = vmatprep.subr.mxu0 0.0
    %832 = vmatpush1.msra.mxu0 0.0
    %833 = vmatprep.subr.mxu0 0.0
    %834 = vmatpush1.msra.mxu0 0.0
    %835 = vmatprep.subr.mxu0 0.0
    %836 = vmatpush1.msra.mxu0 0.0
    %837 = vmatprep.subr.mxu0 0.0
    %838 = vmatpush1.msra.mxu0 0.0
    %839 = vmatprep.subr.mxu0 0.0
    %840 = vmatpush1.msra.mxu0 0.0
    %841 = vmatprep.subr.mxu0 0.0
    %842 = vmatpush1.msra.mxu0 0.0
    %843 = vmatprep.subr.mxu0 0.0
    %844 = vmatpush1.msra.mxu0 0.0
    %845 = vmatprep.subr.mxu0 0.0
    %846 = vmatpush1.msra.mxu0 0.0
    %847 = vmatprep.subr.mxu0 0.0
    %848 = vmatpush1.msra.mxu0 %v616
    %849 = vmatprep.subr.mxu0 0.0
    %850 = vmatpush1.msra.mxu0 %v611
    %851 = vmatprep.subr.mxu0 0.0
    %852 = vmatpush2.msra.mxu0 0.0
    %853 = vmatprep.subr.mxu0 0.0
    %854 = vmatpush2.msra.mxu0 0.0
    %855 = vmatprep.subr.mxu0 0.0
    %856 = vmatpush2.msra.mxu0 0.0
    %857 = vmatprep.subr.mxu0 0.0
    %858 = vmatpush2.msra.mxu0 0.0
    %859 = vmatprep.subr.mxu0 0.0
    %860 = vmatpush2.msra.mxu0 0.0
    %861 = vmatprep.subr.mxu0 0.0
    %862 = vmatpush2.msra.mxu0 0.0
    %863 = vmatprep.subr.mxu0 0.0
    %864 = vmatpush2.msra.mxu0 0.0
    %865 = vmatprep.subr.mxu0 0.0
    %866 = vmatpush2.msra.mxu0 0.0
    %867 = vmatprep.subr.mxu0 0.0
    %868 = vmatpush2.msra.mxu0 0.0
    %869 = vmatprep.subr.mxu0 0.0
    %870 = vmatpush2.msra.mxu0 0.0
    %871 = vmatprep.subr.mxu0 0.0
    %872 = vmatpush2.msra.mxu0 0.0
    %873 = vmatprep.subr.mxu0 0.0
    %874 = vmatpush2.msra.mxu0 0.0
    %875 = vmatprep.subr.mxu0 0.0
    %876 = vmatpush2.msra.mxu0 0.0
    %877 = vmatprep.subr.mxu0 0.0
    %878 = vmatpush2.msra.mxu0 0.0
    %879 = vmatprep.subr.mxu0 0.0
    %880 = vmatpush2.msra.mxu0 0.0
    %881 = vmatprep.subr.mxu0 0.0
    %882 = vmatpush2.msra.mxu0 0.0
    %883 = vmatprep.mubr.f32.mxu0 0.0
    %884 = vmatmul.mubr.f32.gmra.mxu0 %v805
    %v885 = vpop.f32.mrf.mxu0
    %v886 = vadd.f32 %v781, %v885
    %v887 = vpop.f32.mrf.mxu0
    %888 = vmatprep.mubr.f32.mxu0 0.0
    %889 = vmatmul.mubr.f32.gmra.mxu0 %v808
    %v890 = vpop.f32.mrf.mxu0
    %v891 = vadd.f32 %v786, %v890
    %v892 = vpop.f32.mrf.mxu0
    %893 = vmatprep.mubr.f32.mxu0 0.0
    %894 = vmatmul.mubr.f32.gmra.mxu0 %v811
    %v895 = vpop.f32.mrf.mxu0
    %v896 = vadd.f32 %v791, %v895
    %v897 = vpop.f32.mrf.mxu0
    %898 = vmatprep.mubr.f32.mxu0 0.0
    %899 = vmatmul.mubr.f32.gmra.mxu0 %v814
    %v900 = vpop.f32.mrf.mxu0
    %v901 = vadd.f32 %v796, %v900
    %v902 = vpop.f32.mrf.mxu0
    %903 = vmatprep.mubr.f32.mxu0 0.0
    %904 = vmatmul.mubr.f32.gmra.mxu0 %v817
    %v905 = vpop.f32.mrf.mxu0
    %v906 = vadd.f32 %v801, %v905
    %v907 = vpop.f32.mrf.mxu0
    %908 = vdwg.mxu0
    %v909 = vld [vmem:[%s21] sm:$0x1]
    %v911 = vlaneseq
    %v912 = vshrl.u32 %v911, 7
    %v913 = vsub.s32 0, %v912
    %v914 = vrot.slane %v909, %v913
    %v916 = vadd.f32 %v886, %v914
    %v917 = vadd.f32 %v891, %v914
    %v918 = vadd.f32 %v896, %v914
    %v919 = vadd.f32 %v901, %v914
    %v920 = vadd.f32 %v906, %v914
    %v921 = vmax.f32 %v916, 0.0
    %v922 = vmax.f32 %v917, 0.0
    %v923 = vmax.f32 %v918, 0.0
    %v924 = vmax.f32 %v919, 0.0
    %v925 = vmax.f32 %v920, 0.0
    %v926 = vld [vmem:[%s23] sm:$0xff]
    %v927 = vld [vmem:[%s23 + $0x8] sm:$0xff]
    %v928 = vld [vmem:[%s23 + $0x10] sm:$0xff]
    %v929 = vld [vmem:[%s23 + $0x18] sm:$0xff]
    %v930 = vld [vmem:[%s23 + $0x20] sm:$0xff]
    %v931 = vld [vmem:[%s23 + $0x28] sm:$0xff]
    %v932 = vld [vmem:[%s23 + $0x30] sm:$0xff]
    %v933 = vld [vmem:[%s23 + $0x38] sm:$0xff]
    %v934 = vld [vmem:[%s25] sm:$0x1]
    %v936 = vlaneseq
    %v937 = vshrl.u32 %v936, 7
    %v938 = vsub.s32 0, %v937
    %v939 = vrot.slane %v934, %v938
    %vm941 = vcmask 523264
    %v943 = vsel %vm941, %v921, 0
    %v946 = vsel %vm941, %v922, 0
    %v949 = vsel %vm941, %v923, 0
    %v952 = vsel %vm941, %v924, 0
    %v955 = vsel %vm941, %v925, 0
    %957 = vmatprep.subr.mxu0 0.0
    %958 = vmatpush1.msra.mxu0 0.0
    %959 = vmatprep.subr.mxu0 0.0
    %960 = vmatpush1.msra.mxu0 0.0
    %961 = vmatprep.subr.mxu0 0.0
    %962 = vmatpush1.msra.mxu0 0.0
    %963 = vmatprep.subr.mxu0 0.0
    %964 = vmatpush1.msra.mxu0 0.0
    %965 = vmatprep.subr.mxu0 0.0
    %966 = vmatpush1.msra.mxu0 0.0
    %967 = vmatprep.subr.mxu0 0.0
    %968 = vmatpush1.msra.mxu0 0.0
    %969 = vmatprep.subr.mxu0 0.0
    %970 = vmatpush1.msra.mxu0 0.0
    %971 = vmatprep.subr.mxu0 0.0
    %972 = vmatpush1.msra.mxu0 0.0
    %973 = vmatprep.subr.mxu0 0.0
    %974 = vmatpush1.msra.mxu0 %v933
    %975 = vmatprep.subr.mxu0 0.0
    %976 = vmatpush1.msra.mxu0 %v932
    %977 = vmatprep.subr.mxu0 0.0
    %978 = vmatpush1.msra.mxu0 %v931
    %979 = vmatprep.subr.mxu0 0.0
    %980 = vmatpush1.msra.mxu0 %v930
    %981 = vmatprep.subr.mxu0 0.0
    %982 = vmatpush1.msra.mxu0 %v929
    %983 = vmatprep.subr.mxu0 0.0
    %984 = vmatpush1.msra.mxu0 %v928
    %985 = vmatprep.subr.mxu0 0.0
    %986 = vmatpush1.msra.mxu0 %v927
    %987 = vmatprep.subr.mxu0 0.0
    %988 = vmatpush1.msra.mxu0 %v926
    %989 = vmatprep.subr.mxu0 0.0
    %990 = vmatpush2.msra.mxu0 0.0
    %991 = vmatprep.subr.mxu0 0.0
    %992 = vmatpush2.msra.mxu0 0.0
    %993 = vmatprep.subr.mxu0 0.0
    %994 = vmatpush2.msra.mxu0 0.0
    %995 = vmatprep.subr.mxu0 0.0
    %996 = vmatpush2.msra.mxu0 0.0
    %997 = vmatprep.subr.mxu0 0.0
    %998 = vmatpush2.msra.mxu0 0.0
    %999 = vmatprep.subr.mxu0 0.0
    %1000 = vmatpush2.msra.mxu0 0.0
    %1001 = vmatprep.subr.mxu0 0.0
    %1002 = vmatpush2.msra.mxu0 0.0
    %1003 = vmatprep.subr.mxu0 0.0
    %1004 = vmatpush2.msra.mxu0 0.0
    %1005 = vmatprep.subr.mxu0 0.0
    %1006 = vmatpush2.msra.mxu0 0.0
    %1007 = vmatprep.subr.mxu0 0.0
    %1008 = vmatpush2.msra.mxu0 0.0
    %1009 = vmatprep.subr.mxu0 0.0
    %1010 = vmatpush2.msra.mxu0 0.0
    %1011 = vmatprep.subr.mxu0 0.0
    %1012 = vmatpush2.msra.mxu0 0.0
    %1013 = vmatprep.subr.mxu0 0.0
    %1014 = vmatpush2.msra.mxu0 0.0
    %1015 = vmatprep.subr.mxu0 0.0
    %1016 = vmatpush2.msra.mxu0 0.0
    %1017 = vmatprep.subr.mxu0 0.0
    %1018 = vmatpush2.msra.mxu0 0.0
    %1019 = vmatprep.subr.mxu0 0.0
    %1020 = vmatpush2.msra.mxu0 0.0
    %1021 = vmatprep.mubr.f32.mxu0 0.0
    %1022 = vmatmul.mubr.f32.gmra.mxu0 %v943
    %v1023 = vpop.f32.mrf.mxu0
    %v1024 = vadd.f32 %v939, %v1023
    %v1025 = vpop.f32.mrf.mxu0
    %1026 = vmatprep.mubr.f32.mxu0 0.0
    %1027 = vmatmul.mubr.f32.gmra.mxu0 %v946
    %v1028 = vpop.f32.mrf.mxu0
    %v1029 = vadd.f32 %v939, %v1028
    %v1030 = vpop.f32.mrf.mxu0
    %1031 = vmatprep.mubr.f32.mxu0 0.0
    %1032 = vmatmul.mubr.f32.gmra.mxu0 %v949
    %v1033 = vpop.f32.mrf.mxu0
    %v1034 = vadd.f32 %v939, %v1033
    %v1035 = vpop.f32.mrf.mxu0
    %1036 = vmatprep.mubr.f32.mxu0 0.0
    %1037 = vmatmul.mubr.f32.gmra.mxu0 %v952
    %v1038 = vpop.f32.mrf.mxu0
    %v1039 = vadd.f32 %v939, %v1038
    %v1040 = vpop.f32.mrf.mxu0
    %1041 = vmatprep.mubr.f32.mxu0 0.0
    %1042 = vmatmul.mubr.f32.gmra.mxu0 %v955
    %v1043 = vpop.f32.mrf.mxu0
    %v1044 = vadd.f32 %v939, %v1043
    %v1045 = vpop.f32.mrf.mxu0
    %1046 = vdwg.mxu0
    %v1047 = vmax.f32 %v1024, 0.0
    %v1048 = vmax.f32 %v1029, 0.0
    %v1049 = vmax.f32 %v1034, 0.0
    %v1050 = vmax.f32 %v1039, 0.0
    %v1051 = vmax.f32 %v1044, 0.0
    %1052 = vxpose.xlu0.b32.start [1/16] %v519, 128
    %1053 = vxpose.xlu0.b32.cont [2/16] %v520, 128
    %1054 = vxpose.xlu0.b32.cont [3/16] %v521, 128
    %1055 = vxpose.xlu0.b32.cont [4/16] %v522, 128
    %1056 = vxpose.xlu0.b32.cont [5/16] %v523, 128
    %1057 = vxpose.xlu0.b32.cont [6/16] 0.0, 128
    %1058 = vxpose.xlu0.b32.cont [7/16] 0.0, 128
    %1059 = vxpose.xlu0.b32.cont [8/16] 0.0, 128
    %1060 = vxpose.xlu0.b32.cont [9/16] 0.0, 128
    %1061 = vxpose.xlu0.b32.cont [10/16] 0.0, 128
    %1062 = vxpose.xlu0.b32.cont [11/16] 0.0, 128
    %1063 = vxpose.xlu0.b32.cont [12/16] 0.0, 128
    %1064 = vxpose.xlu0.b32.cont [13/16] 0.0, 128
    %1065 = vxpose.xlu0.b32.cont [14/16] 0.0, 128
    %1066 = vxpose.xlu0.b32.cont [15/16] 0.0, 128
    %1067 = vxpose.xlu0.b32.end [16/16] 0.0, 128
    %v1068 = vpop.trf.xlu0
    %v1069 = vpop.trf.xlu0
    %v1070 = vpop.trf.xlu0
    %v1071 = vpop.trf.xlu0
    %v1072 = vpop.trf.xlu0
    %v1073 = vpop.trf.xlu0
    %v1074 = vpop.trf.xlu0
    %v1075 = vpop.trf.xlu0
    %v1076 = vpop.trf.xlu0
    %v1077 = vpop.trf.xlu0
    %v1078 = vpop.trf.xlu0
    %v1079 = vpop.trf.xlu0
    %v1080 = vpop.trf.xlu0
    %v1081 = vpop.trf.xlu0
    %v1082 = vpop.trf.xlu0
    %v1083 = vpop.trf.xlu0
    %vm1084 = vcmask 326656
    %v1086 = vsel %vm1084, %v1068, 0
    %v1089 = vsel %vm1084, %v1069, 0
    %1091 = vmatprep.subr.mxu0 0.0
    %1092 = vmatpush1.msra.mxu0 0.0
    %1093 = vmatprep.subr.mxu0 0.0
    %1094 = vmatpush1.msra.mxu0 0.0
    %1095 = vmatprep.subr.mxu0 0.0
    %1096 = vmatpush1.msra.mxu0 0.0
    %1097 = vmatprep.subr.mxu0 0.0
    %1098 = vmatpush1.msra.mxu0 0.0
    %1099 = vmatprep.subr.mxu0 0.0
    %1100 = vmatpush1.msra.mxu0 0.0
    %1101 = vmatprep.subr.mxu0 0.0
    %1102 = vmatpush1.msra.mxu0 0.0
    %1103 = vmatprep.subr.mxu0 0.0
    %1104 = vmatpush1.msra.mxu0 0.0
    %1105 = vmatprep.subr.mxu0 0.0
    %1106 = vmatpush1.msra.mxu0 0.0
    %1107 = vmatprep.subr.mxu0 0.0
    %1108 = vmatpush1.msra.mxu0 0.0
    %1109 = vmatprep.subr.mxu0 0.0
    %1110 = vmatpush1.msra.mxu0 0.0
    %1111 = vmatprep.subr.mxu0 0.0
    %1112 = vmatpush1.msra.mxu0 0.0
    %1113 = vmatprep.subr.mxu0 0.0
    %1114 = vmatpush1.msra.mxu0 %v1051
    %1115 = vmatprep.subr.mxu0 0.0
    %1116 = vmatpush1.msra.mxu0 %v1050
    %1117 = vmatprep.subr.mxu0 0.0
    %1118 = vmatpush1.msra.mxu0 %v1049
    %1119 = vmatprep.subr.mxu0 0.0
    %1120 = vmatpush1.msra.mxu0 %v1048
    %1121 = vmatprep.subr.mxu0 0.0
    %1122 = vmatpush1.msra.mxu0 %v1047
    %1123 = vmatprep.subr.mxu0 0.0
    %1124 = vmatpush2.msra.mxu0 0.0
    %1125 = vmatprep.subr.mxu0 0.0
    %1126 = vmatpush2.msra.mxu0 0.0
    %1127 = vmatprep.subr.mxu0 0.0
    %1128 = vmatpush2.msra.mxu0 0.0
    %1129 = vmatprep.subr.mxu0 0.0
    %1130 = vmatpush2.msra.mxu0 0.0
    %1131 = vmatprep.subr.mxu0 0.0
    %1132 = vmatpush2.msra.mxu0 0.0
    %1133 = vmatprep.subr.mxu0 0.0
    %1134 = vmatpush2.msra.mxu0 0.0
    %1135 = vmatprep.subr.mxu0 0.0
    %1136 = vmatpush2.msra.mxu0 0.0
    %1137 = vmatprep.subr.mxu0 0.0
    %1138 = vmatpush2.msra.mxu0 0.0
    %1139 = vmatprep.subr.mxu0 0.0
    %1140 = vmatpush2.msra.mxu0 0.0
    %1141 = vmatprep.subr.mxu0 0.0
    %1142 = vmatpush2.msra.mxu0 0.0
    %1143 = vmatprep.subr.mxu0 0.0
    %1144 = vmatpush2.msra.mxu0 0.0
    %1145 = vmatprep.subr.mxu0 0.0
    %1146 = vmatpush2.msra.mxu0 0.0
    %1147 = vmatprep.subr.mxu0 0.0
    %1148 = vmatpush2.msra.mxu0 0.0
    %1149 = vmatprep.subr.mxu0 0.0
    %1150 = vmatpush2.msra.mxu0 0.0
    %1151 = vmatprep.subr.mxu0 0.0
    %1152 = vmatpush2.msra.mxu0 0.0
    %1153 = vmatprep.subr.mxu0 0.0
    %1154 = vmatpush2.msra.mxu0 0.0
    %1155 = vmatprep.mubr.f32.mxu0 0.0
    %1156 = vmatmul.mubr.f32.gmra.mxu0 %v1086
    %v1157 = vpop.f32.mrf.mxu0
    %v1158 = vadd.f32 0.0, %v1157
    %v1159 = vpop.f32.mrf.mxu0
    %1160 = vmatprep.mubr.f32.mxu0 0.0
    %1161 = vmatmul.mubr.f32.gmra.mxu0 %v1089
    %v1162 = vpop.f32.mrf.mxu0
    %v1163 = vadd.f32 0.0, %v1162
    %v1164 = vpop.f32.mrf.mxu0
    %1165 = vdwg.mxu0
    %v1166 = vadd.f32 %v517, %v1158
    %v1167 = vadd.f32 %v518, %v1163
    %v1168 = vmax.f32 %v1166, 0.0
    %v1169 = vmax.f32 %v1167, 0.0
    %v1170 = vld [vmem:[%s27] sm:$0xff]
    %v1171 = vld [vmem:[%s27 + $0x8] sm:$0xff]
    %v1172 = vld [vmem:[%s27 + $0x10] sm:$0xff]
    %v1173 = vld [vmem:[%s27 + $0x18] sm:$0xff]
    %v1175 = vsel %vm431, %v1168, 0
    %v1178 = vsel %vm431, %v1169, 0
    %1180 = vmatprep.subr.mxu0 0.0
    %1181 = vmatpush1.msra.mxu0 0.0
    %1182 = vmatprep.subr.mxu0 0.0
    %1183 = vmatpush1.msra.mxu0 0.0
    %1184 = vmatprep.subr.mxu0 0.0
    %1185 = vmatpush1.msra.mxu0 0.0
    %1186 = vmatprep.subr.mxu0 0.0
    %1187 = vmatpush1.msra.mxu0 0.0
    %1188 = vmatprep.subr.mxu0 0.0
    %1189 = vmatpush1.msra.mxu0 0.0
    %1190 = vmatprep.subr.mxu0 0.0
    %1191 = vmatpush1.msra.mxu0 0.0
    %1192 = vmatprep.subr.mxu0 0.0
    %1193 = vmatpush1.msra.mxu0 0.0
    %1194 = vmatprep.subr.mxu0 0.0
    %1195 = vmatpush1.msra.mxu0 0.0
    %1196 = vmatprep.subr.mxu0 0.0
    %1197 = vmatpush1.msra.mxu0 0.0
    %1198 = vmatprep.subr.mxu0 0.0
    %1199 = vmatpush1.msra.mxu0 0.0
    %1200 = vmatprep.subr.mxu0 0.0
    %1201 = vmatpush1.msra.mxu0 0.0
    %1202 = vmatprep.subr.mxu0 0.0
    %1203 = vmatpush1.msra.mxu0 0.0
    %1204 = vmatprep.subr.mxu0 0.0
    %1205 = vmatpush1.msra.mxu0 %v1173
    %1206 = vmatprep.subr.mxu0 0.0
    %1207 = vmatpush1.msra.mxu0 %v1172
    %1208 = vmatprep.subr.mxu0 0.0
    %1209 = vmatpush1.msra.mxu0 %v1171
    %1210 = vmatprep.subr.mxu0 0.0
    %1211 = vmatpush1.msra.mxu0 %v1170
    %1212 = vmatprep.subr.mxu0 0.0
    %1213 = vmatpush2.msra.mxu0 0.0
    %1214 = vmatprep.subr.mxu0 0.0
    %1215 = vmatpush2.msra.mxu0 0.0
    %1216 = vmatprep.subr.mxu0 0.0
    %1217 = vmatpush2.msra.mxu0 0.0
    %1218 = vmatprep.subr.mxu0 0.0
    %1219 = vmatpush2.msra.mxu0 0.0
    %1220 = vmatprep.subr.mxu0 0.0
    %1221 = vmatpush2.msra.mxu0 0.0
    %1222 = vmatprep.subr.mxu0 0.0
    %1223 = vmatpush2.msra.mxu0 0.0
    %1224 = vmatprep.subr.mxu0 0.0
    %1225 = vmatpush2.msra.mxu0 0.0
    %1226 = vmatprep.subr.mxu0 0.0
    %1227 = vmatpush2.msra.mxu0 0.0
    %1228 = vmatprep.subr.mxu0 0.0
    %1229 = vmatpush2.msra.mxu0 0.0
    %1230 = vmatprep.subr.mxu0 0.0
    %1231 = vmatpush2.msra.mxu0 0.0
    %1232 = vmatprep.subr.mxu0 0.0
    %1233 = vmatpush2.msra.mxu0 0.0
    %1234 = vmatprep.subr.mxu0 0.0
    %1235 = vmatpush2.msra.mxu0 0.0
    %1236 = vmatprep.subr.mxu0 0.0
    %1237 = vmatpush2.msra.mxu0 0.0
    %1238 = vmatprep.subr.mxu0 0.0
    %1239 = vmatpush2.msra.mxu0 0.0
    %1240 = vmatprep.subr.mxu0 0.0
    %1241 = vmatpush2.msra.mxu0 0.0
    %1242 = vmatprep.subr.mxu0 0.0
    %1243 = vmatpush2.msra.mxu0 0.0
    %1244 = vmatprep.mubr.f32.mxu0 0.0
    %1245 = vmatmul.mubr.f32.gmra.mxu0 %v1175
    %v1246 = vpop.f32.mrf.mxu0
    %v1247 = vadd.f32 0.0, %v1246
    %v1248 = vpop.f32.mrf.mxu0
    %1249 = vmatprep.mubr.f32.mxu0 0.0
    %1250 = vmatmul.mubr.f32.gmra.mxu0 %v1178
    %v1251 = vpop.f32.mrf.mxu0
    %v1252 = vadd.f32 0.0, %v1251
    %v1253 = vpop.f32.mrf.mxu0
    %1254 = vdwg.mxu0
    %v1255 = vld [vmem:[%s29] sm:$0xff]
    %v1256 = vld [vmem:[%s29 + $0x8] sm:$0xff]
    %v1257 = vld [vmem:[%s29 + $0x10] sm:$0xff]
    %v1258 = vld [vmem:[%s29 + $0x18] sm:$0xff]
    %1259 = vmatprep.subr.mxu0 0.0
    %1260 = vmatpush1.msra.mxu0 0.0
    %1261 = vmatprep.subr.mxu0 0.0
    %1262 = vmatpush1.msra.mxu0 0.0
    %1263 = vmatprep.subr.mxu0 0.0
    %1264 = vmatpush1.msra.mxu0 0.0
    %1265 = vmatprep.subr.mxu0 0.0
    %1266 = vmatpush1.msra.mxu0 0.0
    %1267 = vmatprep.subr.mxu0 0.0
    %1268 = vmatpush1.msra.mxu0 0.0
    %1269 = vmatprep.subr.mxu0 0.0
    %1270 = vmatpush1.msra.mxu0 0.0
    %1271 = vmatprep.subr.mxu0 0.0
    %1272 = vmatpush1.msra.mxu0 0.0
    %1273 = vmatprep.subr.mxu0 0.0
    %1274 = vmatpush1.msra.mxu0 0.0
    %1275 = vmatprep.subr.mxu0 0.0
    %1276 = vmatpush1.msra.mxu0 0.0
    %1277 = vmatprep.subr.mxu0 0.0
    %1278 = vmatpush1.msra.mxu0 0.0
    %1279 = vmatprep.subr.mxu0 0.0
    %1280 = vmatpush1.msra.mxu0 0.0
    %1281 = vmatprep.subr.mxu0 0.0
    %1282 = vmatpush1.msra.mxu0 0.0
    %1283 = vmatprep.subr.mxu0 0.0
    %1284 = vmatpush1.msra.mxu0 %v1258
    %1285 = vmatprep.subr.mxu0 0.0
    %1286 = vmatpush1.msra.mxu0 %v1257
    %1287 = vmatprep.subr.mxu0 0.0
    %1288 = vmatpush1.msra.mxu0 %v1256
    %1289 = vmatprep.subr.mxu0 0.0
    %1290 = vmatpush1.msra.mxu0 %v1255
    %1291 = vmatprep.subr.mxu0 0.0
    %1292 = vmatpush2.msra.mxu0 0.0
    %1293 = vmatprep.subr.mxu0 0.0
    %1294 = vmatpush2.msra.mxu0 0.0
    %1295 = vmatprep.subr.mxu0 0.0
    %1296 = vmatpush2.msra.mxu0 0.0
    %1297 = vmatprep.subr.mxu0 0.0
    %1298 = vmatpush2.msra.mxu0 0.0
    %1299 = vmatprep.subr.mxu0 0.0
    %1300 = vmatpush2.msra.mxu0 0.0
    %1301 = vmatprep.subr.mxu0 0.0
    %1302 = vmatpush2.msra.mxu0 0.0
    %1303 = vmatprep.subr.mxu0 0.0
    %1304 = vmatpush2.msra.mxu0 0.0
    %1305 = vmatprep.subr.mxu0 0.0
    %1306 = vmatpush2.msra.mxu0 0.0
    %1307 = vmatprep.subr.mxu0 0.0
    %1308 = vmatpush2.msra.mxu0 0.0
    %1309 = vmatprep.subr.mxu0 0.0
    %1310 = vmatpush2.msra.mxu0 0.0
    %1311 = vmatprep.subr.mxu0 0.0
    %1312 = vmatpush2.msra.mxu0 0.0
    %1313 = vmatprep.subr.mxu0 0.0
    %1314 = vmatpush2.msra.mxu0 0.0
    %1315 = vmatprep.subr.mxu0 0.0
    %1316 = vmatpush2.msra.mxu0 0.0
    %1317 = vmatprep.subr.mxu0 0.0
    %1318 = vmatpush2.msra.mxu0 0.0
    %1319 = vmatprep.subr.mxu0 0.0
    %1320 = vmatpush2.msra.mxu0 0.0
    %1321 = vmatprep.subr.mxu0 0.0
    %1322 = vmatpush2.msra.mxu0 0.0
    %1323 = vmatprep.mubr.f32.mxu0 0.0
    %1324 = vmatmul.mubr.f32.gmra.mxu0 %v1175
    %v1325 = vpop.f32.mrf.mxu0
    %v1326 = vadd.f32 0.0, %v1325
    %v1327 = vpop.f32.mrf.mxu0
    %1328 = vmatprep.mubr.f32.mxu0 0.0
    %1329 = vmatmul.mubr.f32.gmra.mxu0 %v1178
    %v1330 = vpop.f32.mrf.mxu0
    %v1331 = vadd.f32 0.0, %v1330
    %v1332 = vpop.f32.mrf.mxu0
    %1333 = vdwg.mxu0
    %1334 = vmatprep.subr.mxu0 0.0
    %1335 = vmatpush1.msra.mxu0 0.0
    %1336 = vmatprep.subr.mxu0 0.0
    %1337 = vmatpush1.msra.mxu0 0.0
    %1338 = vmatprep.subr.mxu0 0.0
    %1339 = vmatpush1.msra.mxu0 0.0
    %1340 = vmatprep.subr.mxu0 0.0
    %1341 = vmatpush1.msra.mxu0 0.0
    %1342 = vmatprep.subr.mxu0 0.0
    %1343 = vmatpush1.msra.mxu0 0.0
    %1344 = vmatprep.subr.mxu0 0.0
    %1345 = vmatpush1.msra.mxu0 0.0
    %1346 = vmatprep.subr.mxu0 0.0
    %1347 = vmatpush1.msra.mxu0 0.0
    %1348 = vmatprep.subr.mxu0 0.0
    %1349 = vmatpush1.msra.mxu0 0.0
    %1350 = vmatprep.subr.mxu0 0.0
    %1351 = vmatpush1.msra.mxu0 0.0
    %1352 = vmatprep.subr.mxu0 0.0
    %1353 = vmatpush1.msra.mxu0 0.0
    %1354 = vmatprep.subr.mxu0 0.0
    %1355 = vmatpush1.msra.mxu0 0.0
    %1356 = vmatprep.subr.mxu0 0.0
    %1357 = vmatpush1.msra.mxu0 0.0
    %1358 = vmatprep.subr.mxu0 0.0
    %1359 = vmatpush1.msra.mxu0 0.0
    %1360 = vmatprep.subr.mxu0 0.0
    %1361 = vmatpush1.msra.mxu0 0.0
    %1362 = vmatprep.subr.mxu0 0.0
    %1363 = vmatpush1.msra.mxu0 %v1331
    %1364 = vmatprep.subr.mxu0 0.0
    %1365 = vmatpush1.msra.mxu0 %v1326
    %1366 = vmatprep.subr.mxu0 0.0
    %1367 = vmatpush2.msra.mxu0 0.0
    %1368 = vmatprep.subr.mxu0 0.0
    %1369 = vmatpush2.msra.mxu0 0.0
    %1370 = vmatprep.subr.mxu0 0.0
    %1371 = vmatpush2.msra.mxu0 0.0
    %1372 = vmatprep.subr.mxu0 0.0
    %1373 = vmatpush2.msra.mxu0 0.0
    %1374 = vmatprep.subr.mxu0 0.0
    %1375 = vmatpush2.msra.mxu0 0.0
    %1376 = vmatprep.subr.mxu0 0.0
    %1377 = vmatpush2.msra.mxu0 0.0
    %1378 = vmatprep.subr.mxu0 0.0
    %1379 = vmatpush2.msra.mxu0 0.0
    %1380 = vmatprep.subr.mxu0 0.0
    %1381 = vmatpush2.msra.mxu0 0.0
    %1382 = vmatprep.subr.mxu0 0.0
    %1383 = vmatpush2.msra.mxu0 0.0
    %1384 = vmatprep.subr.mxu0 0.0
    %1385 = vmatpush2.msra.mxu0 0.0
    %1386 = vmatprep.subr.mxu0 0.0
    %1387 = vmatpush2.msra.mxu0 0.0
    %1388 = vmatprep.subr.mxu0 0.0
    %1389 = vmatpush2.msra.mxu0 0.0
    %1390 = vmatprep.subr.mxu0 0.0
    %1391 = vmatpush2.msra.mxu0 0.0
    %1392 = vmatprep.subr.mxu0 0.0
    %1393 = vmatpush2.msra.mxu0 0.0
    %1394 = vmatprep.subr.mxu0 0.0
    %1395 = vmatpush2.msra.mxu0 0.0
    %1396 = vmatprep.subr.mxu0 0.0
    %1397 = vmatpush2.msra.mxu0 0.0
    %1398 = vmatprep.mubr.f32.mxu0 0.0
    %1399 = vmatmul.mubr.f32.gmra.mxu0 %v700
    %v1400 = vpop.f32.mrf.mxu0
    %v1401 = vadd.f32 0.0, %v1400
    %v1402 = vpop.f32.mrf.mxu0
    %1403 = vmatprep.mubr.f32.mxu0 0.0
    %1404 = vmatmul.mubr.f32.gmra.mxu0 %v703
    %v1405 = vpop.f32.mrf.mxu0
    %v1406 = vadd.f32 0.0, %v1405
    %v1407 = vpop.f32.mrf.mxu0
    %1408 = vmatprep.mubr.f32.mxu0 0.0
    %1409 = vmatmul.mubr.f32.gmra.mxu0 %v706
    %v1410 = vpop.f32.mrf.mxu0
    %v1411 = vadd.f32 0.0, %v1410
    %v1412 = vpop.f32.mrf.mxu0
    %1413 = vmatprep.mubr.f32.mxu0 0.0
    %1414 = vmatmul.mubr.f32.gmra.mxu0 %v709
    %v1415 = vpop.f32.mrf.mxu0
    %v1416 = vadd.f32 0.0, %v1415
    %v1417 = vpop.f32.mrf.mxu0
    %1418 = vmatprep.mubr.f32.mxu0 0.0
    %1419 = vmatmul.mubr.f32.gmra.mxu0 %v712
    %v1420 = vpop.f32.mrf.mxu0
    %v1421 = vadd.f32 0.0, %v1420
    %v1422 = vpop.f32.mrf.mxu0
    %1423 = vdwg.mxu0
    %1424 = vmatprep.subr.mxu0 0.0
    %1425 = vmatpush1.msra.mxu0 0.0
    %1426 = vmatprep.subr.mxu0 0.0
    %1427 = vmatpush1.msra.mxu0 0.0
    %1428 = vmatprep.subr.mxu0 0.0
    %1429 = vmatpush1.msra.mxu0 0.0
    %1430 = vmatprep.subr.mxu0 0.0
    %1431 = vmatpush1.msra.mxu0 0.0
    %1432 = vmatprep.subr.mxu0 0.0
    %1433 = vmatpush1.msra.mxu0 0.0
    %1434 = vmatprep.subr.mxu0 0.0
    %1435 = vmatpush1.msra.mxu0 0.0
    %1436 = vmatprep.subr.mxu0 0.0
    %1437 = vmatpush1.msra.mxu0 0.0
    %1438 = vmatprep.subr.mxu0 0.0
    %1439 = vmatpush1.msra.mxu0 0.0
    %1440 = vmatprep.subr.mxu0 0.0
    %1441 = vmatpush1.msra.mxu0 0.0
    %1442 = vmatprep.subr.mxu0 0.0
    %1443 = vmatpush1.msra.mxu0 0.0
    %1444 = vmatprep.subr.mxu0 0.0
    %1445 = vmatpush1.msra.mxu0 0.0
    %1446 = vmatprep.subr.mxu0 0.0
    %1447 = vmatpush1.msra.mxu0 0.0
    %1448 = vmatprep.subr.mxu0 0.0
    %1449 = vmatpush1.msra.mxu0 0.0
    %1450 = vmatprep.subr.mxu0 0.0
    %1451 = vmatpush1.msra.mxu0 0.0
    %1452 = vmatprep.subr.mxu0 0.0
    %1453 = vmatpush1.msra.mxu0 %v1252
    %1454 = vmatprep.subr.mxu0 0.0
    %1455 = vmatpush1.msra.mxu0 %v1247
    %1456 = vmatprep.subr.mxu0 0.0
    %1457 = vmatpush2.msra.mxu0 0.0
    %1458 = vmatprep.subr.mxu0 0.0
    %1459 = vmatpush2.msra.mxu0 0.0
    %1460 = vmatprep.subr.mxu0 0.0
    %1461 = vmatpush2.msra.mxu0 0.0
    %1462 = vmatprep.subr.mxu0 0.0
    %1463 = vmatpush2.msra.mxu0 0.0
    %1464 = vmatprep.subr.mxu0 0.0
    %1465 = vmatpush2.msra.mxu0 0.0
    %1466 = vmatprep.subr.mxu0 0.0
    %1467 = vmatpush2.msra.mxu0 0.0
    %1468 = vmatprep.subr.mxu0 0.0
    %1469 = vmatpush2.msra.mxu0 0.0
    %1470 = vmatprep.subr.mxu0 0.0
    %1471 = vmatpush2.msra.mxu0 0.0
    %1472 = vmatprep.subr.mxu0 0.0
    %1473 = vmatpush2.msra.mxu0 0.0
    %1474 = vmatprep.subr.mxu0 0.0
    %1475 = vmatpush2.msra.mxu0 0.0
    %1476 = vmatprep.subr.mxu0 0.0
    %1477 = vmatpush2.msra.mxu0 0.0
    %1478 = vmatprep.subr.mxu0 0.0
    %1479 = vmatpush2.msra.mxu0 0.0
    %1480 = vmatprep.subr.mxu0 0.0
    %1481 = vmatpush2.msra.mxu0 0.0
    %1482 = vmatprep.subr.mxu0 0.0
    %1483 = vmatpush2.msra.mxu0 0.0
    %1484 = vmatprep.subr.mxu0 0.0
    %1485 = vmatpush2.msra.mxu0 0.0
    %1486 = vmatprep.subr.mxu0 0.0
    %1487 = vmatpush2.msra.mxu0 0.0
    %1488 = vmatprep.mubr.f32.mxu0 0.0
    %1489 = vmatmul.mubr.f32.gmra.mxu0 %v805
    %v1490 = vpop.f32.mrf.mxu0
    %v1491 = vadd.f32 %v1401, %v1490
    %v1492 = vpop.f32.mrf.mxu0
    %1493 = vmatprep.mubr.f32.mxu0 0.0
    %1494 = vmatmul.mubr.f32.gmra.mxu0 %v808
    %v1495 = vpop.f32.mrf.mxu0
    %v1496 = vadd.f32 %v1406, %v1495
    %v1497 = vpop.f32.mrf.mxu0
    %1498 = vmatprep.mubr.f32.mxu0 0.0
    %1499 = vmatmul.mubr.f32.gmra.mxu0 %v811
    %v1500 = vpop.f32.mrf.mxu0
    %v1501 = vadd.f32 %v1411, %v1500
    %v1502 = vpop.f32.mrf.mxu0
    %1503 = vmatprep.mubr.f32.mxu0 0.0
    %1504 = vmatmul.mubr.f32.gmra.mxu0 %v814
    %v1505 = vpop.f32.mrf.mxu0
    %v1506 = vadd.f32 %v1416, %v1505
    %v1507 = vpop.f32.mrf.mxu0
    %1508 = vmatprep.mubr.f32.mxu0 0.0
    %1509 = vmatmul.mubr.f32.gmra.mxu0 %v817
    %v1510 = vpop.f32.mrf.mxu0
    %v1511 = vadd.f32 %v1421, %v1510
    %v1512 = vpop.f32.mrf.mxu0
    %1513 = vdwg.mxu0
    %v1514 = vld [vmem:[%s31] sm:$0x1]
    %v1516 = vlaneseq
    %v1517 = vshrl.u32 %v1516, 7
    %v1518 = vsub.s32 0, %v1517
    %v1519 = vrot.slane %v1514, %v1518
    %v1521 = vadd.f32 %v1491, %v1519
    %v1522 = vadd.f32 %v1496, %v1519
    %v1523 = vadd.f32 %v1501, %v1519
    %v1524 = vadd.f32 %v1506, %v1519
    %v1525 = vadd.f32 %v1511, %v1519
    %v1526 = vmax.f32 %v1521, 0.0
    %v1527 = vmax.f32 %v1522, 0.0
    %v1528 = vmax.f32 %v1523, 0.0
    %v1529 = vmax.f32 %v1524, 0.0
    %v1530 = vmax.f32 %v1525, 0.0
    %v1531 = vld [vmem:[%s33] sm:$0xff]
    %v1532 = vld [vmem:[%s33 + $0x8] sm:$0xff]
    %v1533 = vld [vmem:[%s33 + $0x10] sm:$0xff]
    %v1534 = vld [vmem:[%s33 + $0x18] sm:$0xff]
    %v1535 = vld [vmem:[%s33 + $0x20] sm:$0xff]
    %v1536 = vld [vmem:[%s33 + $0x28] sm:$0xff]
    %v1537 = vld [vmem:[%s33 + $0x30] sm:$0xff]
    %v1538 = vld [vmem:[%s33 + $0x38] sm:$0xff]
    %v1539 = vld [vmem:[%s35] sm:$0x1]
    %v1541 = vlaneseq
    %v1542 = vshrl.u32 %v1541, 7
    %v1543 = vsub.s32 0, %v1542
    %v1544 = vrot.slane %v1539, %v1543
    %v1547 = vsel %vm941, %v1526, 0
    %v1550 = vsel %vm941, %v1527, 0
    %v1553 = vsel %vm941, %v1528, 0
    %v1556 = vsel %vm941, %v1529, 0
    %v1559 = vsel %vm941, %v1530, 0
    %1561 = vmatprep.subr.mxu0 0.0
    %1562 = vmatpush1.msra.mxu0 0.0
    %1563 = vmatprep.subr.mxu0 0.0
    %1564 = vmatpush1.msra.mxu0 0.0
    %1565 = vmatprep.subr.mxu0 0.0
    %1566 = vmatpush1.msra.mxu0 0.0
    %1567 = vmatprep.subr.mxu0 0.0
    %1568 = vmatpush1.msra.mxu0 0.0
    %1569 = vmatprep.subr.mxu0 0.0
    %1570 = vmatpush1.msra.mxu0 0.0
    %1571 = vmatprep.subr.mxu0 0.0
    %1572 = vmatpush1.msra.mxu0 0.0
    %1573 = vmatprep.subr.mxu0 0.0
    %1574 = vmatpush1.msra.mxu0 0.0
    %1575 = vmatprep.subr.mxu0 0.0
    %1576 = vmatpush1.msra.mxu0 0.0
    %1577 = vmatprep.subr.mxu0 0.0
    %1578 = vmatpush1.msra.mxu0 %v1538
    %1579 = vmatprep.subr.mxu0 0.0
    %1580 = vmatpush1.msra.mxu0 %v1537
    %1581 = vmatprep.subr.mxu0 0.0
    %1582 = vmatpush1.msra.mxu0 %v1536
    %1583 = vmatprep.subr.mxu0 0.0
    %1584 = vmatpush1.msra.mxu0 %v1535
    %1585 = vmatprep.subr.mxu0 0.0
    %1586 = vmatpush1.msra.mxu0 %v1534
    %1587 = vmatprep.subr.mxu0 0.0
    %1588 = vmatpush1.msra.mxu0 %v1533
    %1589 = vmatprep.subr.mxu0 0.0
    %1590 = vmatpush1.msra.mxu0 %v1532
    %1591 = vmatprep.subr.mxu0 0.0
    %1592 = vmatpush1.msra.mxu0 %v1531
    %1593 = vmatprep.subr.mxu0 0.0
    %1594 = vmatpush2.msra.mxu0 0.0
    %1595 = vmatprep.subr.mxu0 0.0
    %1596 = vmatpush2.msra.mxu0 0.0
    %1597 = vmatprep.subr.mxu0 0.0
    %1598 = vmatpush2.msra.mxu0 0.0
    %1599 = vmatprep.subr.mxu0 0.0
    %1600 = vmatpush2.msra.mxu0 0.0
    %1601 = vmatprep.subr.mxu0 0.0
    %1602 = vmatpush2.msra.mxu0 0.0
    %1603 = vmatprep.subr.mxu0 0.0
    %1604 = vmatpush2.msra.mxu0 0.0
    %1605 = vmatprep.subr.mxu0 0.0
    %1606 = vmatpush2.msra.mxu0 0.0
    %1607 = vmatprep.subr.mxu0 0.0
    %1608 = vmatpush2.msra.mxu0 0.0
    %1609 = vmatprep.subr.mxu0 0.0
    %1610 = vmatpush2.msra.mxu0 0.0
    %1611 = vmatprep.subr.mxu0 0.0
    %1612 = vmatpush2.msra.mxu0 0.0
    %1613 = vmatprep.subr.mxu0 0.0
    %1614 = vmatpush2.msra.mxu0 0.0
    %1615 = vmatprep.subr.mxu0 0.0
    %1616 = vmatpush2.msra.mxu0 0.0
    %1617 = vmatprep.subr.mxu0 0.0
    %1618 = vmatpush2.msra.mxu0 0.0
    %1619 = vmatprep.subr.mxu0 0.0
    %1620 = vmatpush2.msra.mxu0 0.0
    %1621 = vmatprep.subr.mxu0 0.0
    %1622 = vmatpush2.msra.mxu0 0.0
    %1623 = vmatprep.subr.mxu0 0.0
    %1624 = vmatpush2.msra.mxu0 0.0
    %1625 = vmatprep.mubr.f32.mxu0 0.0
    %1626 = vmatmul.mubr.f32.gmra.mxu0 %v1547
    %v1627 = vpop.f32.mrf.mxu0
    %v1628 = vadd.f32 %v1544, %v1627
    %v1629 = vpop.f32.mrf.mxu0
    %1630 = vmatprep.mubr.f32.mxu0 0.0
    %1631 = vmatmul.mubr.f32.gmra.mxu0 %v1550
    %v1632 = vpop.f32.mrf.mxu0
    %v1633 = vadd.f32 %v1544, %v1632
    %v1634 = vpop.f32.mrf.mxu0
    %1635 = vmatprep.mubr.f32.mxu0 0.0
    %1636 = vmatmul.mubr.f32.gmra.mxu0 %v1553
    %v1637 = vpop.f32.mrf.mxu0
    %v1638 = vadd.f32 %v1544, %v1637
    %v1639 = vpop.f32.mrf.mxu0
    %1640 = vmatprep.mubr.f32.mxu0 0.0
    %1641 = vmatmul.mubr.f32.gmra.mxu0 %v1556
    %v1642 = vpop.f32.mrf.mxu0
    %v1643 = vadd.f32 %v1544, %v1642
    %v1644 = vpop.f32.mrf.mxu0
    %1645 = vmatprep.mubr.f32.mxu0 0.0
    %1646 = vmatmul.mubr.f32.gmra.mxu0 %v1559
    %v1647 = vpop.f32.mrf.mxu0
    %v1648 = vadd.f32 %v1544, %v1647
    %v1649 = vpop.f32.mrf.mxu0
    %1650 = vdwg.mxu0
    %v1651 = vmax.f32 %v1628, 0.0
    %v1652 = vmax.f32 %v1633, 0.0
    %v1653 = vmax.f32 %v1638, 0.0
    %v1654 = vmax.f32 %v1643, 0.0
    %v1655 = vmax.f32 %v1648, 0.0
    %1656 = vmatprep.subr.mxu0 0.0
    %1657 = vmatpush1.msra.mxu0 0.0
    %1658 = vmatprep.subr.mxu0 0.0
    %1659 = vmatpush1.msra.mxu0 0.0
    %1660 = vmatprep.subr.mxu0 0.0
    %1661 = vmatpush1.msra.mxu0 0.0
    %1662 = vmatprep.subr.mxu0 0.0
    %1663 = vmatpush1.msra.mxu0 0.0
    %1664 = vmatprep.subr.mxu0 0.0
    %1665 = vmatpush1.msra.mxu0 0.0
    %1666 = vmatprep.subr.mxu0 0.0
    %1667 = vmatpush1.msra.mxu0 0.0
    %1668 = vmatprep.subr.mxu0 0.0
    %1669 = vmatpush1.msra.mxu0 0.0
    %1670 = vmatprep.subr.mxu0 0.0
    %1671 = vmatpush1.msra.mxu0 0.0
    %1672 = vmatprep.subr.mxu0 0.0
    %1673 = vmatpush1.msra.mxu0 0.0
    %1674 = vmatprep.subr.mxu0 0.0
    %1675 = vmatpush1.msra.mxu0 0.0
    %1676 = vmatprep.subr.mxu0 0.0
    %1677 = vmatpush1.msra.mxu0 0.0
    %1678 = vmatprep.subr.mxu0 0.0
    %1679 = vmatpush1.msra.mxu0 %v1655
    %1680 = vmatprep.subr.mxu0 0.0
    %1681 = vmatpush1.msra.mxu0 %v1654
    %1682 = vmatprep.subr.mxu0 0.0
    %1683 = vmatpush1.msra.mxu0 %v1653
    %1684 = vmatprep.subr.mxu0 0.0
    %1685 = vmatpush1.msra.mxu0 %v1652
    %1686 = vmatprep.subr.mxu0 0.0
    %1687 = vmatpush1.msra.mxu0 %v1651
    %1688 = vmatprep.subr.mxu0 0.0
    %1689 = vmatpush2.msra.mxu0 0.0
    %1690 = vmatprep.subr.mxu0 0.0
    %1691 = vmatpush2.msra.mxu0 0.0
    %1692 = vmatprep.subr.mxu0 0.0
    %1693 = vmatpush2.msra.mxu0 0.0
    %1694 = vmatprep.subr.mxu0 0.0
    %1695 = vmatpush2.msra.mxu0 0.0
    %1696 = vmatprep.subr.mxu0 0.0
    %1697 = vmatpush2.msra.mxu0 0.0
    %1698 = vmatprep.subr.mxu0 0.0
    %1699 = vmatpush2.msra.mxu0 0.0
    %1700 = vmatprep.subr.mxu0 0.0
    %1701 = vmatpush2.msra.mxu0 0.0
    %1702 = vmatprep.subr.mxu0 0.0
    %1703 = vmatpush2.msra.mxu0 0.0
    %1704 = vmatprep.subr.mxu0 0.0
    %1705 = vmatpush2.msra.mxu0 0.0
    %1706 = vmatprep.subr.mxu0 0.0
    %1707 = vmatpush2.msra.mxu0 0.0
    %1708 = vmatprep.subr.mxu0 0.0
    %1709 = vmatpush2.msra.mxu0 0.0
    %1710 = vmatprep.subr.mxu0 0.0
    %1711 = vmatpush2.msra.mxu0 0.0
    %1712 = vmatprep.subr.mxu0 0.0
    %1713 = vmatpush2.msra.mxu0 0.0
    %1714 = vmatprep.subr.mxu0 0.0
    %1715 = vmatpush2.msra.mxu0 0.0
    %1716 = vmatprep.subr.mxu0 0.0
    %1717 = vmatpush2.msra.mxu0 0.0
    %1718 = vmatprep.subr.mxu0 0.0
    %1719 = vmatpush2.msra.mxu0 0.0
    %1720 = vmatprep.mubr.f32.mxu0 0.0
    %1721 = vmatmul.mubr.f32.gmra.mxu0 %v1086
    %v1722 = vpop.f32.mrf.mxu0
    %v1723 = vadd.f32 0.0, %v1722
    %v1724 = vpop.f32.mrf.mxu0
    %1725 = vmatprep.mubr.f32.mxu0 0.0
    %1726 = vmatmul.mubr.f32.gmra.mxu0 %v1089
    %v1727 = vpop.f32.mrf.mxu0
    %v1728 = vadd.f32 0.0, %v1727
    %v1729 = vpop.f32.mrf.mxu0
    %1730 = vdwg.mxu0
    %v1731 = vadd.f32 %v1168, %v1723
    %v1732 = vadd.f32 %v1169, %v1728
    %v1733 = vmax.f32 %v1731, 0.0
    %v1734 = vmax.f32 %v1732, 0.0
    %v1735 = vld [vmem:[%s37] sm:$0xff]
    %v1736 = vld [vmem:[%s37 + $0x8] sm:$0xff]
    %v1737 = vld [vmem:[%s37 + $0x10] sm:$0xff]
    %v1738 = vld [vmem:[%s37 + $0x18] sm:$0xff]
    %v1740 = vsel %vm431, %v1733, 0
    %v1743 = vsel %vm431, %v1734, 0
    %1745 = vmatprep.subr.mxu0 0.0
    %1746 = vmatpush1.msra.mxu0 0.0
    %1747 = vmatprep.subr.mxu0 0.0
    %1748 = vmatpush1.msra.mxu0 0.0
    %1749 = vmatprep.subr.mxu0 0.0
    %1750 = vmatpush1.msra.mxu0 0.0
    %1751 = vmatprep.subr.mxu0 0.0
    %1752 = vmatpush1.msra.mxu0 0.0
    %1753 = vmatprep.subr.mxu0 0.0
    %1754 = vmatpush1.msra.mxu0 0.0
    %1755 = vmatprep.subr.mxu0 0.0
    %1756 = vmatpush1.msra.mxu0 0.0
    %1757 = vmatprep.subr.mxu0 0.0
    %1758 = vmatpush1.msra.mxu0 0.0
    %1759 = vmatprep.subr.mxu0 0.0
    %1760 = vmatpush1.msra.mxu0 0.0
    %1761 = vmatprep.subr.mxu0 0.0
    %1762 = vmatpush1.msra.mxu0 0.0
    %1763 = vmatprep.subr.mxu0 0.0
    %1764 = vmatpush1.msra.mxu0 0.0
    %1765 = vmatprep.subr.mxu0 0.0
    %1766 = vmatpush1.msra.mxu0 0.0
    %1767 = vmatprep.subr.mxu0 0.0
    %1768 = vmatpush1.msra.mxu0 0.0
    %1769 = vmatprep.subr.mxu0 0.0
    %1770 = vmatpush1.msra.mxu0 %v1738
    %1771 = vmatprep.subr.mxu0 0.0
    %1772 = vmatpush1.msra.mxu0 %v1737
    %1773 = vmatprep.subr.mxu0 0.0
    %1774 = vmatpush1.msra.mxu0 %v1736
    %1775 = vmatprep.subr.mxu0 0.0
    %1776 = vmatpush1.msra.mxu0 %v1735
    %1777 = vmatprep.subr.mxu0 0.0
    %1778 = vmatpush2.msra.mxu0 0.0
    %1779 = vmatprep.subr.mxu0 0.0
    %1780 = vmatpush2.msra.mxu0 0.0
    %1781 = vmatprep.subr.mxu0 0.0
    %1782 = vmatpush2.msra.mxu0 0.0
    %1783 = vmatprep.subr.mxu0 0.0
    %1784 = vmatpush2.msra.mxu0 0.0
    %1785 = vmatprep.subr.mxu0 0.0
    %1786 = vmatpush2.msra.mxu0 0.0
    %1787 = vmatprep.subr.mxu0 0.0
    %1788 = vmatpush2.msra.mxu0 0.0
    %1789 = vmatprep.subr.mxu0 0.0
    %1790 = vmatpush2.msra.mxu0 0.0
    %1791 = vmatprep.subr.mxu0 0.0
    %1792 = vmatpush2.msra.mxu0 0.0
    %1793 = vmatprep.subr.mxu0 0.0
    %1794 = vmatpush2.msra.mxu0 0.0
    %1795 = vmatprep.subr.mxu0 0.0
    %1796 = vmatpush2.msra.mxu0 0.0
    %1797 = vmatprep.subr.mxu0 0.0
    %1798 = vmatpush2.msra.mxu0 0.0
    %1799 = vmatprep.subr.mxu0 0.0
    %1800 = vmatpush2.msra.mxu0 0.0
    %1801 = vmatprep.subr.mxu0 0.0
    %1802 = vmatpush2.msra.mxu0 0.0
    %1803 = vmatprep.subr.mxu0 0.0
    %1804 = vmatpush2.msra.mxu0 0.0
    %1805 = vmatprep.subr.mxu0 0.0
    %1806 = vmatpush2.msra.mxu0 0.0
    %1807 = vmatprep.subr.mxu0 0.0
    %1808 = vmatpush2.msra.mxu0 0.0
    %1809 = vmatprep.mubr.f32.mxu0 0.0
    %1810 = vmatmul.mubr.f32.gmra.mxu0 %v1740
    %v1811 = vpop.f32.mrf.mxu0
    %v1812 = vadd.f32 0.0, %v1811
    %v1813 = vpop.f32.mrf.mxu0
    %1814 = vmatprep.mubr.f32.mxu0 0.0
    %1815 = vmatmul.mubr.f32.gmra.mxu0 %v1743
    %v1816 = vpop.f32.mrf.mxu0
    %v1817 = vadd.f32 0.0, %v1816
    %v1818 = vpop.f32.mrf.mxu0
    %1819 = vdwg.mxu0
    %v1820 = vld [vmem:[%s39] sm:$0xff]
    %v1821 = vld [vmem:[%s39 + $0x8] sm:$0xff]
    %v1822 = vld [vmem:[%s39 + $0x10] sm:$0xff]
    %v1823 = vld [vmem:[%s39 + $0x18] sm:$0xff]
    %1824 = vmatprep.subr.mxu0 0.0
    %1825 = vmatpush1.msra.mxu0 0.0
    %1826 = vmatprep.subr.mxu0 0.0
    %1827 = vmatpush1.msra.mxu0 0.0
    %1828 = vmatprep.subr.mxu0 0.0
    %1829 = vmatpush1.msra.mxu0 0.0
    %1830 = vmatprep.subr.mxu0 0.0
    %1831 = vmatpush1.msra.mxu0 0.0
    %1832 = vmatprep.subr.mxu0 0.0
    %1833 = vmatpush1.msra.mxu0 0.0
    %1834 = vmatprep.subr.mxu0 0.0
    %1835 = vmatpush1.msra.mxu0 0.0
    %1836 = vmatprep.subr.mxu0 0.0
    %1837 = vmatpush1.msra.mxu0 0.0
    %1838 = vmatprep.subr.mxu0 0.0
    %1839 = vmatpush1.msra.mxu0 0.0
    %1840 = vmatprep.subr.mxu0 0.0
    %1841 = vmatpush1.msra.mxu0 0.0
    %1842 = vmatprep.subr.mxu0 0.0
    %1843 = vmatpush1.msra.mxu0 0.0
    %1844 = vmatprep.subr.mxu0 0.0
    %1845 = vmatpush1.msra.mxu0 0.0
    %1846 = vmatprep.subr.mxu0 0.0
    %1847 = vmatpush1.msra.mxu0 0.0
    %1848 = vmatprep.subr.mxu0 0.0
    %1849 = vmatpush1.msra.mxu0 %v1823
    %1850 = vmatprep.subr.mxu0 0.0
    %1851 = vmatpush1.msra.mxu0 %v1822
    %1852 = vmatprep.subr.mxu0 0.0
    %1853 = vmatpush1.msra.mxu0 %v1821
    %1854 = vmatprep.subr.mxu0 0.0
    %1855 = vmatpush1.msra.mxu0 %v1820
    %1856 = vmatprep.subr.mxu0 0.0
    %1857 = vmatpush2.msra.mxu0 0.0
    %1858 = vmatprep.subr.mxu0 0.0
    %1859 = vmatpush2.msra.mxu0 0.0
    %1860 = vmatprep.subr.mxu0 0.0
    %1861 = vmatpush2.msra.mxu0 0.0
    %1862 = vmatprep.subr.mxu0 0.0
    %1863 = vmatpush2.msra.mxu0 0.0
    %1864 = vmatprep.subr.mxu0 0.0
    %1865 = vmatpush2.msra.mxu0 0.0
    %1866 = vmatprep.subr.mxu0 0.0
    %1867 = vmatpush2.msra.mxu0 0.0
    %1868 = vmatprep.subr.mxu0 0.0
    %1869 = vmatpush2.msra.mxu0 0.0
    %1870 = vmatprep.subr.mxu0 0.0
    %1871 = vmatpush2.msra.mxu0 0.0
    %1872 = vmatprep.subr.mxu0 0.0
    %1873 = vmatpush2.msra.mxu0 0.0
    %1874 = vmatprep.subr.mxu0 0.0
    %1875 = vmatpush2.msra.mxu0 0.0
    %1876 = vmatprep.subr.mxu0 0.0
    %1877 = vmatpush2.msra.mxu0 0.0
    %1878 = vmatprep.subr.mxu0 0.0
    %1879 = vmatpush2.msra.mxu0 0.0
    %1880 = vmatprep.subr.mxu0 0.0
    %1881 = vmatpush2.msra.mxu0 0.0
    %1882 = vmatprep.subr.mxu0 0.0
    %1883 = vmatpush2.msra.mxu0 0.0
    %1884 = vmatprep.subr.mxu0 0.0
    %1885 = vmatpush2.msra.mxu0 0.0
    %1886 = vmatprep.subr.mxu0 0.0
    %1887 = vmatpush2.msra.mxu0 0.0
    %1888 = vmatprep.mubr.f32.mxu0 0.0
    %1889 = vmatmul.mubr.f32.gmra.mxu0 %v1740
    %v1890 = vpop.f32.mrf.mxu0
    %v1891 = vadd.f32 0.0, %v1890
    %v1892 = vpop.f32.mrf.mxu0
    %1893 = vmatprep.mubr.f32.mxu0 0.0
    %1894 = vmatmul.mubr.f32.gmra.mxu0 %v1743
    %v1895 = vpop.f32.mrf.mxu0
    %v1896 = vadd.f32 0.0, %v1895
    %v1897 = vpop.f32.mrf.mxu0
    %1898 = vdwg.mxu0
    %1899 = vmatprep.subr.mxu0 0.0
    %1900 = vmatpush1.msra.mxu0 0.0
    %1901 = vmatprep.subr.mxu0 0.0
    %1902 = vmatpush1.msra.mxu0 0.0
    %1903 = vmatprep.subr.mxu0 0.0
    %1904 = vmatpush1.msra.mxu0 0.0
    %1905 = vmatprep.subr.mxu0 0.0
    %1906 = vmatpush1.msra.mxu0 0.0
    %1907 = vmatprep.subr.mxu0 0.0
    %1908 = vmatpush1.msra.mxu0 0.0
    %1909 = vmatprep.subr.mxu0 0.0
    %1910 = vmatpush1.msra.mxu0 0.0
    %1911 = vmatprep.subr.mxu0 0.0
    %1912 = vmatpush1.msra.mxu0 0.0
    %1913 = vmatprep.subr.mxu0 0.0
    %1914 = vmatpush1.msra.mxu0 0.0
    %1915 = vmatprep.subr.mxu0 0.0
    %1916 = vmatpush1.msra.mxu0 0.0
    %1917 = vmatprep.subr.mxu0 0.0
    %1918 = vmatpush1.msra.mxu0 0.0
    %1919 = vmatprep.subr.mxu0 0.0
    %1920 = vmatpush1.msra.mxu0 0.0
    %1921 = vmatprep.subr.mxu0 0.0
    %1922 = vmatpush1.msra.mxu0 0.0
    %1923 = vmatprep.subr.mxu0 0.0
    %1924 = vmatpush1.msra.mxu0 0.0
    %1925 = vmatprep.subr.mxu0 0.0
    %1926 = vmatpush1.msra.mxu0 0.0
    %1927 = vmatprep.subr.mxu0 0.0
    %1928 = vmatpush1.msra.mxu0 %v1896
    %1929 = vmatprep.subr.mxu0 0.0
    %1930 = vmatpush1.msra.mxu0 %v1891
    %1931 = vmatprep.subr.mxu0 0.0
    %1932 = vmatpush2.msra.mxu0 0.0
    %1933 = vmatprep.subr.mxu0 0.0
    %1934 = vmatpush2.msra.mxu0 0.0
    %1935 = vmatprep.subr.mxu0 0.0
    %1936 = vmatpush2.msra.mxu0 0.0
    %1937 = vmatprep.subr.mxu0 0.0
    %1938 = vmatpush2.msra.mxu0 0.0
    %1939 = vmatprep.subr.mxu0 0.0
    %1940 = vmatpush2.msra.mxu0 0.0
    %1941 = vmatprep.subr.mxu0 0.0
    %1942 = vmatpush2.msra.mxu0 0.0
    %1943 = vmatprep.subr.mxu0 0.0
    %1944 = vmatpush2.msra.mxu0 0.0
    %1945 = vmatprep.subr.mxu0 0.0
    %1946 = vmatpush2.msra.mxu0 0.0
    %1947 = vmatprep.subr.mxu0 0.0
    %1948 = vmatpush2.msra.mxu0 0.0
    %1949 = vmatprep.subr.mxu0 0.0
    %1950 = vmatpush2.msra.mxu0 0.0
    %1951 = vmatprep.subr.mxu0 0.0
    %1952 = vmatpush2.msra.mxu0 0.0
    %1953 = vmatprep.subr.mxu0 0.0
    %1954 = vmatpush2.msra.mxu0 0.0
    %1955 = vmatprep.subr.mxu0 0.0
    %1956 = vmatpush2.msra.mxu0 0.0
    %1957 = vmatprep.subr.mxu0 0.0
    %1958 = vmatpush2.msra.mxu0 0.0
    %1959 = vmatprep.subr.mxu0 0.0
    %1960 = vmatpush2.msra.mxu0 0.0
    %1961 = vmatprep.subr.mxu0 0.0
    %1962 = vmatpush2.msra.mxu0 0.0
    %1963 = vmatprep.mubr.f32.mxu0 0.0
    %1964 = vmatmul.mubr.f32.gmra.mxu0 %v700
    %v1965 = vpop.f32.mrf.mxu0
    %v1966 = vadd.f32 0.0, %v1965
    %v1967 = vpop.f32.mrf.mxu0
    %1968 = vmatprep.mubr.f32.mxu0 0.0
    %1969 = vmatmul.mubr.f32.gmra.mxu0 %v703
    %v1970 = vpop.f32.mrf.mxu0
    %v1971 = vadd.f32 0.0, %v1970
    %v1972 = vpop.f32.mrf.mxu0
    %1973 = vmatprep.mubr.f32.mxu0 0.0
    %1974 = vmatmul.mubr.f32.gmra.mxu0 %v706
    %v1975 = vpop.f32.mrf.mxu0
    %v1976 = vadd.f32 0.0, %v1975
    %v1977 = vpop.f32.mrf.mxu0
    %1978 = vmatprep.mubr.f32.mxu0 0.0
    %1979 = vmatmul.mubr.f32.gmra.mxu0 %v709
    %v1980 = vpop.f32.mrf.mxu0
    %v1981 = vadd.f32 0.0, %v1980
    %v1982 = vpop.f32.mrf.mxu0
    %1983 = vmatprep.mubr.f32.mxu0 0.0
    %1984 = vmatmul.mubr.f32.gmra.mxu0 %v712
    %v1985 = vpop.f32.mrf.mxu0
    %v1986 = vadd.f32 0.0, %v1985
    %v1987 = vpop.f32.mrf.mxu0
    %1988 = vdwg.mxu0
    %1989 = vmatprep.subr.mxu0 0.0
    %1990 = vmatpush1.msra.mxu0 0.0
    %1991 = vmatprep.subr.mxu0 0.0
    %1992 = vmatpush1.msra.mxu0 0.0
    %1993 = vmatprep.subr.mxu0 0.0
    %1994 = vmatpush1.msra.mxu0 0.0
    %1995 = vmatprep.subr.mxu0 0.0
    %1996 = vmatpush1.msra.mxu0 0.0
    %1997 = vmatprep.subr.mxu0 0.0
    %1998 = vmatpush1.msra.mxu0 0.0
    %1999 = vmatprep.subr.mxu0 0.0
    %2000 = vmatpush1.msra.mxu0 0.0
    %2001 = vmatprep.subr.mxu0 0.0
    %2002 = vmatpush1.msra.mxu0 0.0
    %2003 = vmatprep.subr.mxu0 0.0
    %2004 = vmatpush1.msra.mxu0 0.0
    %2005 = vmatprep.subr.mxu0 0.0
    %2006 = vmatpush1.msra.mxu0 0.0
    %2007 = vmatprep.subr.mxu0 0.0
    %2008 = vmatpush1.msra.mxu0 0.0
    %2009 = vmatprep.subr.mxu0 0.0
    %2010 = vmatpush1.msra.mxu0 0.0
    %2011 = vmatprep.subr.mxu0 0.0
    %2012 = vmatpush1.msra.mxu0 0.0
    %2013 = vmatprep.subr.mxu0 0.0
    %2014 = vmatpush1.msra.mxu0 0.0
    %2015 = vmatprep.subr.mxu0 0.0
    %2016 = vmatpush1.msra.mxu0 0.0
    %2017 = vmatprep.subr.mxu0 0.0
    %2018 = vmatpush1.msra.mxu0 %v1817
    %2019 = vmatprep.subr.mxu0 0.0
    %2020 = vmatpush1.msra.mxu0 %v1812
    %2021 = vmatprep.subr.mxu0 0.0
    %2022 = vmatpush2.msra.mxu0 0.0
    %2023 = vmatprep.subr.mxu0 0.0
    %2024 = vmatpush2.msra.mxu0 0.0
    %2025 = vmatprep.subr.mxu0 0.0
    %2026 = vmatpush2.msra.mxu0 0.0
    %2027 = vmatprep.subr.mxu0 0.0
    %2028 = vmatpush2.msra.mxu0 0.0
    %2029 = vmatprep.subr.mxu0 0.0
    %2030 = vmatpush2.msra.mxu0 0.0
    %2031 = vmatprep.subr.mxu0 0.0
    %2032 = vmatpush2.msra.mxu0 0.0
    %2033 = vmatprep.subr.mxu0 0.0
    %2034 = vmatpush2.msra.mxu0 0.0
    %2035 = vmatprep.subr.mxu0 0.0
    %2036 = vmatpush2.msra.mxu0 0.0
    %2037 = vmatprep.subr.mxu0 0.0
    %2038 = vmatpush2.msra.mxu0 0.0
    %2039 = vmatprep.subr.mxu0 0.0
    %2040 = vmatpush2.msra.mxu0 0.0
    %2041 = vmatprep.subr.mxu0 0.0
    %2042 = vmatpush2.msra.mxu0 0.0
    %2043 = vmatprep.subr.mxu0 0.0
    %2044 = vmatpush2.msra.mxu0 0.0
    %2045 = vmatprep.subr.mxu0 0.0
    %2046 = vmatpush2.msra.mxu0 0.0
    %2047 = vmatprep.subr.mxu0 0.0
    %2048 = vmatpush2.msra.mxu0 0.0
    %2049 = vmatprep.subr.mxu0 0.0
    %2050 = vmatpush2.msra.mxu0 0.0
    %2051 = vmatprep.subr.mxu0 0.0
    %2052 = vmatpush2.msra.mxu0 0.0
    %2053 = vmatprep.mubr.f32.mxu0 0.0
    %2054 = vmatmul.mubr.f32.gmra.mxu0 %v805
    %v2055 = vpop.f32.mrf.mxu0
    %v2056 = vadd.f32 %v1966, %v2055
    %v2057 = vpop.f32.mrf.mxu0
    %2058 = vmatprep.mubr.f32.mxu0 0.0
    %2059 = vmatmul.mubr.f32.gmra.mxu0 %v808
    %v2060 = vpop.f32.mrf.mxu0
    %v2061 = vadd.f32 %v1971, %v2060
    %v2062 = vpop.f32.mrf.mxu0
    %2063 = vmatprep.mubr.f32.mxu0 0.0
    %2064 = vmatmul.mubr.f32.gmra.mxu0 %v811
    %v2065 = vpop.f32.mrf.mxu0
    %v2066 = vadd.f32 %v1976, %v2065
    %v2067 = vpop.f32.mrf.mxu0
    %2068 = vmatprep.mubr.f32.mxu0 0.0
    %2069 = vmatmul.mubr.f32.gmra.mxu0 %v814
    %v2070 = vpop.f32.mrf.mxu0
    %v2071 = vadd.f32 %v1981, %v2070
    %v2072 = vpop.f32.mrf.mxu0
    %2073 = vmatprep.mubr.f32.mxu0 0.0
    %2074 = vmatmul.mubr.f32.gmra.mxu0 %v817
    %v2075 = vpop.f32.mrf.mxu0
    %v2076 = vadd.f32 %v1986, %v2075
    %v2077 = vpop.f32.mrf.mxu0
    %2078 = vdwg.mxu0
    %v2079 = vld [vmem:[%s41] sm:$0x1]
    %v2081 = vlaneseq
    %v2082 = vshrl.u32 %v2081, 7
    %v2083 = vsub.s32 0, %v2082
    %v2084 = vrot.slane %v2079, %v2083
    %v2086 = vadd.f32 %v2056, %v2084
    %v2087 = vadd.f32 %v2061, %v2084
    %v2088 = vadd.f32 %v2066, %v2084
    %v2089 = vadd.f32 %v2071, %v2084
    %v2090 = vadd.f32 %v2076, %v2084
    %v2091 = vmax.f32 %v2086, 0.0
    %v2092 = vmax.f32 %v2087, 0.0
    %v2093 = vmax.f32 %v2088, 0.0
    %v2094 = vmax.f32 %v2089, 0.0
    %v2095 = vmax.f32 %v2090, 0.0
    %v2096 = vld [vmem:[%s43] sm:$0xff]
    %v2097 = vld [vmem:[%s43 + $0x8] sm:$0xff]
    %v2098 = vld [vmem:[%s43 + $0x10] sm:$0xff]
    %v2099 = vld [vmem:[%s43 + $0x18] sm:$0xff]
    %v2100 = vld [vmem:[%s43 + $0x20] sm:$0xff]
    %v2101 = vld [vmem:[%s43 + $0x28] sm:$0xff]
    %v2102 = vld [vmem:[%s43 + $0x30] sm:$0xff]
    %v2103 = vld [vmem:[%s43 + $0x38] sm:$0xff]
    %v2104 = vld [vmem:[%s45] sm:$0x1]
    %v2106 = vlaneseq
    %v2107 = vshrl.u32 %v2106, 7
    %v2108 = vsub.s32 0, %v2107
    %v2109 = vrot.slane %v2104, %v2108
    %v2112 = vsel %vm941, %v2091, 0
    %v2115 = vsel %vm941, %v2092, 0
    %v2118 = vsel %vm941, %v2093, 0
    %v2121 = vsel %vm941, %v2094, 0
    %v2124 = vsel %vm941, %v2095, 0
    %2126 = vmatprep.subr.mxu0 0.0
    %2127 = vmatpush1.msra.mxu0 0.0
    %2128 = vmatprep.subr.mxu0 0.0
    %2129 = vmatpush1.msra.mxu0 0.0
    %2130 = vmatprep.subr.mxu0 0.0
    %2131 = vmatpush1.msra.mxu0 0.0
    %2132 = vmatprep.subr.mxu0 0.0
    %2133 = vmatpush1.msra.mxu0 0.0
    %2134 = vmatprep.subr.mxu0 0.0
    %2135 = vmatpush1.msra.mxu0 0.0
    %2136 = vmatprep.subr.mxu0 0.0
    %2137 = vmatpush1.msra.mxu0 0.0
    %2138 = vmatprep.subr.mxu0 0.0
    %2139 = vmatpush1.msra.mxu0 0.0
    %2140 = vmatprep.subr.mxu0 0.0
    %2141 = vmatpush1.msra.mxu0 0.0
    %2142 = vmatprep.subr.mxu0 0.0
    %2143 = vmatpush1.msra.mxu0 %v2103
    %2144 = vmatprep.subr.mxu0 0.0
    %2145 = vmatpush1.msra.mxu0 %v2102
    %2146 = vmatprep.subr.mxu0 0.0
    %2147 = vmatpush1.msra.mxu0 %v2101
    %2148 = vmatprep.subr.mxu0 0.0
    %2149 = vmatpush1.msra.mxu0 %v2100
    %2150 = vmatprep.subr.mxu0 0.0
    %2151 = vmatpush1.msra.mxu0 %v2099
    %2152 = vmatprep.subr.mxu0 0.0
    %2153 = vmatpush1.msra.mxu0 %v2098
    %2154 = vmatprep.subr.mxu0 0.0
    %2155 = vmatpush1.msra.mxu0 %v2097
    %2156 = vmatprep.subr.mxu0 0.0
    %2157 = vmatpush1.msra.mxu0 %v2096
    %2158 = vmatprep.subr.mxu0 0.0
    %2159 = vmatpush2.msra.mxu0 0.0
    %2160 = vmatprep.subr.mxu0 0.0
    %2161 = vmatpush2.msra.mxu0 0.0
    %2162 = vmatprep.subr.mxu0 0.0
    %2163 = vmatpush2.msra.mxu0 0.0
    %2164 = vmatprep.subr.mxu0 0.0
    %2165 = vmatpush2.msra.mxu0 0.0
    %2166 = vmatprep.subr.mxu0 0.0
    %2167 = vmatpush2.msra.mxu0 0.0
    %2168 = vmatprep.subr.mxu0 0.0
    %2169 = vmatpush2.msra.mxu0 0.0
    %2170 = vmatprep.subr.mxu0 0.0
    %2171 = vmatpush2.msra.mxu0 0.0
    %2172 = vmatprep.subr.mxu0 0.0
    %2173 = vmatpush2.msra.mxu0 0.0
    %2174 = vmatprep.subr.mxu0 0.0
    %2175 = vmatpush2.msra.mxu0 0.0
    %2176 = vmatprep.subr.mxu0 0.0
    %2177 = vmatpush2.msra.mxu0 0.0
    %2178 = vmatprep.subr.mxu0 0.0
    %2179 = vmatpush2.msra.mxu0 0.0
    %2180 = vmatprep.subr.mxu0 0.0
    %2181 = vmatpush2.msra.mxu0 0.0
    %2182 = vmatprep.subr.mxu0 0.0
    %2183 = vmatpush2.msra.mxu0 0.0
    %2184 = vmatprep.subr.mxu0 0.0
    %2185 = vmatpush2.msra.mxu0 0.0
    %2186 = vmatprep.subr.mxu0 0.0
    %2187 = vmatpush2.msra.mxu0 0.0
    %2188 = vmatprep.subr.mxu0 0.0
    %2189 = vmatpush2.msra.mxu0 0.0
    %2190 = vmatprep.mubr.f32.mxu0 0.0
    %2191 = vmatmul.mubr.f32.gmra.mxu0 %v2112
    %v2192 = vpop.f32.mrf.mxu0
    %v2193 = vadd.f32 %v2109, %v2192
    %v2194 = vpop.f32.mrf.mxu0
    %2195 = vmatprep.mubr.f32.mxu0 0.0
    %2196 = vmatmul.mubr.f32.gmra.mxu0 %v2115
    %v2197 = vpop.f32.mrf.mxu0
    %v2198 = vadd.f32 %v2109, %v2197
    %v2199 = vpop.f32.mrf.mxu0
    %2200 = vmatprep.mubr.f32.mxu0 0.0
    %2201 = vmatmul.mubr.f32.gmra.mxu0 %v2118
    %v2202 = vpop.f32.mrf.mxu0
    %v2203 = vadd.f32 %v2109, %v2202
    %v2204 = vpop.f32.mrf.mxu0
    %2205 = vmatprep.mubr.f32.mxu0 0.0
    %2206 = vmatmul.mubr.f32.gmra.mxu0 %v2121
    %v2207 = vpop.f32.mrf.mxu0
    %v2208 = vadd.f32 %v2109, %v2207
    %v2209 = vpop.f32.mrf.mxu0
    %2210 = vmatprep.mubr.f32.mxu0 0.0
    %2211 = vmatmul.mubr.f32.gmra.mxu0 %v2124
    %v2212 = vpop.f32.mrf.mxu0
    %v2213 = vadd.f32 %v2109, %v2212
    %v2214 = vpop.f32.mrf.mxu0
    %2215 = vdwg.mxu0
    %v2216 = vmax.f32 %v2193, 0.0
    %v2217 = vmax.f32 %v2198, 0.0
    %v2218 = vmax.f32 %v2203, 0.0
    %v2219 = vmax.f32 %v2208, 0.0
    %v2220 = vmax.f32 %v2213, 0.0
    %2221 = vmatprep.subr.mxu0 0.0
    %2222 = vmatpush1.msra.mxu0 0.0
    %2223 = vmatprep.subr.mxu0 0.0
    %2224 = vmatpush1.msra.mxu0 0.0
    %2225 = vmatprep.subr.mxu0 0.0
    %2226 = vmatpush1.msra.mxu0 0.0
    %2227 = vmatprep.subr.mxu0 0.0
    %2228 = vmatpush1.msra.mxu0 0.0
    %2229 = vmatprep.subr.mxu0 0.0
    %2230 = vmatpush1.msra.mxu0 0.0
    %2231 = vmatprep.subr.mxu0 0.0
    %2232 = vmatpush1.msra.mxu0 0.0
    %2233 = vmatprep.subr.mxu0 0.0
    %2234 = vmatpush1.msra.mxu0 0.0
    %2235 = vmatprep.subr.mxu0 0.0
    %2236 = vmatpush1.msra.mxu0 0.0
    %2237 = vmatprep.subr.mxu0 0.0
    %2238 = vmatpush1.msra.mxu0 0.0
    %2239 = vmatprep.subr.mxu0 0.0
    %2240 = vmatpush1.msra.mxu0 0.0
    %2241 = vmatprep.subr.mxu0 0.0
    %2242 = vmatpush1.msra.mxu0 0.0
    %2243 = vmatprep.subr.mxu0 0.0
    %2244 = vmatpush1.msra.mxu0 %v2220
    %2245 = vmatprep.subr.mxu0 0.0
    %2246 = vmatpush1.msra.mxu0 %v2219
    %2247 = vmatprep.subr.mxu0 0.0
    %2248 = vmatpush1.msra.mxu0 %v2218
    %2249 = vmatprep.subr.mxu0 0.0
    %2250 = vmatpush1.msra.mxu0 %v2217
    %2251 = vmatprep.subr.mxu0 0.0
    %2252 = vmatpush1.msra.mxu0 %v2216
    %2253 = vmatprep.subr.mxu0 0.0
    %2254 = vmatpush2.msra.mxu0 0.0
    %2255 = vmatprep.subr.mxu0 0.0
    %2256 = vmatpush2.msra.mxu0 0.0
    %2257 = vmatprep.subr.mxu0 0.0
    %2258 = vmatpush2.msra.mxu0 0.0
    %2259 = vmatprep.subr.mxu0 0.0
    %2260 = vmatpush2.msra.mxu0 0.0
    %2261 = vmatprep.subr.mxu0 0.0
    %2262 = vmatpush2.msra.mxu0 0.0
    %2263 = vmatprep.subr.mxu0 0.0
    %2264 = vmatpush2.msra.mxu0 0.0
    %2265 = vmatprep.subr.mxu0 0.0
    %2266 = vmatpush2.msra.mxu0 0.0
    %2267 = vmatprep.subr.mxu0 0.0
    %2268 = vmatpush2.msra.mxu0 0.0
    %2269 = vmatprep.subr.mxu0 0.0
    %2270 = vmatpush2.msra.mxu0 0.0
    %2271 = vmatprep.subr.mxu0 0.0
    %2272 = vmatpush2.msra.mxu0 0.0
    %2273 = vmatprep.subr.mxu0 0.0
    %2274 = vmatpush2.msra.mxu0 0.0
    %2275 = vmatprep.subr.mxu0 0.0
    %2276 = vmatpush2.msra.mxu0 0.0
    %2277 = vmatprep.subr.mxu0 0.0
    %2278 = vmatpush2.msra.mxu0 0.0
    %2279 = vmatprep.subr.mxu0 0.0
    %2280 = vmatpush2.msra.mxu0 0.0
    %2281 = vmatprep.subr.mxu0 0.0
    %2282 = vmatpush2.msra.mxu0 0.0
    %2283 = vmatprep.subr.mxu0 0.0
    %2284 = vmatpush2.msra.mxu0 0.0
    %2285 = vmatprep.mubr.f32.mxu0 0.0
    %2286 = vmatmul.mubr.f32.gmra.mxu0 %v1086
    %v2287 = vpop.f32.mrf.mxu0
    %v2288 = vadd.f32 0.0, %v2287
    %v2289 = vpop.f32.mrf.mxu0
    %2290 = vmatprep.mubr.f32.mxu0 0.0
    %2291 = vmatmul.mubr.f32.gmra.mxu0 %v1089
    %v2292 = vpop.f32.mrf.mxu0
    %v2293 = vadd.f32 0.0, %v2292
    %v2294 = vpop.f32.mrf.mxu0
    %2295 = vdwg.mxu0
    %v2296 = vadd.f32 %v1733, %v2288
    %v2297 = vadd.f32 %v1734, %v2293
    %v2298 = vmax.f32 %v2296, 0.0
    %v2299 = vmax.f32 %v2297, 0.0
    %v2300 = vld [vmem:[%s47] sm:$0xff]
    %v2301 = vld [vmem:[%s47 + $0x8] sm:$0xff]
    %v2302 = vld [vmem:[%s47 + $0x10] sm:$0xff]
    %v2303 = vld [vmem:[%s47 + $0x18] sm:$0xff]
    %v2305 = vsel %vm431, %v2298, 0
    %v2308 = vsel %vm431, %v2299, 0
    %2310 = vmatprep.subr.mxu0 0.0
    %2311 = vmatpush1.msra.mxu0 0.0
    %2312 = vmatprep.subr.mxu0 0.0
    %2313 = vmatpush1.msra.mxu0 0.0
    %2314 = vmatprep.subr.mxu0 0.0
    %2315 = vmatpush1.msra.mxu0 0.0
    %2316 = vmatprep.subr.mxu0 0.0
    %2317 = vmatpush1.msra.mxu0 0.0
    %2318 = vmatprep.subr.mxu0 0.0
    %2319 = vmatpush1.msra.mxu0 0.0
    %2320 = vmatprep.subr.mxu0 0.0
    %2321 = vmatpush1.msra.mxu0 0.0
    %2322 = vmatprep.subr.mxu0 0.0
    %2323 = vmatpush1.msra.mxu0 0.0
    %2324 = vmatprep.subr.mxu0 0.0
    %2325 = vmatpush1.msra.mxu0 0.0
    %2326 = vmatprep.subr.mxu0 0.0
    %2327 = vmatpush1.msra.mxu0 0.0
    %2328 = vmatprep.subr.mxu0 0.0
    %2329 = vmatpush1.msra.mxu0 0.0
    %2330 = vmatprep.subr.mxu0 0.0
    %2331 = vmatpush1.msra.mxu0 0.0
    %2332 = vmatprep.subr.mxu0 0.0
    %2333 = vmatpush1.msra.mxu0 0.0
    %2334 = vmatprep.subr.mxu0 0.0
    %2335 = vmatpush1.msra.mxu0 %v2303
    %2336 = vmatprep.subr.mxu0 0.0
    %2337 = vmatpush1.msra.mxu0 %v2302
    %2338 = vmatprep.subr.mxu0 0.0
    %2339 = vmatpush1.msra.mxu0 %v2301
    %2340 = vmatprep.subr.mxu0 0.0
    %2341 = vmatpush1.msra.mxu0 %v2300
    %2342 = vmatprep.subr.mxu0 0.0
    %2343 = vmatpush2.msra.mxu0 0.0
    %2344 = vmatprep.subr.mxu0 0.0
    %2345 = vmatpush2.msra.mxu0 0.0
    %2346 = vmatprep.subr.mxu0 0.0
    %2347 = vmatpush2.msra.mxu0 0.0
    %2348 = vmatprep.subr.mxu0 0.0
    %2349 = vmatpush2.msra.mxu0 0.0
    %2350 = vmatprep.subr.mxu0 0.0
    %2351 = vmatpush2.msra.mxu0 0.0
    %2352 = vmatprep.subr.mxu0 0.0
    %2353 = vmatpush2.msra.mxu0 0.0
    %2354 = vmatprep.subr.mxu0 0.0
    %2355 = vmatpush2.msra.mxu0 0.0
    %2356 = vmatprep.subr.mxu0 0.0
    %2357 = vmatpush2.msra.mxu0 0.0
    %2358 = vmatprep.subr.mxu0 0.0
    %2359 = vmatpush2.msra.mxu0 0.0
    %2360 = vmatprep.subr.mxu0 0.0
    %2361 = vmatpush2.msra.mxu0 0.0
    %2362 = vmatprep.subr.mxu0 0.0
    %2363 = vmatpush2.msra.mxu0 0.0
    %2364 = vmatprep.subr.mxu0 0.0
    %2365 = vmatpush2.msra.mxu0 0.0
    %2366 = vmatprep.subr.mxu0 0.0
    %2367 = vmatpush2.msra.mxu0 0.0
    %2368 = vmatprep.subr.mxu0 0.0
    %2369 = vmatpush2.msra.mxu0 0.0
    %2370 = vmatprep.subr.mxu0 0.0
    %2371 = vmatpush2.msra.mxu0 0.0
    %2372 = vmatprep.subr.mxu0 0.0
    %2373 = vmatpush2.msra.mxu0 0.0
    %2374 = vmatprep.mubr.f32.mxu0 0.0
    %2375 = vmatmul.mubr.f32.gmra.mxu0 %v2305
    %v2376 = vpop.f32.mrf.mxu0
    %v2377 = vadd.f32 0.0, %v2376
    %v2378 = vpop.f32.mrf.mxu0
    %2379 = vmatprep.mubr.f32.mxu0 0.0
    %2380 = vmatmul.mubr.f32.gmra.mxu0 %v2308
    %v2381 = vpop.f32.mrf.mxu0
    %v2382 = vadd.f32 0.0, %v2381
    %v2383 = vpop.f32.mrf.mxu0
    %2384 = vdwg.mxu0
    %v2385 = vld [vmem:[%s49] sm:$0xff]
    %v2386 = vld [vmem:[%s49 + $0x8] sm:$0xff]
    %v2387 = vld [vmem:[%s49 + $0x10] sm:$0xff]
    %v2388 = vld [vmem:[%s49 + $0x18] sm:$0xff]
    %2389 = vmatprep.subr.mxu0 0.0
    %2390 = vmatpush1.msra.mxu0 0.0
    %2391 = vmatprep.subr.mxu0 0.0
    %2392 = vmatpush1.msra.mxu0 0.0
    %2393 = vmatprep.subr.mxu0 0.0
    %2394 = vmatpush1.msra.mxu0 0.0
    %2395 = vmatprep.subr.mxu0 0.0
    %2396 = vmatpush1.msra.mxu0 0.0
    %2397 = vmatprep.subr.mxu0 0.0
    %2398 = vmatpush1.msra.mxu0 0.0
    %2399 = vmatprep.subr.mxu0 0.0
    %2400 = vmatpush1.msra.mxu0 0.0
    %2401 = vmatprep.subr.mxu0 0.0
    %2402 = vmatpush1.msra.mxu0 0.0
    %2403 = vmatprep.subr.mxu0 0.0
    %2404 = vmatpush1.msra.mxu0 0.0
    %2405 = vmatprep.subr.mxu0 0.0
    %2406 = vmatpush1.msra.mxu0 0.0
    %2407 = vmatprep.subr.mxu0 0.0
    %2408 = vmatpush1.msra.mxu0 0.0
    %2409 = vmatprep.subr.mxu0 0.0
    %2410 = vmatpush1.msra.mxu0 0.0
    %2411 = vmatprep.subr.mxu0 0.0
    %2412 = vmatpush1.msra.mxu0 0.0
    %2413 = vmatprep.subr.mxu0 0.0
    %2414 = vmatpush1.msra.mxu0 %v2388
    %2415 = vmatprep.subr.mxu0 0.0
    %2416 = vmatpush1.msra.mxu0 %v2387
    %2417 = vmatprep.subr.mxu0 0.0
    %2418 = vmatpush1.msra.mxu0 %v2386
    %2419 = vmatprep.subr.mxu0 0.0
    %2420 = vmatpush1.msra.mxu0 %v2385
    %2421 = vmatprep.subr.mxu0 0.0
    %2422 = vmatpush2.msra.mxu0 0.0
    %2423 = vmatprep.subr.mxu0 0.0
    %2424 = vmatpush2.msra.mxu0 0.0
    %2425 = vmatprep.subr.mxu0 0.0
    %2426 = vmatpush2.msra.mxu0 0.0
    %2427 = vmatprep.subr.mxu0 0.0
    %2428 = vmatpush2.msra.mxu0 0.0
    %2429 = vmatprep.subr.mxu0 0.0
    %2430 = vmatpush2.msra.mxu0 0.0
    %2431 = vmatprep.subr.mxu0 0.0
    %2432 = vmatpush2.msra.mxu0 0.0
    %2433 = vmatprep.subr.mxu0 0.0
    %2434 = vmatpush2.msra.mxu0 0.0
    %2435 = vmatprep.subr.mxu0 0.0
    %2436 = vmatpush2.msra.mxu0 0.0
    %2437 = vmatprep.subr.mxu0 0.0
    %2438 = vmatpush2.msra.mxu0 0.0
    %2439 = vmatprep.subr.mxu0 0.0
    %2440 = vmatpush2.msra.mxu0 0.0
    %2441 = vmatprep.subr.mxu0 0.0
    %2442 = vmatpush2.msra.mxu0 0.0
    %2443 = vmatprep.subr.mxu0 0.0
    %2444 = vmatpush2.msra.mxu0 0.0
    %2445 = vmatprep.subr.mxu0 0.0
    %2446 = vmatpush2.msra.mxu0 0.0
    %2447 = vmatprep.subr.mxu0 0.0
    %2448 = vmatpush2.msra.mxu0 0.0
    %2449 = vmatprep.subr.mxu0 0.0
    %2450 = vmatpush2.msra.mxu0 0.0
    %2451 = vmatprep.subr.mxu0 0.0
    %2452 = vmatpush2.msra.mxu0 0.0
    %2453 = vmatprep.mubr.f32.mxu0 0.0
    %2454 = vmatmul.mubr.f32.gmra.mxu0 %v2305
    %v2455 = vpop.f32.mrf.mxu0
    %v2456 = vadd.f32 0.0, %v2455
    %v2457 = vpop.f32.mrf.mxu0
    %2458 = vmatprep.mubr.f32.mxu0 0.0
    %2459 = vmatmul.mubr.f32.gmra.mxu0 %v2308
    %v2460 = vpop.f32.mrf.mxu0
    %v2461 = vadd.f32 0.0, %v2460
    %v2462 = vpop.f32.mrf.mxu0
    %2463 = vdwg.mxu0
    %2464 = vmatprep.subr.mxu0 0.0
    %2465 = vmatpush1.msra.mxu0 0.0
    %2466 = vmatprep.subr.mxu0 0.0
    %2467 = vmatpush1.msra.mxu0 0.0
    %2468 = vmatprep.subr.mxu0 0.0
    %2469 = vmatpush1.msra.mxu0 0.0
    %2470 = vmatprep.subr.mxu0 0.0
    %2471 = vmatpush1.msra.mxu0 0.0
    %2472 = vmatprep.subr.mxu0 0.0
    %2473 = vmatpush1.msra.mxu0 0.0
    %2474 = vmatprep.subr.mxu0 0.0
    %2475 = vmatpush1.msra.mxu0 0.0
    %2476 = vmatprep.subr.mxu0 0.0
    %2477 = vmatpush1.msra.mxu0 0.0
    %2478 = vmatprep.subr.mxu0 0.0
    %2479 = vmatpush1.msra.mxu0 0.0
    %2480 = vmatprep.subr.mxu0 0.0
    %2481 = vmatpush1.msra.mxu0 0.0
    %2482 = vmatprep.subr.mxu0 0.0
    %2483 = vmatpush1.msra.mxu0 0.0
    %2484 = vmatprep.subr.mxu0 0.0
    %2485 = vmatpush1.msra.mxu0 0.0
    %2486 = vmatprep.subr.mxu0 0.0
    %2487 = vmatpush1.msra.mxu0 0.0
    %2488 = vmatprep.subr.mxu0 0.0
    %2489 = vmatpush1.msra.mxu0 0.0
    %2490 = vmatprep.subr.mxu0 0.0
    %2491 = vmatpush1.msra.mxu0 0.0
    %2492 = vmatprep.subr.mxu0 0.0
    %2493 = vmatpush1.msra.mxu0 %v2461
    %2494 = vmatprep.subr.mxu0 0.0
    %2495 = vmatpush1.msra.mxu0 %v2456
    %2496 = vmatprep.subr.mxu0 0.0
    %2497 = vmatpush2.msra.mxu0 0.0
    %2498 = vmatprep.subr.mxu0 0.0
    %2499 = vmatpush2.msra.mxu0 0.0
    %2500 = vmatprep.subr.mxu0 0.0
    %2501 = vmatpush2.msra.mxu0 0.0
    %2502 = vmatprep.subr.mxu0 0.0
    %2503 = vmatpush2.msra.mxu0 0.0
    %2504 = vmatprep.subr.mxu0 0.0
    %2505 = vmatpush2.msra.mxu0 0.0
    %2506 = vmatprep.subr.mxu0 0.0
    %2507 = vmatpush2.msra.mxu0 0.0
    %2508 = vmatprep.subr.mxu0 0.0
    %2509 = vmatpush2.msra.mxu0 0.0
    %2510 = vmatprep.subr.mxu0 0.0
    %2511 = vmatpush2.msra.mxu0 0.0
    %2512 = vmatprep.subr.mxu0 0.0
    %2513 = vmatpush2.msra.mxu0 0.0
    %2514 = vmatprep.subr.mxu0 0.0
    %2515 = vmatpush2.msra.mxu0 0.0
    %2516 = vmatprep.subr.mxu0 0.0
    %2517 = vmatpush2.msra.mxu0 0.0
    %2518 = vmatprep.subr.mxu0 0.0
    %2519 = vmatpush2.msra.mxu0 0.0
    %2520 = vmatprep.subr.mxu0 0.0
    %2521 = vmatpush2.msra.mxu0 0.0
    %2522 = vmatprep.subr.mxu0 0.0
    %2523 = vmatpush2.msra.mxu0 0.0
    %2524 = vmatprep.subr.mxu0 0.0
    %2525 = vmatpush2.msra.mxu0 0.0
    %2526 = vmatprep.subr.mxu0 0.0
    %2527 = vmatpush2.msra.mxu0 0.0
    %2528 = vmatprep.mubr.f32.mxu0 0.0
    %2529 = vmatmul.mubr.f32.gmra.mxu0 %v700
    %v2530 = vpop.f32.mrf.mxu0
    %v2531 = vadd.f32 0.0, %v2530
    %v2532 = vpop.f32.mrf.mxu0
    %2533 = vmatprep.mubr.f32.mxu0 0.0
    %2534 = vmatmul.mubr.f32.gmra.mxu0 %v703
    %v2535 = vpop.f32.mrf.mxu0
    %v2536 = vadd.f32 0.0, %v2535
    %v2537 = vpop.f32.mrf.mxu0
    %2538 = vmatprep.mubr.f32.mxu0 0.0
    %2539 = vmatmul.mubr.f32.gmra.mxu0 %v706
    %v2540 = vpop.f32.mrf.mxu0
    %v2541 = vadd.f32 0.0, %v2540
    %v2542 = vpop.f32.mrf.mxu0
    %2543 = vmatprep.mubr.f32.mxu0 0.0
    %2544 = vmatmul.mubr.f32.gmra.mxu0 %v709
    %v2545 = vpop.f32.mrf.mxu0
    %v2546 = vadd.f32 0.0, %v2545
    %v2547 = vpop.f32.mrf.mxu0
    %2548 = vmatprep.mubr.f32.mxu0 0.0
    %2549 = vmatmul.mubr.f32.gmra.mxu0 %v712
    %v2550 = vpop.f32.mrf.mxu0
    %v2551 = vadd.f32 0.0, %v2550
    %v2552 = vpop.f32.mrf.mxu0
    %2553 = vdwg.mxu0
    %2554 = vmatprep.subr.mxu0 0.0
    %2555 = vmatpush1.msra.mxu0 0.0
    %2556 = vmatprep.subr.mxu0 0.0
    %2557 = vmatpush1.msra.mxu0 0.0
    %2558 = vmatprep.subr.mxu0 0.0
    %2559 = vmatpush1.msra.mxu0 0.0
    %2560 = vmatprep.subr.mxu0 0.0
    %2561 = vmatpush1.msra.mxu0 0.0
    %2562 = vmatprep.subr.mxu0 0.0
    %2563 = vmatpush1.msra.mxu0 0.0
    %2564 = vmatprep.subr.mxu0 0.0
    %2565 = vmatpush1.msra.mxu0 0.0
    %2566 = vmatprep.subr.mxu0 0.0
    %2567 = vmatpush1.msra.mxu0 0.0
    %2568 = vmatprep.subr.mxu0 0.0
    %2569 = vmatpush1.msra.mxu0 0.0
    %2570 = vmatprep.subr.mxu0 0.0
    %2571 = vmatpush1.msra.mxu0 0.0
    %2572 = vmatprep.subr.mxu0 0.0
    %2573 = vmatpush1.msra.mxu0 0.0
    %2574 = vmatprep.subr.mxu0 0.0
    %2575 = vmatpush1.msra.mxu0 0.0
    %2576 = vmatprep.subr.mxu0 0.0
    %2577 = vmatpush1.msra.mxu0 0.0
    %2578 = vmatprep.subr.mxu0 0.0
    %2579 = vmatpush1.msra.mxu0 0.0
    %2580 = vmatprep.subr.mxu0 0.0
    %2581 = vmatpush1.msra.mxu0 0.0
    %2582 = vmatprep.subr.mxu0 0.0
    %2583 = vmatpush1.msra.mxu0 %v2382
    %2584 = vmatprep.subr.mxu0 0.0
    %2585 = vmatpush1.msra.mxu0 %v2377
    %2586 = vmatprep.subr.mxu0 0.0
    %2587 = vmatpush2.msra.mxu0 0.0
    %2588 = vmatprep.subr.mxu0 0.0
    %2589 = vmatpush2.msra.mxu0 0.0
    %2590 = vmatprep.subr.mxu0 0.0
    %2591 = vmatpush2.msra.mxu0 0.0
    %2592 = vmatprep.subr.mxu0 0.0
    %2593 = vmatpush2.msra.mxu0 0.0
    %2594 = vmatprep.subr.mxu0 0.0
    %2595 = vmatpush2.msra.mxu0 0.0
    %2596 = vmatprep.subr.mxu0 0.0
    %2597 = vmatpush2.msra.mxu0 0.0
    %2598 = vmatprep.subr.mxu0 0.0
    %2599 = vmatpush2.msra.mxu0 0.0
    %2600 = vmatprep.subr.mxu0 0.0
    %2601 = vmatpush2.msra.mxu0 0.0
    %2602 = vmatprep.subr.mxu0 0.0
    %2603 = vmatpush2.msra.mxu0 0.0
    %2604 = vmatprep.subr.mxu0 0.0
    %2605 = vmatpush2.msra.mxu0 0.0
    %2606 = vmatprep.subr.mxu0 0.0
    %2607 = vmatpush2.msra.mxu0 0.0
    %2608 = vmatprep.subr.mxu0 0.0
    %2609 = vmatpush2.msra.mxu0 0.0
    %2610 = vmatprep.subr.mxu0 0.0
    %2611 = vmatpush2.msra.mxu0 0.0
    %2612 = vmatprep.subr.mxu0 0.0
    %2613 = vmatpush2.msra.mxu0 0.0
    %2614 = vmatprep.subr.mxu0 0.0
    %2615 = vmatpush2.msra.mxu0 0.0
    %2616 = vmatprep.subr.mxu0 0.0
    %2617 = vmatpush2.msra.mxu0 0.0
    %2618 = vmatprep.mubr.f32.mxu0 0.0
    %2619 = vmatmul.mubr.f32.gmra.mxu0 %v805
    %v2620 = vpop.f32.mrf.mxu0
    %v2621 = vadd.f32 %v2531, %v2620
    %v2622 = vpop.f32.mrf.mxu0
    %2623 = vmatprep.mubr.f32.mxu0 0.0
    %2624 = vmatmul.mubr.f32.gmra.mxu0 %v808
    %v2625 = vpop.f32.mrf.mxu0
    %v2626 = vadd.f32 %v2536, %v2625
    %v2627 = vpop.f32.mrf.mxu0
    %2628 = vmatprep.mubr.f32.mxu0 0.0
    %2629 = vmatmul.mubr.f32.gmra.mxu0 %v811
    %v2630 = vpop.f32.mrf.mxu0
    %v2631 = vadd.f32 %v2541, %v2630
    %v2632 = vpop.f32.mrf.mxu0
    %2633 = vmatprep.mubr.f32.mxu0 0.0
    %2634 = vmatmul.mubr.f32.gmra.mxu0 %v814
    %v2635 = vpop.f32.mrf.mxu0
    %v2636 = vadd.f32 %v2546, %v2635
    %v2637 = vpop.f32.mrf.mxu0
    %2638 = vmatprep.mubr.f32.mxu0 0.0
    %2639 = vmatmul.mubr.f32.gmra.mxu0 %v817
    %v2640 = vpop.f32.mrf.mxu0
    %v2641 = vadd.f32 %v2551, %v2640
    %v2642 = vpop.f32.mrf.mxu0
    %2643 = vdwg.mxu0
    %v2644 = vld [vmem:[%s51] sm:$0x1]
    %v2646 = vlaneseq
    %v2647 = vshrl.u32 %v2646, 7
    %v2648 = vsub.s32 0, %v2647
    %v2649 = vrot.slane %v2644, %v2648
    %v2651 = vadd.f32 %v2621, %v2649
    %v2652 = vadd.f32 %v2626, %v2649
    %v2653 = vadd.f32 %v2631, %v2649
    %v2654 = vadd.f32 %v2636, %v2649
    %v2655 = vadd.f32 %v2641, %v2649
    %v2656 = vmax.f32 %v2651, 0.0
    %v2657 = vmax.f32 %v2652, 0.0
    %v2658 = vmax.f32 %v2653, 0.0
    %v2659 = vmax.f32 %v2654, 0.0
    %v2660 = vmax.f32 %v2655, 0.0
    %v2661 = vld [vmem:[%s53] sm:$0xff]
    %v2662 = vld [vmem:[%s53 + $0x8] sm:$0xff]
    %v2663 = vld [vmem:[%s53 + $0x10] sm:$0xff]
    %v2664 = vld [vmem:[%s53 + $0x18] sm:$0xff]
    %v2665 = vld [vmem:[%s53 + $0x20] sm:$0xff]
    %v2666 = vld [vmem:[%s53 + $0x28] sm:$0xff]
    %v2667 = vld [vmem:[%s53 + $0x30] sm:$0xff]
    %v2668 = vld [vmem:[%s53 + $0x38] sm:$0xff]
    %v2669 = vld [vmem:[%s55] sm:$0x1]
    %v2671 = vlaneseq
    %v2672 = vshrl.u32 %v2671, 7
    %v2673 = vsub.s32 0, %v2672
    %v2674 = vrot.slane %v2669, %v2673
    %v2677 = vsel %vm941, %v2656, 0
    %v2680 = vsel %vm941, %v2657, 0
    %v2683 = vsel %vm941, %v2658, 0
    %v2686 = vsel %vm941, %v2659, 0
    %v2689 = vsel %vm941, %v2660, 0
    %2691 = vmatprep.subr.mxu0 0.0
    %2692 = vmatpush1.msra.mxu0 0.0
    %2693 = vmatprep.subr.mxu0 0.0
    %2694 = vmatpush1.msra.mxu0 0.0
    %2695 = vmatprep.subr.mxu0 0.0
    %2696 = vmatpush1.msra.mxu0 0.0
    %2697 = vmatprep.subr.mxu0 0.0
    %2698 = vmatpush1.msra.mxu0 0.0
    %2699 = vmatprep.subr.mxu0 0.0
    %2700 = vmatpush1.msra.mxu0 0.0
    %2701 = vmatprep.subr.mxu0 0.0
    %2702 = vmatpush1.msra.mxu0 0.0
    %2703 = vmatprep.subr.mxu0 0.0
    %2704 = vmatpush1.msra.mxu0 0.0
    %2705 = vmatprep.subr.mxu0 0.0
    %2706 = vmatpush1.msra.mxu0 0.0
    %2707 = vmatprep.subr.mxu0 0.0
    %2708 = vmatpush1.msra.mxu0 %v2668
    %2709 = vmatprep.subr.mxu0 0.0
    %2710 = vmatpush1.msra.mxu0 %v2667
    %2711 = vmatprep.subr.mxu0 0.0
    %2712 = vmatpush1.msra.mxu0 %v2666
    %2713 = vmatprep.subr.mxu0 0.0
    %2714 = vmatpush1.msra.mxu0 %v2665
    %2715 = vmatprep.subr.mxu0 0.0
    %2716 = vmatpush1.msra.mxu0 %v2664
    %2717 = vmatprep.subr.mxu0 0.0
    %2718 = vmatpush1.msra.mxu0 %v2663
    %2719 = vmatprep.subr.mxu0 0.0
    %2720 = vmatpush1.msra.mxu0 %v2662
    %2721 = vmatprep.subr.mxu0 0.0
    %2722 = vmatpush1.msra.mxu0 %v2661
    %2723 = vmatprep.subr.mxu0 0.0
    %2724 = vmatpush2.msra.mxu0 0.0
    %2725 = vmatprep.subr.mxu0 0.0
    %2726 = vmatpush2.msra.mxu0 0.0
    %2727 = vmatprep.subr.mxu0 0.0
    %2728 = vmatpush2.msra.mxu0 0.0
    %2729 = vmatprep.subr.mxu0 0.0
    %2730 = vmatpush2.msra.mxu0 0.0
    %2731 = vmatprep.subr.mxu0 0.0
    %2732 = vmatpush2.msra.mxu0 0.0
    %2733 = vmatprep.subr.mxu0 0.0
    %2734 = vmatpush2.msra.mxu0 0.0
    %2735 = vmatprep.subr.mxu0 0.0
    %2736 = vmatpush2.msra.mxu0 0.0
    %2737 = vmatprep.subr.mxu0 0.0
    %2738 = vmatpush2.msra.mxu0 0.0
    %2739 = vmatprep.subr.mxu0 0.0
    %2740 = vmatpush2.msra.mxu0 0.0
    %2741 = vmatprep.subr.mxu0 0.0
    %2742 = vmatpush2.msra.mxu0 0.0
    %2743 = vmatprep.subr.mxu0 0.0
    %2744 = vmatpush2.msra.mxu0 0.0
    %2745 = vmatprep.subr.mxu0 0.0
    %2746 = vmatpush2.msra.mxu0 0.0
    %2747 = vmatprep.subr.mxu0 0.0
    %2748 = vmatpush2.msra.mxu0 0.0
    %2749 = vmatprep.subr.mxu0 0.0
    %2750 = vmatpush2.msra.mxu0 0.0
    %2751 = vmatprep.subr.mxu0 0.0
    %2752 = vmatpush2.msra.mxu0 0.0
    %2753 = vmatprep.subr.mxu0 0.0
    %2754 = vmatpush2.msra.mxu0 0.0
    %2755 = vmatprep.mubr.f32.mxu0 0.0
    %2756 = vmatmul.mubr.f32.gmra.mxu0 %v2677
    %v2757 = vpop.f32.mrf.mxu0
    %v2758 = vadd.f32 %v2674, %v2757
    %v2759 = vpop.f32.mrf.mxu0
    %2760 = vmatprep.mubr.f32.mxu0 0.0
    %2761 = vmatmul.mubr.f32.gmra.mxu0 %v2680
    %v2762 = vpop.f32.mrf.mxu0
    %v2763 = vadd.f32 %v2674, %v2762
    %v2764 = vpop.f32.mrf.mxu0
    %2765 = vmatprep.mubr.f32.mxu0 0.0
    %2766 = vmatmul.mubr.f32.gmra.mxu0 %v2683
    %v2767 = vpop.f32.mrf.mxu0
    %v2768 = vadd.f32 %v2674, %v2767
    %v2769 = vpop.f32.mrf.mxu0
    %2770 = vmatprep.mubr.f32.mxu0 0.0
    %2771 = vmatmul.mubr.f32.gmra.mxu0 %v2686
    %v2772 = vpop.f32.mrf.mxu0
    %v2773 = vadd.f32 %v2674, %v2772
    %v2774 = vpop.f32.mrf.mxu0
    %2775 = vmatprep.mubr.f32.mxu0 0.0
    %2776 = vmatmul.mubr.f32.gmra.mxu0 %v2689
    %v2777 = vpop.f32.mrf.mxu0
    %v2778 = vadd.f32 %v2674, %v2777
    %v2779 = vpop.f32.mrf.mxu0
    %2780 = vdwg.mxu0
    %v2781 = vmax.f32 %v2758, 0.0
    %v2782 = vmax.f32 %v2763, 0.0
    %v2783 = vmax.f32 %v2768, 0.0
    %v2784 = vmax.f32 %v2773, 0.0
    %v2785 = vmax.f32 %v2778, 0.0
    %2786 = vmatprep.subr.mxu0 0.0
    %2787 = vmatpush1.msra.mxu0 0.0
    %2788 = vmatprep.subr.mxu0 0.0
    %2789 = vmatpush1.msra.mxu0 0.0
    %2790 = vmatprep.subr.mxu0 0.0
    %2791 = vmatpush1.msra.mxu0 0.0
    %2792 = vmatprep.subr.mxu0 0.0
    %2793 = vmatpush1.msra.mxu0 0.0
    %2794 = vmatprep.subr.mxu0 0.0
    %2795 = vmatpush1.msra.mxu0 0.0
    %2796 = vmatprep.subr.mxu0 0.0
    %2797 = vmatpush1.msra.mxu0 0.0
    %2798 = vmatprep.subr.mxu0 0.0
    %2799 = vmatpush1.msra.mxu0 0.0
    %2800 = vmatprep.subr.mxu0 0.0
    %2801 = vmatpush1.msra.mxu0 0.0
    %2802 = vmatprep.subr.mxu0 0.0
    %2803 = vmatpush1.msra.mxu0 0.0
    %2804 = vmatprep.subr.mxu0 0.0
    %2805 = vmatpush1.msra.mxu0 0.0
    %2806 = vmatprep.subr.mxu0 0.0
    %2807 = vmatpush1.msra.mxu0 0.0
    %2808 = vmatprep.subr.mxu0 0.0
    %2809 = vmatpush1.msra.mxu0 %v2785
    %2810 = vmatprep.subr.mxu0 0.0
    %2811 = vmatpush1.msra.mxu0 %v2784
    %2812 = vmatprep.subr.mxu0 0.0
    %2813 = vmatpush1.msra.mxu0 %v2783
    %2814 = vmatprep.subr.mxu0 0.0
    %2815 = vmatpush1.msra.mxu0 %v2782
    %2816 = vmatprep.subr.mxu0 0.0
    %2817 = vmatpush1.msra.mxu0 %v2781
    %2818 = vmatprep.subr.mxu0 0.0
    %2819 = vmatpush2.msra.mxu0 0.0
    %2820 = vmatprep.subr.mxu0 0.0
    %2821 = vmatpush2.msra.mxu0 0.0
    %2822 = vmatprep.subr.mxu0 0.0
    %2823 = vmatpush2.msra.mxu0 0.0
    %2824 = vmatprep.subr.mxu0 0.0
    %2825 = vmatpush2.msra.mxu0 0.0
    %2826 = vmatprep.subr.mxu0 0.0
    %2827 = vmatpush2.msra.mxu0 0.0
    %2828 = vmatprep.subr.mxu0 0.0
    %2829 = vmatpush2.msra.mxu0 0.0
    %2830 = vmatprep.subr.mxu0 0.0
    %2831 = vmatpush2.msra.mxu0 0.0
    %2832 = vmatprep.subr.mxu0 0.0
    %2833 = vmatpush2.msra.mxu0 0.0
    %2834 = vmatprep.subr.mxu0 0.0
    %2835 = vmatpush2.msra.mxu0 0.0
    %2836 = vmatprep.subr.mxu0 0.0
    %2837 = vmatpush2.msra.mxu0 0.0
    %2838 = vmatprep.subr.mxu0 0.0
    %2839 = vmatpush2.msra.mxu0 0.0
    %2840 = vmatprep.subr.mxu0 0.0
    %2841 = vmatpush2.msra.mxu0 0.0
    %2842 = vmatprep.subr.mxu0 0.0
    %2843 = vmatpush2.msra.mxu0 0.0
    %2844 = vmatprep.subr.mxu0 0.0
    %2845 = vmatpush2.msra.mxu0 0.0
    %2846 = vmatprep.subr.mxu0 0.0
    %2847 = vmatpush2.msra.mxu0 0.0
    %2848 = vmatprep.subr.mxu0 0.0
    %2849 = vmatpush2.msra.mxu0 0.0
    %2850 = vmatprep.mubr.f32.mxu0 0.0
    %2851 = vmatmul.mubr.f32.gmra.mxu0 %v1086
    %v2852 = vpop.f32.mrf.mxu0
    %v2853 = vadd.f32 0.0, %v2852
    %v2854 = vpop.f32.mrf.mxu0
    %2855 = vmatprep.mubr.f32.mxu0 0.0
    %2856 = vmatmul.mubr.f32.gmra.mxu0 %v1089
    %v2857 = vpop.f32.mrf.mxu0
    %v2858 = vadd.f32 0.0, %v2857
    %v2859 = vpop.f32.mrf.mxu0
    %2860 = vdwg.mxu0
    %v2861 = vadd.f32 %v2298, %v2853
    %v2862 = vadd.f32 %v2299, %v2858
    %v2863 = vmax.f32 %v2861, 0.0
    %v2864 = vmax.f32 %v2862, 0.0
    %2865 = vst.msk [vmem:[#allocation3] sm:$0xff] %vm431, %v2863
    %2866 = vst.msk [vmem:[#allocation3 + $0x8] sm:$0xff] %vm431, %v2864
    %v2867 = vld [vmem:[%s3] sm:$0x3]
    %v2868 = vlaneseq
    %v2869 = vshrl.u32 %v2868, 7
    %v2870 = vadd.s32 %v2869, 8
    %v2871 = vlaneseq
    %v2872 = vshrl.u32 %v2871, 7
    %v2873 = vsub.s32 0, %v2872
    %v2874 = vrot.slane %v2867, %v2873
    %vm2875 = vcmp.eq.s32.totalorder %v2869, %v2874
    %vm2876 = vcmp.eq.s32.totalorder %v2870, %v2874
    %v2877 = vsel %vm2875, 1, 0
    %v2878 = vsel %vm2876, 1, 0
    %v2879 = vcvt.s32.f32 %v2877
    %v2880 = vcvt.s32.f32 %v2878
    %v2881 = vlaneseq
    %v2882 = vshrl.u32 %v2881, 7
    %v2883 = vsub.s32 1, %v2882
    %v2884 = vrot.slane %v2867, %v2883
    %vm2885 = vcmp.eq.s32.totalorder %v2869, %v2884
    %vm2886 = vcmp.eq.s32.totalorder %v2870, %v2884
    %v2887 = vsel %vm2885, 1, 0
    %v2888 = vsel %vm2886, 1, 0
    %v2889 = vcvt.s32.f32 %v2887
    %v2890 = vcvt.s32.f32 %v2888
    %2891 = vxpose.xlu0.b32.start [1/16] %v2879, 128
    %2892 = vxpose.xlu0.b32.cont [2/16] %v2880, 128
    %2893 = vxpose.xlu0.b32.cont [3/16] 0.0, 128
    %2894 = vxpose.xlu0.b32.cont [4/16] 0.0, 128
    %2895 = vxpose.xlu0.b32.cont [5/16] 0.0, 128
    %2896 = vxpose.xlu0.b32.cont [6/16] 0.0, 128
    %2897 = vxpose.xlu0.b32.cont [7/16] 0.0, 128
    %2898 = vxpose.xlu0.b32.cont [8/16] 0.0, 128
    %2899 = vxpose.xlu0.b32.cont [9/16] 0.0, 128
    %2900 = vxpose.xlu0.b32.cont [10/16] 0.0, 128
    %2901 = vxpose.xlu0.b32.cont [11/16] 0.0, 128
    %2902 = vxpose.xlu0.b32.cont [12/16] 0.0, 128
    %2903 = vxpose.xlu0.b32.cont [13/16] 0.0, 128
    %2904 = vxpose.xlu0.b32.cont [14/16] 0.0, 128
    %2905 = vxpose.xlu0.b32.cont [15/16] 0.0, 128
    %2906 = vxpose.xlu0.b32.end [16/16] 0.0, 128
    %v2907 = vpop.trf.xlu0
    %v2908 = vpop.trf.xlu0
    %v2909 = vpop.trf.xlu0
    %v2910 = vpop.trf.xlu0
    %v2911 = vpop.trf.xlu0
    %v2912 = vpop.trf.xlu0
    %v2913 = vpop.trf.xlu0
    %v2914 = vpop.trf.xlu0
    %v2915 = vpop.trf.xlu0
    %v2916 = vpop.trf.xlu0
    %v2917 = vpop.trf.xlu0
    %v2918 = vpop.trf.xlu0
    %v2919 = vpop.trf.xlu0
    %v2920 = vpop.trf.xlu0
    %v2921 = vpop.trf.xlu0
    %v2922 = vpop.trf.xlu0
    %v2924 = vsel %vm698, %v2907, 0
    %v2927 = vsel %vm698, %v2908, 0
    %2929 = vmatprep.subr.mxu0 0.0
    %2930 = vmatpush1.msra.mxu0 0.0
    %2931 = vmatprep.subr.mxu0 0.0
    %2932 = vmatpush1.msra.mxu0 0.0
    %2933 = vmatprep.subr.mxu0 0.0
    %2934 = vmatpush1.msra.mxu0 0.0
    %2935 = vmatprep.subr.mxu0 0.0
    %2936 = vmatpush1.msra.mxu0 0.0
    %2937 = vmatprep.subr.mxu0 0.0
    %2938 = vmatpush1.msra.mxu0 0.0
    %2939 = vmatprep.subr.mxu0 0.0
    %2940 = vmatpush1.msra.mxu0 0.0
    %2941 = vmatprep.subr.mxu0 0.0
    %2942 = vmatpush1.msra.mxu0 0.0
    %2943 = vmatprep.subr.mxu0 0.0
    %2944 = vmatpush1.msra.mxu0 0.0
    %2945 = vmatprep.subr.mxu0 0.0
    %2946 = vmatpush1.msra.mxu0 0.0
    %2947 = vmatprep.subr.mxu0 0.0
    %2948 = vmatpush1.msra.mxu0 0.0
    %2949 = vmatprep.subr.mxu0 0.0
    %2950 = vmatpush1.msra.mxu0 0.0
    %2951 = vmatprep.subr.mxu0 0.0
    %2952 = vmatpush1.msra.mxu0 0.0
    %2953 = vmatprep.subr.mxu0 0.0
    %2954 = vmatpush1.msra.mxu0 0.0
    %2955 = vmatprep.subr.mxu0 0.0
    %2956 = vmatpush1.msra.mxu0 0.0
    %2957 = vmatprep.subr.mxu0 0.0
    %2958 = vmatpush1.msra.mxu0 %v2864
    %2959 = vmatprep.subr.mxu0 0.0
    %2960 = vmatpush1.msra.mxu0 %v2863
    %2961 = vmatprep.subr.mxu0 0.0
    %2962 = vmatpush2.msra.mxu0 0.0
    %2963 = vmatprep.subr.mxu0 0.0
    %2964 = vmatpush2.msra.mxu0 0.0
    %2965 = vmatprep.subr.mxu0 0.0
    %2966 = vmatpush2.msra.mxu0 0.0
    %2967 = vmatprep.subr.mxu0 0.0
    %2968 = vmatpush2.msra.mxu0 0.0
    %2969 = vmatprep.subr.mxu0 0.0
    %2970 = vmatpush2.msra.mxu0 0.0
    %2971 = vmatprep.subr.mxu0 0.0
    %2972 = vmatpush2.msra.mxu0 0.0
    %2973 = vmatprep.subr.mxu0 0.0
    %2974 = vmatpush2.msra.mxu0 0.0
    %2975 = vmatprep.subr.mxu0 0.0
    %2976 = vmatpush2.msra.mxu0 0.0
    %2977 = vmatprep.subr.mxu0 0.0
    %2978 = vmatpush2.msra.mxu0 0.0
    %2979 = vmatprep.subr.mxu0 0.0
    %2980 = vmatpush2.msra.mxu0 0.0
    %2981 = vmatprep.subr.mxu0 0.0
    %2982 = vmatpush2.msra.mxu0 0.0
    %2983 = vmatprep.subr.mxu0 0.0
    %2984 = vmatpush2.msra.mxu0 0.0
    %2985 = vmatprep.subr.mxu0 0.0
    %2986 = vmatpush2.msra.mxu0 0.0
    %2987 = vmatprep.subr.mxu0 0.0
    %2988 = vmatpush2.msra.mxu0 0.0
    %2989 = vmatprep.subr.mxu0 0.0
    %2990 = vmatpush2.msra.mxu0 0.0
    %2991 = vmatprep.subr.mxu0 0.0
    %2992 = vmatpush2.msra.mxu0 0.0
    %2993 = vmatprep.mubr.f32.mxu0 0.0
    %2994 = vmatmul.mubr.f32.gmra.mxu0 %v2924
    %v2995 = vpop.f32.mrf.mxu0
    %v2996 = vadd.f32 0.0, %v2995
    %v2997 = vpop.f32.mrf.mxu0
    %2998 = vmatprep.mubr.f32.mxu0 0.0
    %2999 = vmatmul.mubr.f32.gmra.mxu0 %v2927
    %v3000 = vpop.f32.mrf.mxu0
    %v3001 = vadd.f32 0.0, %v3000
    %v3002 = vpop.f32.mrf.mxu0
    %3003 = vdwg.mxu0
    %3004 = vxpose.xlu0.b32.start [1/16] %v2889, 128
    %3005 = vxpose.xlu0.b32.cont [2/16] %v2890, 128
    %3006 = vxpose.xlu0.b32.cont [3/16] 0.0, 128
    %3007 = vxpose.xlu0.b32.cont [4/16] 0.0, 128
    %3008 = vxpose.xlu0.b32.cont [5/16] 0.0, 128
    %3009 = vxpose.xlu0.b32.cont [6/16] 0.0, 128
    %3010 = vxpose.xlu0.b32.cont [7/16] 0.0, 128
    %3011 = vxpose.xlu0.b32.cont [8/16] 0.0, 128
    %3012 = vxpose.xlu0.b32.cont [9/16] 0.0, 128
    %3013 = vxpose.xlu0.b32.cont [10/16] 0.0, 128
    %3014 = vxpose.xlu0.b32.cont [11/16] 0.0, 128
    %3015 = vxpose.xlu0.b32.cont [12/16] 0.0, 128
    %3016 = vxpose.xlu0.b32.cont [13/16] 0.0, 128
    %3017 = vxpose.xlu0.b32.cont [14/16] 0.0, 128
    %3018 = vxpose.xlu0.b32.cont [15/16] 0.0, 128
    %3019 = vxpose.xlu0.b32.end [16/16] 0.0, 128
    %v3020 = vpop.trf.xlu0
    %v3021 = vpop.trf.xlu0
    %v3022 = vpop.trf.xlu0
    %v3023 = vpop.trf.xlu0
    %v3024 = vpop.trf.xlu0
    %v3025 = vpop.trf.xlu0
    %v3026 = vpop.trf.xlu0
    %v3027 = vpop.trf.xlu0
    %v3028 = vpop.trf.xlu0
    %v3029 = vpop.trf.xlu0
    %v3030 = vpop.trf.xlu0
    %v3031 = vpop.trf.xlu0
    %v3032 = vpop.trf.xlu0
    %v3033 = vpop.trf.xlu0
    %v3034 = vpop.trf.xlu0
    %v3035 = vpop.trf.xlu0
    %v3037 = vsel %vm698, %v3020, 0
    %v3040 = vsel %vm698, %v3021, 0
    %3042 = vmatprep.subr.mxu0 0.0
    %3043 = vmatpush1.msra.mxu0 0.0
    %3044 = vmatprep.subr.mxu0 0.0
    %3045 = vmatpush1.msra.mxu0 0.0
    %3046 = vmatprep.subr.mxu0 0.0
    %3047 = vmatpush1.msra.mxu0 0.0
    %3048 = vmatprep.subr.mxu0 0.0
    %3049 = vmatpush1.msra.mxu0 0.0
    %3050 = vmatprep.subr.mxu0 0.0
    %3051 = vmatpush1.msra.mxu0 0.0
    %3052 = vmatprep.subr.mxu0 0.0
    %3053 = vmatpush1.msra.mxu0 0.0
    %3054 = vmatprep.subr.mxu0 0.0
    %3055 = vmatpush1.msra.mxu0 0.0
    %3056 = vmatprep.subr.mxu0 0.0
    %3057 = vmatpush1.msra.mxu0 0.0
    %3058 = vmatprep.subr.mxu0 0.0
    %3059 = vmatpush1.msra.mxu0 0.0
    %3060 = vmatprep.subr.mxu0 0.0
    %3061 = vmatpush1.msra.mxu0 0.0
    %3062 = vmatprep.subr.mxu0 0.0
    %3063 = vmatpush1.msra.mxu0 0.0
    %3064 = vmatprep.subr.mxu0 0.0
    %3065 = vmatpush1.msra.mxu0 0.0
    %3066 = vmatprep.subr.mxu0 0.0
    %3067 = vmatpush1.msra.mxu0 0.0
    %3068 = vmatprep.subr.mxu0 0.0
    %3069 = vmatpush1.msra.mxu0 0.0
    %3070 = vmatprep.subr.mxu0 0.0
    %3071 = vmatpush1.msra.mxu0 %v2864
    %3072 = vmatprep.subr.mxu0 0.0
    %3073 = vmatpush1.msra.mxu0 %v2863
    %3074 = vmatprep.subr.mxu0 0.0
    %3075 = vmatpush2.msra.mxu0 0.0
    %3076 = vmatprep.subr.mxu0 0.0
    %3077 = vmatpush2.msra.mxu0 0.0
    %3078 = vmatprep.subr.mxu0 0.0
    %3079 = vmatpush2.msra.mxu0 0.0
    %3080 = vmatprep.subr.mxu0 0.0
    %3081 = vmatpush2.msra.mxu0 0.0
    %3082 = vmatprep.subr.mxu0 0.0
    %3083 = vmatpush2.msra.mxu0 0.0
    %3084 = vmatprep.subr.mxu0 0.0
    %3085 = vmatpush2.msra.mxu0 0.0
    %3086 = vmatprep.subr.mxu0 0.0
    %3087 = vmatpush2.msra.mxu0 0.0
    %3088 = vmatprep.subr.mxu0 0.0
    %3089 = vmatpush2.msra.mxu0 0.0
    %3090 = vmatprep.subr.mxu0 0.0
    %3091 = vmatpush2.msra.mxu0 0.0
    %3092 = vmatprep.subr.mxu0 0.0
    %3093 = vmatpush2.msra.mxu0 0.0
    %3094 = vmatprep.subr.mxu0 0.0
    %3095 = vmatpush2.msra.mxu0 0.0
    %3096 = vmatprep.subr.mxu0 0.0
    %3097 = vmatpush2.msra.mxu0 0.0
    %3098 = vmatprep.subr.mxu0 0.0
    %3099 = vmatpush2.msra.mxu0 0.0
    %3100 = vmatprep.subr.mxu0 0.0
    %3101 = vmatpush2.msra.mxu0 0.0
    %3102 = vmatprep.subr.mxu0 0.0
    %3103 = vmatpush2.msra.mxu0 0.0
    %3104 = vmatprep.subr.mxu0 0.0
    %3105 = vmatpush2.msra.mxu0 0.0
    %3106 = vmatprep.mubr.f32.mxu0 0.0
    %3107 = vmatmul.mubr.f32.gmra.mxu0 %v3037
    %v3108 = vpop.f32.mrf.mxu0
    %v3109 = vadd.f32 0.0, %v3108
    %v3110 = vpop.f32.mrf.mxu0
    %3111 = vmatprep.mubr.f32.mxu0 0.0
    %3112 = vmatmul.mubr.f32.gmra.mxu0 %v3040
    %v3113 = vpop.f32.mrf.mxu0
    %v3114 = vadd.f32 0.0, %v3113
    %v3115 = vpop.f32.mrf.mxu0
    %3116 = vdwg.mxu0
    %3119 = vrot.lane.b32.xlu0 %v3109, 32
    %v3120 = vpop.permute.xlu0 %3119
    %3121 = vrot.lane.b32.xlu0 %v3114, 32
    %v3122 = vpop.permute.xlu0 %3121
    %v3125 = vsel %vm431, %v2996, %v3120
    %v3126 = vsel %vm431, %v3001, %v3122
    %3127 = vst.msk [vmem:[#allocation5] sm:$0xff] %vm941, %v3125
    %vm3128 = vcmask 519168
    %3129 = vst.msk [vmem:[#allocation5 + $0x8] sm:$0xf] %vm3128, %v3126
    %v3130 = vld [vmem:[%s57] sm:$0xff]
    %v3131 = vld [vmem:[%s57 + $0x8] sm:$0xff]
    %v3132 = vld [vmem:[%s57 + $0x10] sm:$0xff]
    %v3133 = vld [vmem:[%s57 + $0x18] sm:$0xff]
    %v3134 = vld [vmem:[%s59] sm:$0xff]
    %v3135 = vld [vmem:[%s59 + $0x8] sm:$0xff]
    %v3136 = vld [vmem:[%s59 + $0x10] sm:$0xff]
    %v3137 = vld [vmem:[%s59 + $0x18] sm:$0xff]
    %v3138 = vsel %vm431, %v3109, 0
    %v3140 = vsel %vm431, %v3114, 0
    %3142 = vmatprep.subr.mxu0 0.0
    %3143 = vmatpush1.msra.mxu0 0.0
    %3144 = vmatprep.subr.mxu0 0.0
    %3145 = vmatpush1.msra.mxu0 0.0
    %3146 = vmatprep.subr.mxu0 0.0
    %3147 = vmatpush1.msra.mxu0 0.0
    %3148 = vmatprep.subr.mxu0 0.0
    %3149 = vmatpush1.msra.mxu0 0.0
    %3150 = vmatprep.subr.mxu0 0.0
    %3151 = vmatpush1.msra.mxu0 0.0
    %3152 = vmatprep.subr.mxu0 0.0
    %3153 = vmatpush1.msra.mxu0 0.0
    %3154 = vmatprep.subr.mxu0 0.0
    %3155 = vmatpush1.msra.mxu0 0.0
    %3156 = vmatprep.subr.mxu0 0.0
    %3157 = vmatpush1.msra.mxu0 0.0
    %3158 = vmatprep.subr.mxu0 0.0
    %3159 = vmatpush1.msra.mxu0 0.0
    %3160 = vmatprep.subr.mxu0 0.0
    %3161 = vmatpush1.msra.mxu0 0.0
    %3162 = vmatprep.subr.mxu0 0.0
    %3163 = vmatpush1.msra.mxu0 0.0
    %3164 = vmatprep.subr.mxu0 0.0
    %3165 = vmatpush1.msra.mxu0 0.0
    %3166 = vmatprep.subr.mxu0 0.0
    %3167 = vmatpush1.msra.mxu0 %v3137
    %3168 = vmatprep.subr.mxu0 0.0
    %3169 = vmatpush1.msra.mxu0 %v3136
    %3170 = vmatprep.subr.mxu0 0.0
    %3171 = vmatpush1.msra.mxu0 %v3135
    %3172 = vmatprep.subr.mxu0 0.0
    %3173 = vmatpush1.msra.mxu0 %v3134
    %3174 = vmatprep.subr.mxu0 0.0
    %3175 = vmatpush2.msra.mxu0 0.0
    %3176 = vmatprep.subr.mxu0 0.0
    %3177 = vmatpush2.msra.mxu0 0.0
    %3178 = vmatprep.subr.mxu0 0.0
    %3179 = vmatpush2.msra.mxu0 0.0
    %3180 = vmatprep.subr.mxu0 0.0
    %3181 = vmatpush2.msra.mxu0 0.0
    %3182 = vmatprep.subr.mxu0 0.0
    %3183 = vmatpush2.msra.mxu0 0.0
    %3184 = vmatprep.subr.mxu0 0.0
    %3185 = vmatpush2.msra.mxu0 0.0
    %3186 = vmatprep.subr.mxu0 0.0
    %3187 = vmatpush2.msra.mxu0 0.0
    %3188 = vmatprep.subr.mxu0 0.0
    %3189 = vmatpush2.msra.mxu0 0.0
    %3190 = vmatprep.subr.mxu0 0.0
    %3191 = vmatpush2.msra.mxu0 0.0
    %3192 = vmatprep.subr.mxu0 0.0
    %3193 = vmatpush2.msra.mxu0 0.0
    %3194 = vmatprep.subr.mxu0 0.0
    %3195 = vmatpush2.msra.mxu0 0.0
    %3196 = vmatprep.subr.mxu0 0.0
    %3197 = vmatpush2.msra.mxu0 0.0
    %3198 = vmatprep.subr.mxu0 0.0
    %3199 = vmatpush2.msra.mxu0 0.0
    %3200 = vmatprep.subr.mxu0 0.0
    %3201 = vmatpush2.msra.mxu0 0.0
    %3202 = vmatprep.subr.mxu0 0.0
    %3203 = vmatpush2.msra.mxu0 0.0
    %3204 = vmatprep.subr.mxu0 0.0
    %3205 = vmatpush2.msra.mxu0 0.0
    %3206 = vmatprep.mubr.f32.mxu0 0.0
    %3207 = vmatmul.mubr.f32.gmra.mxu0 %v3138
    %v3208 = vpop.f32.mrf.mxu0
    %v3209 = vadd.f32 0.0, %v3208
    %v3210 = vpop.f32.mrf.mxu0
    %3211 = vmatprep.mubr.f32.mxu0 0.0
    %3212 = vmatmul.mubr.f32.gmra.mxu0 %v3140
    %v3213 = vpop.f32.mrf.mxu0
    %v3214 = vadd.f32 0.0, %v3213
    %v3215 = vpop.f32.mrf.mxu0
    %3216 = vdwg.mxu0
    %v3218 = vsel %vm431, %v2996, 0
    %v3221 = vsel %vm431, %v3001, 0
    %3223 = vmatprep.subr.mxu0 0.0
    %3224 = vmatpush1.msra.mxu0 0.0
    %3225 = vmatprep.subr.mxu0 0.0
    %3226 = vmatpush1.msra.mxu0 0.0
    %3227 = vmatprep.subr.mxu0 0.0
    %3228 = vmatpush1.msra.mxu0 0.0
    %3229 = vmatprep.subr.mxu0 0.0
    %3230 = vmatpush1.msra.mxu0 0.0
    %3231 = vmatprep.subr.mxu0 0.0
    %3232 = vmatpush1.msra.mxu0 0.0
    %3233 = vmatprep.subr.mxu0 0.0
    %3234 = vmatpush1.msra.mxu0 0.0
    %3235 = vmatprep.subr.mxu0 0.0
    %3236 = vmatpush1.msra.mxu0 0.0
    %3237 = vmatprep.subr.mxu0 0.0
    %3238 = vmatpush1.msra.mxu0 0.0
    %3239 = vmatprep.subr.mxu0 0.0
    %3240 = vmatpush1.msra.mxu0 0.0
    %3241 = vmatprep.subr.mxu0 0.0
    %3242 = vmatpush1.msra.mxu0 0.0
    %3243 = vmatprep.subr.mxu0 0.0
    %3244 = vmatpush1.msra.mxu0 0.0
    %3245 = vmatprep.subr.mxu0 0.0
    %3246 = vmatpush1.msra.mxu0 0.0
    %3247 = vmatprep.subr.mxu0 0.0
    %3248 = vmatpush1.msra.mxu0 %v3133
    %3249 = vmatprep.subr.mxu0 0.0
    %3250 = vmatpush1.msra.mxu0 %v3132
    %3251 = vmatprep.subr.mxu0 0.0
    %3252 = vmatpush1.msra.mxu0 %v3131
    %3253 = vmatprep.subr.mxu0 0.0
    %3254 = vmatpush1.msra.mxu0 %v3130
    %3255 = vmatprep.subr.mxu0 0.0
    %3256 = vmatpush2.msra.mxu0 0.0
    %3257 = vmatprep.subr.mxu0 0.0
    %3258 = vmatpush2.msra.mxu0 0.0
    %3259 = vmatprep.subr.mxu0 0.0
    %3260 = vmatpush2.msra.mxu0 0.0
    %3261 = vmatprep.subr.mxu0 0.0
    %3262 = vmatpush2.msra.mxu0 0.0
    %3263 = vmatprep.subr.mxu0 0.0
    %3264 = vmatpush2.msra.mxu0 0.0
    %3265 = vmatprep.subr.mxu0 0.0
    %3266 = vmatpush2.msra.mxu0 0.0
    %3267 = vmatprep.subr.mxu0 0.0
    %3268 = vmatpush2.msra.mxu0 0.0
    %3269 = vmatprep.subr.mxu0 0.0
    %3270 = vmatpush2.msra.mxu0 0.0
    %3271 = vmatprep.subr.mxu0 0.0
    %3272 = vmatpush2.msra.mxu0 0.0
    %3273 = vmatprep.subr.mxu0 0.0
    %3274 = vmatpush2.msra.mxu0 0.0
    %3275 = vmatprep.subr.mxu0 0.0
    %3276 = vmatpush2.msra.mxu0 0.0
    %3277 = vmatprep.subr.mxu0 0.0
    %3278 = vmatpush2.msra.mxu0 0.0
    %3279 = vmatprep.subr.mxu0 0.0
    %3280 = vmatpush2.msra.mxu0 0.0
    %3281 = vmatprep.subr.mxu0 0.0
    %3282 = vmatpush2.msra.mxu0 0.0
    %3283 = vmatprep.subr.mxu0 0.0
    %3284 = vmatpush2.msra.mxu0 0.0
    %3285 = vmatprep.subr.mxu0 0.0
    %3286 = vmatpush2.msra.mxu0 0.0
    %3287 = vmatprep.mubr.f32.mxu0 0.0
    %3288 = vmatmul.mubr.f32.gmra.mxu0 %v3218
    %v3289 = vpop.f32.mrf.mxu0
    %v3290 = vadd.f32 %v3209, %v3289
    %v3291 = vpop.f32.mrf.mxu0
    %3292 = vmatprep.mubr.f32.mxu0 0.0
    %3293 = vmatmul.mubr.f32.gmra.mxu0 %v3221
    %v3294 = vpop.f32.mrf.mxu0
    %v3295 = vadd.f32 %v3214, %v3294
    %v3296 = vpop.f32.mrf.mxu0
    %3297 = vdwg.mxu0
    %v3298 = vld [vmem:[%s61] sm:$0x1]
    %v3300 = vlaneseq
    %v3301 = vshrl.u32 %v3300, 7
    %v3302 = vsub.s32 0, %v3301
    %v3303 = vrot.slane %v3298, %v3302
    %v3305 = vadd.f32 %v3290, %v3303
    %v3306 = vadd.f32 %v3295, %v3303
    %vm3307 = vcmp.ge.f32.partialorder %v3305, 0.0
    %vm3308 = vcmp.ge.f32.partialorder %v3306, 0.0
    %v3309 = vmul.f32 %v3305, 0.01
    %v3310 = vmul.f32 %v3306, 0.01
    %v3311 = vsel %vm3307, %v3305, %v3309
    %v3312 = vsel %vm3308, %v3306, %v3310
    %v3313 = vld [vmem:[%s63] sm:$0xff]
    %v3314 = vld [vmem:[%s63 + $0x8] sm:$0xff]
    %v3315 = vld [vmem:[%s63 + $0x10] sm:$0xff]
    %v3316 = vld [vmem:[%s63 + $0x18] sm:$0xff]
    %v3317 = vld [vmem:[#allocation2] sm:$0x1]
    %v3319 = vlaneseq
    %v3320 = vshrl.u32 %v3319, 7
    %v3321 = vsub.s32 0, %v3320
    %v3322 = vrot.slane %v3317, %v3321
    %v3325 = vsel %vm431, %v3311, 0
    %v3328 = vsel %vm431, %v3312, 0
    %3330 = vmatprep.subr.mxu0 0.0
    %3331 = vmatpush1.msra.mxu0 0.0
    %3332 = vmatprep.subr.mxu0 0.0
    %3333 = vmatpush1.msra.mxu0 0.0
    %3334 = vmatprep.subr.mxu0 0.0
    %3335 = vmatpush1.msra.mxu0 0.0
    %3336 = vmatprep.subr.mxu0 0.0
    %3337 = vmatpush1.msra.mxu0 0.0
    %3338 = vmatprep.subr.mxu0 0.0
    %3339 = vmatpush1.msra.mxu0 0.0
    %3340 = vmatprep.subr.mxu0 0.0
    %3341 = vmatpush1.msra.mxu0 0.0
    %3342 = vmatprep.subr.mxu0 0.0
    %3343 = vmatpush1.msra.mxu0 0.0
    %3344 = vmatprep.subr.mxu0 0.0
    %3345 = vmatpush1.msra.mxu0 0.0
    %3346 = vmatprep.subr.mxu0 0.0
    %3347 = vmatpush1.msra.mxu0 0.0
    %3348 = vmatprep.subr.mxu0 0.0
    %3349 = vmatpush1.msra.mxu0 0.0
    %3350 = vmatprep.subr.mxu0 0.0
    %3351 = vmatpush1.msra.mxu0 0.0
    %3352 = vmatprep.subr.mxu0 0.0
    %3353 = vmatpush1.msra.mxu0 0.0
    %3354 = vmatprep.subr.mxu0 0.0
    %3355 = vmatpush1.msra.mxu0 %v3316
    %3356 = vmatprep.subr.mxu0 0.0
    %3357 = vmatpush1.msra.mxu0 %v3315
    %3358 = vmatprep.subr.mxu0 0.0
    %3359 = vmatpush1.msra.mxu0 %v3314
    %3360 = vmatprep.subr.mxu0 0.0
    %3361 = vmatpush1.msra.mxu0 %v3313
    %3362 = vmatprep.subr.mxu0 0.0
    %3363 = vmatpush2.msra.mxu0 0.0
    %3364 = vmatprep.subr.mxu0 0.0
    %3365 = vmatpush2.msra.mxu0 0.0
    %3366 = vmatprep.subr.mxu0 0.0
    %3367 = vmatpush2.msra.mxu0 0.0
    %3368 = vmatprep.subr.mxu0 0.0
    %3369 = vmatpush2.msra.mxu0 0.0
    %3370 = vmatprep.subr.mxu0 0.0
    %3371 = vmatpush2.msra.mxu0 0.0
    %3372 = vmatprep.subr.mxu0 0.0
    %3373 = vmatpush2.msra.mxu0 0.0
    %3374 = vmatprep.subr.mxu0 0.0
    %3375 = vmatpush2.msra.mxu0 0.0
    %3376 = vmatprep.subr.mxu0 0.0
    %3377 = vmatpush2.msra.mxu0 0.0
    %3378 = vmatprep.subr.mxu0 0.0
    %3379 = vmatpush2.msra.mxu0 0.0
    %3380 = vmatprep.subr.mxu0 0.0
    %3381 = vmatpush2.msra.mxu0 0.0
    %3382 = vmatprep.subr.mxu0 0.0
    %3383 = vmatpush2.msra.mxu0 0.0
    %3384 = vmatprep.subr.mxu0 0.0
    %3385 = vmatpush2.msra.mxu0 0.0
    %3386 = vmatprep.subr.mxu0 0.0
    %3387 = vmatpush2.msra.mxu0 0.0
    %3388 = vmatprep.subr.mxu0 0.0
    %3389 = vmatpush2.msra.mxu0 0.0
    %3390 = vmatprep.subr.mxu0 0.0
    %3391 = vmatpush2.msra.mxu0 0.0
    %3392 = vmatprep.subr.mxu0 0.0
    %3393 = vmatpush2.msra.mxu0 0.0
    %3394 = vmatprep.mubr.f32.mxu0 0.0
    %3395 = vmatmul.mubr.f32.gmra.mxu0 %v3325
    %v3396 = vpop.f32.mrf.mxu0
    %v3397 = vadd.f32 %v3322, %v3396
    %v3398 = vpop.f32.mrf.mxu0
    %3399 = vmatprep.mubr.f32.mxu0 0.0
    %3400 = vmatmul.mubr.f32.gmra.mxu0 %v3328
    %v3401 = vpop.f32.mrf.mxu0
    %v3402 = vadd.f32 %v3322, %v3401
    %v3403 = vpop.f32.mrf.mxu0
    %3404 = vdwg.mxu0
    %v3405 = vxor.u32 %v3397, 2147483648
    %v3406 = vxor.u32 %v3402, 2147483648
    %v3407 = vmul.f32 %v3405, 1.442695
    %v3408 = vpow.pop %v3407
    %v3409 = vmul.f32 %v3406, 1.442695
    %v3410 = vpow.pop %v3409
    %v3411 = vadd.f32 %v3408, 1.0
    %v3412 = vadd.f32 %v3410, 1.0
    %v3413 = vrcp.pop %v3411
    %v3414 = vmul.f32 1.0, %v3413
    %v3415 = vrcp.pop %v3412
    %v3416 = vmul.f32 1.0, %v3415
    %3417 = vst.msk [vmem:[%s67] sm:$0xff] %vm217, %v3414
    %vm3418 = vcmask 3072
    %3419 = vst.msk [vmem:[%s67 + $0x8] sm:$0xf] %vm3418, %v3416
    // Predicated region
    $region134: #{forward.1} parent=1 // pred_check
      _
    $region135: #{forward.1} parent=1 // pred_check_branch
      %3421 = sbr.rel (0) target = $region137
    $region136: #{forward.1} parent=1 // pred_region
      _
    $region137: #{forward.1} parent=1 // pred_fallthru
      _
    // Predicated region
    $region138: #{forward.1} parent=1 // pred_check
      _
    $region139: #{forward.1} parent=1 // pred_check_branch
      %3423 = sbr.rel (0) target = $region141
    $region140: #{forward.1} parent=1 // pred_region
      %s3425 = ssub.s32 256, 256
      %3426 = vsyncadd [#allocation4], %s3425
      %s3427 = sshll.u32 [#allocation3], 4
      %s3428 = int_to_ptr.vmem [resolvable:$true] %s3427
      %3433 = dma.vmem_to_hbm [thread:$0]  %s3428, 256, %s69, [#allocation4], 128, 128, 8
    $region141: #{forward.1} parent=1 // pred_fallthru
      _
    // Predicated region
    $region142: #{forward.1} parent=1 // pred_check
      _
    $region143: #{forward.1} parent=1 // pred_check_branch
      %3435 = sbr.rel (0) target = $region145
    $region144: #{forward.1} parent=1 // pred_region
      %s3437 = ssub.s32 256, 256
      %3438 = vsyncadd [#allocation6], %s3437
      %s3439 = sshll.u32 [#allocation5], 4
      %s3440 = int_to_ptr.vmem [resolvable:$true] %s3439
      %3445 = dma.vmem_to_hbm [thread:$0]  %s3440, 256, %s71, [#allocation6], 128, 128, 8
    $region145: #{forward.1} parent=1 // pred_fallthru
      _
    // Predicated region
    $region146: #{forward.1} parent=1 // pred_check
      _
    $region147: #{forward.1} parent=1 // pred_check_branch
      %3447 = sbr.rel (0) target = $region149
    $region148: #{forward.1} parent=1 // pred_region
      _
    $region149: #{forward.1} parent=1 // pred_fallthru
      _
    // Predicated region
    $region150: #{forward.1} parent=1 // pred_check
      _
    $region151: #{forward.1} parent=1 // pred_check_branch
      %3449 = sbr.rel (0) target = $region153
    $region152: #{forward.1} parent=1 // pred_region
      %3450 = dma.done [#allocation4], 256
    $region153: #{forward.1} parent=1 // pred_fallthru
      _
    // Predicated region
    $region154: #{forward.1} parent=1 // pred_check
      _
    $region155: #{forward.1} parent=1 // pred_check_branch
      %3452 = sbr.rel (0) target = $region157
    $region156: #{forward.1} parent=1 // pred_region
      %3453 = dma.done [#allocation6], 256
    $region157: #{forward.1} parent=1 // pred_fallthru
      _
    %3454 = vsyncpa [#allocation4], 1
    %3455 = vsyncpa [#allocation6], 1

</llo_original>
